<compile_context>
chip_gen: v7x
topology: tpu7x:2x2x1
jax: 0.10.0
libtpu: 0.0.40
codegen_flags: <defaults>
</compile_context>

<pallas_src>
import functools

import jax
import jax.numpy as jnp
from jax.experimental import pallas as pl
from jax.experimental.pallas import tpu as pltpu


# ----------------------------------------------------------------------------
# Kernel: one grid step == (batch element b, layer l).  x is carried in VMEM scratch.
# ----------------------------------------------------------------------------
def _decoder_kernel(*refs, nhead, eps, use_final_norm,
                    has_self_mask, has_sent_mask, has_graph_mask):
    it = iter(refs)
    x_ref, sent_ref, graph_ref = next(it), next(it), next(it)
    self_mask_ref = next(it) if has_self_mask else None
    sent_mask_ref = next(it) if has_sent_mask else None
    graph_mask_ref = next(it) if has_graph_mask else None
    (wqkv_s, bqkv_s, wo_s, bo_s,
     wq_m, bq_m, wkv_m, bkv_m, wo_m, bo_m,
     wq_g, bq_g, wkv_g, bkv_g, wo_g, bo_g,
     w1, b1, w2, b2, lng, lnb, fng, fnb) = (next(it) for _ in range(24))
    o_ref = next(it)
    x_scr, attn_scr = next(it), next(it)

    D = x_ref.shape[-1]
    dh = D // nhead
    scale = 1.0 / float(dh) ** 0.5
    l = pl.program_id(1)

    def mm(a, b):
        # bf16 MXU operands (weights are already bf16), f32 accumulation.
        return jnp.dot(a.astype(jnp.bfloat16), b.astype(jnp.bfloat16),
                       preferred_element_type=jnp.float32)

    def mm_nt(a, b):
        # a @ b.T without materializing the transpose.
        return jax.lax.dot_general(
            a.astype(jnp.bfloat16), b.astype(jnp.bfloat16),
            dimension_numbers=(((1,), (1,)), ((), ())),
            preferred_element_type=jnp.float32)

    def layernorm(v, g, b):
        mu = jnp.mean(v, axis=-1, keepdims=True)
        var = jnp.mean(jnp.square(v - mu), axis=-1, keepdims=True)
        return (v - mu) * jax.lax.rsqrt(var + eps) * g + b

    def attention(q, k, v, mask, wo, bo):
        # q is pre-scaled by 1/sqrt(dh).  Each head writes its lane slice of attn_scr.
        for h in range(nhead):
            sl = slice(h * dh, (h + 1) * dh)
            s = mm_nt(q[:, sl], k[:, sl])                 # (Tq, Tk) f32
            if mask is not None:
                s = s + mask
            s = s - jnp.max(s, axis=-1, keepdims=True)
            p = jnp.exp(s)                                # f32 (v5e has no bf16 EUP)
            p = p * pl.reciprocal(jnp.sum(p, axis=-1, keepdims=True), approx=True)
            attn_scr[:, sl] = mm(p, v[:, sl])             # lane-dense head output
        return mm(attn_scr[...], wo) + bo

    @pl.when(l == 0)
    def _():
        x_scr[...] = x_ref[0]

    x = x_scr[...]                                        # (T,  D) carried activation
    sent = sent_ref[0]                                    # (Ts, D)
    graph = graph_ref[0]                                  # (Tg, D)
    self_mask = self_mask_ref[...] if has_self_mask else None
    sent_mask = sent_mask_ref[...] if has_sent_mask else None
    graph_mask = graph_mask_ref[...] if has_graph_mask else None
    lng_l = lng[0]                                        # (4, 1, D)
    lnb_l = lnb[0]

    # 1) masked self-attention (fused QKV) + residual + LN
    qkv = mm(x, wqkv_s[0]) + bqkv_s[0]                    # (T, 3D)
    sa = attention(qkv[:, :D] * scale, qkv[:, D:2 * D], qkv[:, 2 * D:],
                   self_mask, wo_s[0], bo_s[0])
    x = layernorm(x + sa, lng_l[0], lnb_l[0])

    # 2) cross-attention over sentence memory + residual + LN
    q = (mm(x, wq_m[0]) + bq_m[0]) * scale
    kv = mm(sent, wkv_m[0]) + bkv_m[0]                    # (Ts, 2D)
    c1 = attention(q, kv[:, :D], kv[:, D:], sent_mask, wo_m[0], bo_m[0])
    x = layernorm(x + c1, lng_l[1], lnb_l[1])

    # 3) cross-attention over graph memory + residual + LN
    q = (mm(x, wq_g[0]) + bq_g[0]) * scale
    kv = mm(graph, wkv_g[0]) + bkv_g[0]                   # (Tg, 2D)
    c2 = attention(q, kv[:, :D], kv[:, D:], graph_mask, wo_g[0], bo_g[0])
    x = layernorm(x + c2, lng_l[2], lnb_l[2])

    # 4) feed-forward (Linear -> ReLU -> Linear) + residual + LN
    hmid = jnp.maximum(mm(x, w1[0]) + b1[0], 0.0)
    ff = mm(hmid, w2[0]) + b2[0]
    x = layernorm(x + ff, lng_l[3], lnb_l[3])
    # TODO(synk): dropout layers are identity in eval mode and are omitted.

    x_scr[...] = x

    @pl.when(l == pl.num_programs(1) - 1)
    def _():
        xo = layernorm(x, fng[...], fnb[...]) if use_final_norm else x
        o_ref[0] = xo.astype(o_ref.dtype)


# ----------------------------------------------------------------------------
# Wrapper: single pallas_call, grid=(B, L), per-layer weight streaming.
# ----------------------------------------------------------------------------
def double_sen_attn_transformer_decoder(tgt, sent_memory, graph_memory, params, nhead,
                                        tgt_mask=None, sent_memory_mask=None,
                                        graph_memory_mask=None):
    # layout: inputs are (T, B, D) (PyTorch seq-first); compute in (B, T, D).
    T, B, D = tgt.shape
    Ts, Tg = sent_memory.shape[0], graph_memory.shape[0]
    L = params["wqkv_self"].shape[0]
    F = params["w1"].shape[-1]
    assert D % nhead == 0

    def rup(n, m=8):
        return ((n + m - 1) // m) * m

    T_pad, Ts_pad, Tg_pad = rup(T), rup(Ts), rup(Tg)

    def to_btd(a, t_pad):
        a = jnp.transpose(a, (1, 0, 2)).astype(jnp.float32)
        if t_pad != a.shape[1]:
            a = jnp.pad(a, ((0, 0), (0, t_pad - a.shape[1]), (0, 0)))
        return a

    x = to_btd(tgt, T_pad)
    sent = to_btd(sent_memory, Ts_pad)
    graph = to_btd(graph_memory, Tg_pad)

    NEG = -1e9

    def build_mask(user_mask, tq, tk, tk_pad):
        # Additive mask; only materialized if needed (user mask or key padding).
        if user_mask is None and tk_pad == tk:
            return None
        if user_mask is not None:
            m = jnp.zeros((T_pad, tk_pad), jnp.float32)
            m = m.at[:tq, :tk].set(user_mask.astype(jnp.float32))
        else:
            m = jnp.zeros((1, tk_pad), jnp.float32)
        if tk_pad != tk:
            m = m.at[:, tk:].set(NEG)
        return m

    self_mask = build_mask(tgt_mask, T, T, T_pad)
    sent_mask = build_mask(sent_memory_mask, T, Ts, Ts_pad)
    graph_mask = build_mask(graph_memory_mask, T, Tg, Tg_pad)
    # TODO(synk): per-batch *_key_padding_mask arguments are not wired in.

    bf = lambda a: a.astype(jnp.bfloat16)
    stacked = (
        bf(params["wqkv_self"]), params["bqkv_self"], bf(params["wo_self"]), params["bo_self"],
        bf(params["wq_sent"]), params["bq_sent"], bf(params["wkv_sent"]), params["bkv_sent"],
        bf(params["wo_sent"]), params["bo_sent"],
        bf(params["wq_graph"]), params["bq_graph"], bf(params["wkv_graph"]), params["bkv_graph"],
        bf(params["wo_graph"]), params["bo_graph"],
        bf(params["w1"]), params["b1"], bf(params["w2"]), params["b2"],
        params["ln_g"], params["ln_b"],
    )
    final_g = params.get("final_g")
    use_final_norm = final_g is not None
    if use_final_norm:
        final_b = params["final_b"]
    else:  # dummies; kernel skips them statically
        final_g = jnp.ones((1, D), jnp.float32)
        final_b = jnp.zeros((1, D), jnp.float32)

    def batched_spec(t_len):                       # per-batch activation row
        return pl.BlockSpec((1, t_len, D), lambda b, l: (b, 0, 0))

    def layer_spec(shape):                         # per-layer weight slab (streamed)
        nd = len(shape)
        return pl.BlockSpec((1,) + tuple(shape[1:]),
                            lambda b, l, _nd=nd: (l,) + (0,) * (_nd - 1))

    def const_spec(shape):                         # small always-resident arrays
        nd = len(shape)
        return pl.BlockSpec(tuple(shape), lambda b, l, _nd=nd: (0,) * _nd)

    args = [x, sent, graph]
    in_specs = [batched_spec(T_pad), batched_spec(Ts_pad), batched_spec(Tg_pad)]
    masks = []
    for m in (self_mask, sent_mask, graph_mask):
        if m is not None:
            args.append(m)
            in_specs.append(const_spec(m.shape))
            masks.append(m)
    args += list(stacked) + [final_g, final_b]
    in_specs += [layer_spec(w.shape) for w in stacked]
    in_specs += [const_spec(final_g.shape), const_spec(final_b.shape)]

    # VMEM budget: per-step blocks (double-buffered) + scratch + headroom.
    per_step = sum(int(a.size // a.shape[0]) * a.dtype.itemsize
                   for a in [x, sent, graph] + list(stacked))
    per_step += sum(int(a.size) * a.dtype.itemsize for a in masks + [final_g, final_b])
    per_step += T_pad * D * 4                                  # output block
    scratch_bytes = 2 * T_pad * D * 4
    vmem_limit = int(min(max(2 * (2 * per_step + scratch_bytes), 32 * 1024 * 1024),
                         64 * 1024 * 1024))

    # Advisory cost estimate for the XLA scheduler.
    dh = D // nhead
    flops = B * L * (
        2 * T_pad * D * 3 * D + 2 * T_pad * D * D              # self qkv + out proj
        + 2 * T_pad * D * D + 2 * Ts_pad * D * 2 * D + 2 * T_pad * D * D
        + 2 * T_pad * D * D + 2 * Tg_pad * D * 2 * D + 2 * T_pad * D * D
        + 4 * nhead * T_pad * dh * (T_pad + Ts_pad + Tg_pad)   # qk^T + pv
        + 4 * T_pad * D * F)                                   # ffn
    transcendentals = B * L * nhead * T_pad * (T_pad + Ts_pad + Tg_pad)
    bytes_accessed = (sum(int(a.size) * a.dtype.itemsize for a in args)
                      + B * T_pad * D * 4)

    kernel = functools.partial(
        _decoder_kernel, nhead=nhead, eps=1e-5, use_final_norm=use_final_norm,
        has_self_mask=self_mask is not None,
        has_sent_mask=sent_mask is not None,
        has_graph_mask=graph_mask is not None)

    out = pl.pallas_call(
        kernel,
        out_shape=jax.ShapeDtypeStruct((B, T_pad, D), jnp.float32),
        grid=(B, L),
        in_specs=in_specs,
        out_specs=pl.BlockSpec((1, T_pad, D), lambda b, l: (b, 0, 0)),
        scratch_shapes=[pltpu.VMEM((T_pad, D), jnp.float32),   # carried activation x
                        pltpu.VMEM((T_pad, D), jnp.float32)],  # per-head attn output
        compiler_params=pltpu.CompilerParams(
            dimension_semantics=("parallel", "arbitrary"),
            vmem_limit_bytes=vmem_limit),
        cost_estimate=pl.CostEstimate(flops=int(flops),
                                      transcendentals=int(transcendentals),
                                      bytes_accessed=int(bytes_accessed)),
    )(*args)

    return jnp.transpose(out[:, :T, :], (1, 0, 2))             # back to (T, B, D)


# ----------------------------------------------------------------------------
# Deterministic parameter construction (weights stacked over the layer axis).
# ----------------------------------------------------------------------------
def make_params(key, num_layers, d_model, dim_ff):
    L, D, F = num_layers, d_model, dim_ff
    ks = jax.random.split(key, 10)
    s = 0.02

    def w(k, shape):
        return s * jax.random.normal(k, shape, jnp.float32)

    return {
        # self-attention (fused Q|K|V)
        "wqkv_self": w(ks[0], (L, D, 3 * D)), "bqkv_self": jnp.zeros((L, 1, 3 * D), jnp.float32),
        "wo_self": w(ks[1], (L, D, D)), "bo_self": jnp.zeros((L, 1, D), jnp.float32),
        # sentence cross-attention (Q separate from fused K|V)
        "wq_sent": w(ks[2], (L, D, D)), "bq_sent": jnp.zeros((L, 1, D), jnp.float32),
        "wkv_sent": w(ks[3], (L, D, 2 * D)), "bkv_sent": jnp.zeros((L, 1, 2 * D), jnp.float32),
        "wo_sent": w(ks[4], (L, D, D)), "bo_sent": jnp.zeros((L, 1, D), jnp.float32),
        # graph cross-attention
        "wq_graph": w(ks[5], (L, D, D)), "bq_graph": jnp.zeros((L, 1, D), jnp.float32),
        "wkv_graph": w(ks[6], (L, D, 2 * D)), "bkv_graph": jnp.zeros((L, 1, 2 * D), jnp.float32),
        "wo_graph": w(ks[7], (L, D, D)), "bo_graph": jnp.zeros((L, 1, D), jnp.float32),
        # feed-forward
        "w1": w(ks[8], (L, D, F)), "b1": jnp.zeros((L, 1, F), jnp.float32),
        "w2": w(ks[9], (L, F, D)), "b2": jnp.zeros((L, 1, D), jnp.float32),
        # per-layer LayerNorms (after self / sent / graph / ffn)
        "ln_g": jnp.ones((L, 4, 1, D), jnp.float32), "ln_b": jnp.zeros((L, 4, 1, D), jnp.float32),
        # optional final norm
        "final_g": jnp.ones((1, D), jnp.float32), "final_b": jnp.zeros((1, D), jnp.float32),
    }


# ----------------------------------------------------------------------------
# Pure-JAX reference (f32) for a correctness sanity check.
# ----------------------------------------------------------------------------
def reference_decoder(tgt, sent_memory, graph_memory, params, nhead, tgt_mask):
    D = tgt.shape[-1]
    dh = D // nhead
    L = params["wqkv_self"].shape[0]
    x = jnp.transpose(tgt, (1, 0, 2))
    s_mem = jnp.transpose(sent_memory, (1, 0, 2))
    g_mem = jnp.transpose(graph_memory, (1, 0, 2))

    def ln(v, g, b):
        mu = v.mean(-1, keepdims=True)
        var = ((v - mu) ** 2).mean(-1, keepdims=True)
        return (v - mu) / jnp.sqrt(var + 1e-5) * g + b

    def attn(q, k, v, mask):
        Bq, Tq, _ = q.shape
        Tk = k.shape[1]
        qh = q.reshape(Bq, Tq, nhead, dh).transpose(0, 2, 1, 3)
        kh = k.reshape(Bq, Tk, nhead, dh).transpose(0, 2, 1, 3)
        vh = v.reshape(Bq, Tk, nhead, dh).transpose(0, 2, 1, 3)
        s = jnp.einsum("bhqd,bhkd->bhqk", qh, kh) / jnp.sqrt(dh)
        if mask is not None:
            s = s + mask
        p = jax.nn.softmax(s, axis=-1)
        return jnp.einsum("bhqk,bhkd->bhqd", p, vh).transpose(0, 2, 1, 3).reshape(Bq, Tq, D)

    for l in range(L):
        qkv = x @ params["wqkv_self"][l] + params["bqkv_self"][l]
        sa = attn(qkv[..., :D], qkv[..., D:2 * D], qkv[..., 2 * D:], tgt_mask)
        sa = sa @ params["wo_self"][l] + params["bo_self"][l]
        x = ln(x + sa, params["ln_g"][l, 0], params["ln_b"][l, 0])

        q = x @ params["wq_sent"][l] + params["bq_sent"][l]
        kv = s_mem @ params["wkv_sent"][l] + params["bkv_sent"][l]
        c = attn(q, kv[..., :D], kv[..., D:], None) @ params["wo_sent"][l] + params["bo_sent"][l]
        x = ln(x + c, params["ln_g"][l, 1], params["ln_b"][l, 1])

        q = x @ params["wq_graph"][l] + params["bq_graph"][l]
        kv = g_mem @ params["wkv_graph"][l] + params["bkv_graph"][l]
        c = attn(q, kv[..., :D], kv[..., D:], None) @ params["wo_graph"][l] + params["bo_graph"][l]
        x = ln(x + c, params["ln_g"][l, 2], params["ln_b"][l, 2])

        hmid = jax.nn.relu(x @ params["w1"][l] + params["b1"][l])
        ff = hmid @ params["w2"][l] + params["b2"][l]
        x = ln(x + ff, params["ln_g"][l, 3], params["ln_b"][l, 3])

    if params.get("final_g") is not None:
        x = ln(x, params["final_g"], params["final_b"])
    return jnp.transpose(x, (1, 0, 2))


# ----------------------------------------------------------------------------
if __name__ == "__main__":
    d_model, nhead, dim_ff, num_layers = 32, 4, 64, 2
    T, B = 8, 2           # tgt length, batch
    Ts, Tg = 12, 16       # sentence memory length, graph memory length

    key = jax.random.PRNGKey(0)
    kp, kt, ks_, kg = jax.random.split(key, 4)

    params = make_params(kp, num_layers, d_model, dim_ff)

    tgt = jax.random.normal(kt, (T, B, d_model), jnp.float32)
    sent_memory = jax.random.normal(ks_, (Ts, B, d_model), jnp.float32)
    graph_memory = jax.random.normal(kg, (Tg, B, d_model), jnp.float32)

    # causal additive tgt mask (standard decoder self-attention mask)
    causal = jnp.where(
        jnp.tril(jnp.ones((T, T), jnp.bool_)), 0.0, -1e9
    ).astype(jnp.float32)

    fwd = jax.jit(
        functools.partial(double_sen_attn_transformer_decoder, nhead=nhead)
    )
    out = fwd(tgt, sent_memory, graph_memory, params, tgt_mask=causal)
    out = jax.block_until_ready(out)

    assert out.shape == (T, B, d_model)
    assert bool(jnp.all(jnp.isfinite(out)))

    ref = reference_decoder(tgt, sent_memory, graph_memory, params, nhead, causal)
    max_diff = float(jnp.max(jnp.abs(out - ref)))
    assert max_diff < 1.5e-1, f"mismatch vs reference: {max_diff}"

    print("KERNEL_OK")
</pallas_src>

<mosaic_0001>
module attributes {stable_mosaic.version = 11 : i64} {
  func.func @_decoder_kernel(%arg0: i32, %arg1: i32, %arg2: memref<1x8x32xf32, #tpu.memory_space<vmem>>, %arg3: memref<1x16x32xf32, #tpu.memory_space<vmem>>, %arg4: memref<1x16x32xf32, #tpu.memory_space<vmem>>, %arg5: memref<8x8xf32, #tpu.memory_space<vmem>>, %arg6: memref<1x16xf32, #tpu.memory_space<vmem>>, %arg7: memref<1x32x96xbf16, #tpu.memory_space<vmem>>, %arg8: memref<1x1x96xf32, #tpu.memory_space<vmem>>, %arg9: memref<1x32x32xbf16, #tpu.memory_space<vmem>>, %arg10: memref<1x1x32xf32, #tpu.memory_space<vmem>>, %arg11: memref<1x32x32xbf16, #tpu.memory_space<vmem>>, %arg12: memref<1x1x32xf32, #tpu.memory_space<vmem>>, %arg13: memref<1x32x64xbf16, #tpu.memory_space<vmem>>, %arg14: memref<1x1x64xf32, #tpu.memory_space<vmem>>, %arg15: memref<1x32x32xbf16, #tpu.memory_space<vmem>>, %arg16: memref<1x1x32xf32, #tpu.memory_space<vmem>>, %arg17: memref<1x32x32xbf16, #tpu.memory_space<vmem>>, %arg18: memref<1x1x32xf32, #tpu.memory_space<vmem>>, %arg19: memref<1x32x64xbf16, #tpu.memory_space<vmem>>, %arg20: memref<1x1x64xf32, #tpu.memory_space<vmem>>, %arg21: memref<1x32x32xbf16, #tpu.memory_space<vmem>>, %arg22: memref<1x1x32xf32, #tpu.memory_space<vmem>>, %arg23: memref<1x32x64xbf16, #tpu.memory_space<vmem>>, %arg24: memref<1x1x64xf32, #tpu.memory_space<vmem>>, %arg25: memref<1x64x32xbf16, #tpu.memory_space<vmem>>, %arg26: memref<1x1x32xf32, #tpu.memory_space<vmem>>, %arg27: memref<1x4x1x32xf32, #tpu.memory_space<vmem>>, %arg28: memref<1x4x1x32xf32, #tpu.memory_space<vmem>>, %arg29: memref<1x32xf32, #tpu.memory_space<vmem>>, %arg30: memref<1x32xf32, #tpu.memory_space<vmem>>, %arg31: memref<1x8x32xf32, #tpu.memory_space<vmem>>, %arg32: memref<8x32xf32, #tpu.memory_space<vmem>>, %arg33: memref<8x32xf32, #tpu.memory_space<vmem>>) attributes {dimension_semantics = [#tpu.dimension_semantics<parallel>, #tpu.dimension_semantics<arbitrary>], iteration_bounds = array<i64: 2, 2>, scalar_prefetch = 0 : i64, scratch_operands = 2 : i64, tpu.core_type = #tpu.core_type<tc>, window_params = [{transform_indices = @transform_0, window_bounds = array<i64: 1, 8, 32>}, {transform_indices = @transform_1, window_bounds = array<i64: 1, 16, 32>}, {transform_indices = @transform_2, window_bounds = array<i64: 1, 16, 32>}, {pipeline_mode = #tpu.pipeline_mode<synchronous>, transform_indices = @transform_3, window_bounds = array<i64: 8, 8>}, {pipeline_mode = #tpu.pipeline_mode<synchronous>, transform_indices = @transform_4, window_bounds = array<i64: 1, 16>}, {transform_indices = @transform_5, window_bounds = array<i64: 1, 32, 96>}, {transform_indices = @transform_6, window_bounds = array<i64: 1, 1, 96>}, {transform_indices = @transform_7, window_bounds = array<i64: 1, 32, 32>}, {transform_indices = @transform_8, window_bounds = array<i64: 1, 1, 32>}, {transform_indices = @transform_9, window_bounds = array<i64: 1, 32, 32>}, {transform_indices = @transform_10, window_bounds = array<i64: 1, 1, 32>}, {transform_indices = @transform_11, window_bounds = array<i64: 1, 32, 64>}, {transform_indices = @transform_12, window_bounds = array<i64: 1, 1, 64>}, {transform_indices = @transform_13, window_bounds = array<i64: 1, 32, 32>}, {transform_indices = @transform_14, window_bounds = array<i64: 1, 1, 32>}, {transform_indices = @transform_15, window_bounds = array<i64: 1, 32, 32>}, {transform_indices = @transform_16, window_bounds = array<i64: 1, 1, 32>}, {transform_indices = @transform_17, window_bounds = array<i64: 1, 32, 64>}, {transform_indices = @transform_18, window_bounds = array<i64: 1, 1, 64>}, {transform_indices = @transform_19, window_bounds = array<i64: 1, 32, 32>}, {transform_indices = @transform_20, window_bounds = array<i64: 1, 1, 32>}, {transform_indices = @transform_21, window_bounds = array<i64: 1, 32, 64>}, {transform_indices = @transform_22, window_bounds = array<i64: 1, 1, 64>}, {transform_indices = @transform_23, window_bounds = array<i64: 1, 64, 32>}, {transform_indices = @transform_24, window_bounds = array<i64: 1, 1, 32>}, {transform_indices = @transform_25, window_bounds = array<i64: 1, 4, 1, 32>}, {transform_indices = @transform_26, window_bounds = array<i64: 1, 4, 1, 32>}, {pipeline_mode = #tpu.pipeline_mode<synchronous>, transform_indices = @transform_27, window_bounds = array<i64: 1, 32>}, {pipeline_mode = #tpu.pipeline_mode<synchronous>, transform_indices = @transform_28, window_bounds = array<i64: 1, 32>}, {transform_indices = @transform_29, window_bounds = array<i64: 1, 8, 32>}]} {
    %c0_i32 = arith.constant 0 : i32
    %0 = arith.cmpi eq, %arg1, %c0_i32 : i32
    %1 = arith.extui %0 : i1 to i32
    %c0_i32_0 = arith.constant 0 : i32
    %2 = arith.cmpi ne, %1, %c0_i32_0 : i32
    scf.if %2 {
      %c0_191 = arith.constant 0 : index
      %c0_192 = arith.constant 0 : index
      %c0_193 = arith.constant 0 : index
      %476 = vector.load %arg2[%c0_191, %c0_192, %c0_193] : memref<1x8x32xf32, #tpu.memory_space<vmem>>, vector<1x8x32xf32>
      %477 = vector.shape_cast %476 : vector<1x8x32xf32> to vector<8x32xf32>
      %c0_194 = arith.constant 0 : index
      %c0_195 = arith.constant 0 : index
      %478 = vector.load %arg32[%c0_194, %c0_195] : memref<8x32xf32, #tpu.memory_space<vmem>>, vector<8x32xf32>
      tpu.vector_store %arg32[%c0_194, %c0_195], %477 {strides = array<i32>} : memref<8x32xf32, #tpu.memory_space<vmem>>, vector<8x32xf32>,
    } else {
    }
    %c0 = arith.constant 0 : index
    %c0_1 = arith.constant 0 : index
    %3 = vector.load %arg32[%c0, %c0_1] : memref<8x32xf32, #tpu.memory_space<vmem>>, vector<8x32xf32>
    %c0_2 = arith.constant 0 : index
    %c0_3 = arith.constant 0 : index
    %c0_4 = arith.constant 0 : index
    %4 = vector.load %arg3[%c0_2, %c0_3, %c0_4] : memref<1x16x32xf32, #tpu.memory_space<vmem>>, vector<1x16x32xf32>
    %5 = vector.shape_cast %4 : vector<1x16x32xf32> to vector<16x32xf32>
    %c0_5 = arith.constant 0 : index
    %c0_6 = arith.constant 0 : index
    %c0_7 = arith.constant 0 : index
    %6 = vector.load %arg4[%c0_5, %c0_6, %c0_7] : memref<1x16x32xf32, #tpu.memory_space<vmem>>, vector<1x16x32xf32>
    %7 = vector.shape_cast %6 : vector<1x16x32xf32> to vector<16x32xf32>
    %c0_8 = arith.constant 0 : index
    %c0_9 = arith.constant 0 : index
    %8 = vector.load %arg5[%c0_8, %c0_9] : memref<8x8xf32, #tpu.memory_space<vmem>>, vector<8x8xf32>
    %c0_10 = arith.constant 0 : index
    %c0_11 = arith.constant 0 : index
    %9 = vector.load %arg6[%c0_10, %c0_11] : memref<1x16xf32, #tpu.memory_space<vmem>>, vector<1x16xf32>
    %c0_12 = arith.constant 0 : index
    %c0_13 = arith.constant 0 : index
    %c0_14 = arith.constant 0 : index
    %c0_15 = arith.constant 0 : index
    %10 = vector.load %arg27[%c0_12, %c0_13, %c0_14, %c0_15] : memref<1x4x1x32xf32, #tpu.memory_space<vmem>>, vector<1x4x1x32xf32>
    %11 = vector.shape_cast %10 : vector<1x4x1x32xf32> to vector<4x1x32xf32>
    %c0_16 = arith.constant 0 : index
    %c0_17 = arith.constant 0 : index
    %c0_18 = arith.constant 0 : index
    %c0_19 = arith.constant 0 : index
    %12 = vector.load %arg28[%c0_16, %c0_17, %c0_18, %c0_19] : memref<1x4x1x32xf32, #tpu.memory_space<vmem>>, vector<1x4x1x32xf32>
    %13 = vector.shape_cast %12 : vector<1x4x1x32xf32> to vector<4x1x32xf32>
    %c0_20 = arith.constant 0 : index
    %c0_21 = arith.constant 0 : index
    %c0_22 = arith.constant 0 : index
    %14 = vector.load %arg7[%c0_20, %c0_21, %c0_22] : memref<1x32x96xbf16, #tpu.memory_space<vmem>>, vector<1x32x96xbf16>
    %15 = vector.shape_cast %14 : vector<1x32x96xbf16> to vector<32x96xbf16>
    %16 = arith.truncf %3 : vector<8x32xf32> to vector<8x32xbf16>
    %cst = arith.constant dense<0.000000e+00> : vector<8x96xf32>
    %17 = tpu.matmul %16, %15, %cst {dimension_numbers = #tpu.dot_dimension_numbers<[1], [0], [0], [1], [0, 0, 1, 1], [], []>} : vector<8x32xbf16>, vector<32x96xbf16>, vector<8x96xf32> -> vector<8x96xf32>
    %c0_23 = arith.constant 0 : index
    %c0_24 = arith.constant 0 : index
    %c0_25 = arith.constant 0 : index
    %18 = vector.load %arg8[%c0_23, %c0_24, %c0_25] : memref<1x1x96xf32, #tpu.memory_space<vmem>>, vector<1x1x96xf32>
    %19 = vector.shape_cast %18 : vector<1x1x96xf32> to vector<1x96xf32>
    %20 = vector.broadcast %19 : vector<1x96xf32> to vector<8x96xf32>
    %21 = arith.addf %17, %20 : vector<8x96xf32>
    %22 = vector.extract_strided_slice %21 {offsets = [0, 0], sizes = [8, 32], strides = [1, 1]} : vector<8x96xf32> to vector<8x32xf32>
    %cst_26 = arith.constant 0.353553385 : f32
    %23 = vector.broadcast %cst_26 : f32 to vector<8x32xf32>
    %24 = arith.mulf %22, %23 : vector<8x32xf32>
    %25 = vector.extract_strided_slice %21 {offsets = [0, 32], sizes = [8, 32], strides = [1, 1]} : vector<8x96xf32> to vector<8x32xf32>
    %26 = vector.extract_strided_slice %21 {offsets = [0, 64], sizes = [8, 32], strides = [1, 1]} : vector<8x96xf32> to vector<8x32xf32>
    %c0_27 = arith.constant 0 : index
    %c0_28 = arith.constant 0 : index
    %c0_29 = arith.constant 0 : index
    %27 = vector.load %arg9[%c0_27, %c0_28, %c0_29] : memref<1x32x32xbf16, #tpu.memory_space<vmem>>, vector<1x32x32xbf16>
    %28 = vector.shape_cast %27 : vector<1x32x32xbf16> to vector<32x32xbf16>
    %c0_30 = arith.constant 0 : index
    %c0_31 = arith.constant 0 : index
    %c0_32 = arith.constant 0 : index
    %29 = vector.load %arg10[%c0_30, %c0_31, %c0_32] : memref<1x1x32xf32, #tpu.memory_space<vmem>>, vector<1x1x32xf32>
    %30 = vector.shape_cast %29 : vector<1x1x32xf32> to vector<1x32xf32>
    %31 = vector.extract_strided_slice %24 {offsets = [0, 0], sizes = [8, 8], strides = [1, 1]} : vector<8x32xf32> to vector<8x8xf32>
    %32 = vector.extract_strided_slice %25 {offsets = [0, 0], sizes = [8, 8], strides = [1, 1]} : vector<8x32xf32> to vector<8x8xf32>
    %33 = arith.truncf %31 : vector<8x8xf32> to vector<8x8xbf16>
    %34 = arith.truncf %32 : vector<8x8xf32> to vector<8x8xbf16>
    %cst_33 = arith.constant dense<0.000000e+00> : vector<8x8xf32>
    %35 = tpu.matmul %33, %34, %cst_33 {dimension_numbers = #tpu.dot_dimension_numbers<[1], [1], [0], [0], [0, 0, 1, 0], [], []>} : vector<8x8xbf16>, vector<8x8xbf16>, vector<8x8xf32> -> vector<8x8xf32>
    %36 = arith.addf %35, %8 : vector<8x8xf32>
    %cst_34 = arith.constant dense<0xFF800000> : vector<8xf32>
    %37 = vector.multi_reduction <maximumf>, %36, %cst_34 [1] : vector<8x8xf32> to vector<8xf32>
    %38 = vector.shape_cast %37 : vector<8xf32> to vector<8x1xf32>
    %39 = vector.broadcast %38 : vector<8x1xf32> to vector<8x8xf32>
    %40 = arith.subf %36, %39 : vector<8x8xf32>
    %41 = math.exp %40 : vector<8x8xf32>
    %cst_35 = arith.constant dense<0.000000e+00> : vector<8xf32>
    %42 = vector.multi_reduction <add>, %41, %cst_35 [1] : vector<8x8xf32> to vector<8xf32>
    %43 = vector.shape_cast %42 : vector<8xf32> to vector<8x1xf32>
    %44 = tpu.reciprocal %43 {approx = true} : vector<8x1xf32> -> vector<8x1xf32>
    %45 = vector.broadcast %44 : vector<8x1xf32> to vector<8x8xf32>
    %46 = arith.mulf %41, %45 : vector<8x8xf32>
    %47 = vector.extract_strided_slice %26 {offsets = [0, 0], sizes = [8, 8], strides = [1, 1]} : vector<8x32xf32> to vector<8x8xf32>
    %48 = arith.truncf %46 : vector<8x8xf32> to vector<8x8xbf16>
    %49 = arith.truncf %47 : vector<8x8xf32> to vector<8x8xbf16>
    %cst_36 = arith.constant dense<0.000000e+00> : vector<8x8xf32>
    %50 = tpu.matmul %48, %49, %cst_36 {dimension_numbers = #tpu.dot_dimension_numbers<[1], [0], [0], [1], [0, 0, 1, 1], [], []>} : vector<8x8xbf16>, vector<8x8xbf16>, vector<8x8xf32> -> vector<8x8xf32>
    %c0_37 = arith.constant 0 : index
    %c0_38 = arith.constant 0 : index
    %51 = vector.load %arg33[%c0_37, %c0_38] : memref<8x32xf32, #tpu.memory_space<vmem>>, vector<8x8xf32>
    tpu.vector_store %arg33[%c0_37, %c0_38], %50 {strides = array<i32>} : memref<8x32xf32, #tpu.memory_space<vmem>>, vector<8x8xf32>,
    %52 = vector.extract_strided_slice %24 {offsets = [0, 8], sizes = [8, 8], strides = [1, 1]} : vector<8x32xf32> to vector<8x8xf32>
    %53 = vector.extract_strided_slice %25 {offsets = [0, 8], sizes = [8, 8], strides = [1, 1]} : vector<8x32xf32> to vector<8x8xf32>
    %54 = arith.truncf %52 : vector<8x8xf32> to vector<8x8xbf16>
    %55 = arith.truncf %53 : vector<8x8xf32> to vector<8x8xbf16>
    %cst_39 = arith.constant dense<0.000000e+00> : vector<8x8xf32>
    %56 = tpu.matmul %54, %55, %cst_39 {dimension_numbers = #tpu.dot_dimension_numbers<[1], [1], [0], [0], [0, 0, 1, 0], [], []>} : vector<8x8xbf16>, vector<8x8xbf16>, vector<8x8xf32> -> vector<8x8xf32>
    %57 = arith.addf %56, %8 : vector<8x8xf32>
    %cst_40 = arith.constant dense<0xFF800000> : vector<8xf32>
    %58 = vector.multi_reduction <maximumf>, %57, %cst_40 [1] : vector<8x8xf32> to vector<8xf32>
    %59 = vector.shape_cast %58 : vector<8xf32> to vector<8x1xf32>
    %60 = vector.broadcast %59 : vector<8x1xf32> to vector<8x8xf32>
    %61 = arith.subf %57, %60 : vector<8x8xf32>
    %62 = math.exp %61 : vector<8x8xf32>
    %cst_41 = arith.constant dense<0.000000e+00> : vector<8xf32>
    %63 = vector.multi_reduction <add>, %62, %cst_41 [1] : vector<8x8xf32> to vector<8xf32>
    %64 = vector.shape_cast %63 : vector<8xf32> to vector<8x1xf32>
    %65 = tpu.reciprocal %64 {approx = true} : vector<8x1xf32> -> vector<8x1xf32>
    %66 = vector.broadcast %65 : vector<8x1xf32> to vector<8x8xf32>
    %67 = arith.mulf %62, %66 : vector<8x8xf32>
    %68 = vector.extract_strided_slice %26 {offsets = [0, 8], sizes = [8, 8], strides = [1, 1]} : vector<8x32xf32> to vector<8x8xf32>
    %69 = arith.truncf %67 : vector<8x8xf32> to vector<8x8xbf16>
    %70 = arith.truncf %68 : vector<8x8xf32> to vector<8x8xbf16>
    %cst_42 = arith.constant dense<0.000000e+00> : vector<8x8xf32>
    %71 = tpu.matmul %69, %70, %cst_42 {dimension_numbers = #tpu.dot_dimension_numbers<[1], [0], [0], [1], [0, 0, 1, 1], [], []>} : vector<8x8xbf16>, vector<8x8xbf16>, vector<8x8xf32> -> vector<8x8xf32>
    %c0_43 = arith.constant 0 : index
    %c8 = arith.constant 8 : index
    %72 = vector.load %arg33[%c0_43, %c8] : memref<8x32xf32, #tpu.memory_space<vmem>>, vector<8x8xf32>
    tpu.vector_store %arg33[%c0_43, %c8], %71 {strides = array<i32>} : memref<8x32xf32, #tpu.memory_space<vmem>>, vector<8x8xf32>,
    %73 = vector.extract_strided_slice %24 {offsets = [0, 16], sizes = [8, 8], strides = [1, 1]} : vector<8x32xf32> to vector<8x8xf32>
    %74 = vector.extract_strided_slice %25 {offsets = [0, 16], sizes = [8, 8], strides = [1, 1]} : vector<8x32xf32> to vector<8x8xf32>
    %75 = arith.truncf %73 : vector<8x8xf32> to vector<8x8xbf16>
    %76 = arith.truncf %74 : vector<8x8xf32> to vector<8x8xbf16>
    %cst_44 = arith.constant dense<0.000000e+00> : vector<8x8xf32>
    %77 = tpu.matmul %75, %76, %cst_44 {dimension_numbers = #tpu.dot_dimension_numbers<[1], [1], [0], [0], [0, 0, 1, 0], [], []>} : vector<8x8xbf16>, vector<8x8xbf16>, vector<8x8xf32> -> vector<8x8xf32>
    %78 = arith.addf %77, %8 : vector<8x8xf32>
    %cst_45 = arith.constant dense<0xFF800000> : vector<8xf32>
    %79 = vector.multi_reduction <maximumf>, %78, %cst_45 [1] : vector<8x8xf32> to vector<8xf32>
    %80 = vector.shape_cast %79 : vector<8xf32> to vector<8x1xf32>
    %81 = vector.broadcast %80 : vector<8x1xf32> to vector<8x8xf32>
    %82 = arith.subf %78, %81 : vector<8x8xf32>
    %83 = math.exp %82 : vector<8x8xf32>
    %cst_46 = arith.constant dense<0.000000e+00> : vector<8xf32>
    %84 = vector.multi_reduction <add>, %83, %cst_46 [1] : vector<8x8xf32> to vector<8xf32>
    %85 = vector.shape_cast %84 : vector<8xf32> to vector<8x1xf32>
    %86 = tpu.reciprocal %85 {approx = true} : vector<8x1xf32> -> vector<8x1xf32>
    %87 = vector.broadcast %86 : vector<8x1xf32> to vector<8x8xf32>
    %88 = arith.mulf %83, %87 : vector<8x8xf32>
    %89 = vector.extract_strided_slice %26 {offsets = [0, 16], sizes = [8, 8], strides = [1, 1]} : vector<8x32xf32> to vector<8x8xf32>
    %90 = arith.truncf %88 : vector<8x8xf32> to vector<8x8xbf16>
    %91 = arith.truncf %89 : vector<8x8xf32> to vector<8x8xbf16>
    %cst_47 = arith.constant dense<0.000000e+00> : vector<8x8xf32>
    %92 = tpu.matmul %90, %91, %cst_47 {dimension_numbers = #tpu.dot_dimension_numbers<[1], [0], [0], [1], [0, 0, 1, 1], [], []>} : vector<8x8xbf16>, vector<8x8xbf16>, vector<8x8xf32> -> vector<8x8xf32>
    %c0_48 = arith.constant 0 : index
    %c16 = arith.constant 16 : index
    %93 = vector.load %arg33[%c0_48, %c16] : memref<8x32xf32, #tpu.memory_space<vmem>>, vector<8x8xf32>
    tpu.vector_store %arg33[%c0_48, %c16], %92 {strides = array<i32>} : memref<8x32xf32, #tpu.memory_space<vmem>>, vector<8x8xf32>,
    %94 = vector.extract_strided_slice %24 {offsets = [0, 24], sizes = [8, 8], strides = [1, 1]} : vector<8x32xf32> to vector<8x8xf32>
    %95 = vector.extract_strided_slice %25 {offsets = [0, 24], sizes = [8, 8], strides = [1, 1]} : vector<8x32xf32> to vector<8x8xf32>
    %96 = arith.truncf %94 : vector<8x8xf32> to vector<8x8xbf16>
    %97 = arith.truncf %95 : vector<8x8xf32> to vector<8x8xbf16>
    %cst_49 = arith.constant dense<0.000000e+00> : vector<8x8xf32>
    %98 = tpu.matmul %96, %97, %cst_49 {dimension_numbers = #tpu.dot_dimension_numbers<[1], [1], [0], [0], [0, 0, 1, 0], [], []>} : vector<8x8xbf16>, vector<8x8xbf16>, vector<8x8xf32> -> vector<8x8xf32>
    %99 = arith.addf %98, %8 : vector<8x8xf32>
    %cst_50 = arith.constant dense<0xFF800000> : vector<8xf32>
    %100 = vector.multi_reduction <maximumf>, %99, %cst_50 [1] : vector<8x8xf32> to vector<8xf32>
    %101 = vector.shape_cast %100 : vector<8xf32> to vector<8x1xf32>
    %102 = vector.broadcast %101 : vector<8x1xf32> to vector<8x8xf32>
    %103 = arith.subf %99, %102 : vector<8x8xf32>
    %104 = math.exp %103 : vector<8x8xf32>
    %cst_51 = arith.constant dense<0.000000e+00> : vector<8xf32>
    %105 = vector.multi_reduction <add>, %104, %cst_51 [1] : vector<8x8xf32> to vector<8xf32>
    %106 = vector.shape_cast %105 : vector<8xf32> to vector<8x1xf32>
    %107 = tpu.reciprocal %106 {approx = true} : vector<8x1xf32> -> vector<8x1xf32>
    %108 = vector.broadcast %107 : vector<8x1xf32> to vector<8x8xf32>
    %109 = arith.mulf %104, %108 : vector<8x8xf32>
    %110 = vector.extract_strided_slice %26 {offsets = [0, 24], sizes = [8, 8], strides = [1, 1]} : vector<8x32xf32> to vector<8x8xf32>
    %111 = arith.truncf %109 : vector<8x8xf32> to vector<8x8xbf16>
    %112 = arith.truncf %110 : vector<8x8xf32> to vector<8x8xbf16>
    %cst_52 = arith.constant dense<0.000000e+00> : vector<8x8xf32>
    %113 = tpu.matmul %111, %112, %cst_52 {dimension_numbers = #tpu.dot_dimension_numbers<[1], [0], [0], [1], [0, 0, 1, 1], [], []>} : vector<8x8xbf16>, vector<8x8xbf16>, vector<8x8xf32> -> vector<8x8xf32>
    %c0_53 = arith.constant 0 : index
    %c24 = arith.constant 24 : index
    %114 = vector.load %arg33[%c0_53, %c24] : memref<8x32xf32, #tpu.memory_space<vmem>>, vector<8x8xf32>
    tpu.vector_store %arg33[%c0_53, %c24], %113 {strides = array<i32>} : memref<8x32xf32, #tpu.memory_space<vmem>>, vector<8x8xf32>,
    %c0_54 = arith.constant 0 : index
    %c0_55 = arith.constant 0 : index
    %115 = vector.load %arg33[%c0_54, %c0_55] : memref<8x32xf32, #tpu.memory_space<vmem>>, vector<8x32xf32>
    %116 = arith.truncf %115 : vector<8x32xf32> to vector<8x32xbf16>
    %cst_56 = arith.constant dense<0.000000e+00> : vector<8x32xf32>
    %117 = tpu.matmul %116, %28, %cst_56 {dimension_numbers = #tpu.dot_dimension_numbers<[1], [0], [0], [1], [0, 0, 1, 1], [], []>} : vector<8x32xbf16>, vector<32x32xbf16>, vector<8x32xf32> -> vector<8x32xf32>
    %118 = vector.broadcast %30 : vector<1x32xf32> to vector<8x32xf32>
    %119 = arith.addf %117, %118 : vector<8x32xf32>
    %120 = arith.addf %3, %119 : vector<8x32xf32>
    %121 = vector.extract_strided_slice %11 {offsets = [0, 0, 0], sizes = [1, 1, 32], strides = [1, 1, 1]} : vector<4x1x32xf32> to vector<1x1x32xf32>
    %122 = vector.shape_cast %121 : vector<1x1x32xf32> to vector<1x32xf32>
    %123 = vector.extract_strided_slice %13 {offsets = [0, 0, 0], sizes = [1, 1, 32], strides = [1, 1, 1]} : vector<4x1x32xf32> to vector<1x1x32xf32>
    %124 = vector.shape_cast %123 : vector<1x1x32xf32> to vector<1x32xf32>
    %cst_57 = arith.constant dense<0.000000e+00> : vector<8xf32>
    %125 = vector.multi_reduction <add>, %120, %cst_57 [1] : vector<8x32xf32> to vector<8xf32>
    %126 = vector.shape_cast %125 : vector<8xf32> to vector<8x1xf32>
    %cst_58 = arith.constant 3.200000e+01 : f32
    %127 = vector.broadcast %cst_58 : f32 to vector<8x1xf32>
    %128 = arith.divf %126, %127 : vector<8x1xf32>
    %129 = vector.broadcast %128 : vector<8x1xf32> to vector<8x32xf32>
    %130 = arith.subf %120, %129 : vector<8x32xf32>
    %131 = arith.mulf %130, %130 : vector<8x32xf32>
    %cst_59 = arith.constant dense<0.000000e+00> : vector<8xf32>
    %132 = vector.multi_reduction <add>, %131, %cst_59 [1] : vector<8x32xf32> to vector<8xf32>
    %133 = vector.shape_cast %132 : vector<8xf32> to vector<8x1xf32>
    %cst_60 = arith.constant 3.200000e+01 : f32
    %134 = vector.broadcast %cst_60 : f32 to vector<8x1xf32>
    %135 = arith.divf %133, %134 : vector<8x1xf32>
    %136 = vector.broadcast %128 : vector<8x1xf32> to vector<8x32xf32>
    %137 = arith.subf %120, %136 : vector<8x32xf32>
    %cst_61 = arith.constant 9.99999974E-6 : f32
    %138 = vector.broadcast %cst_61 : f32 to vector<8x1xf32>
    %139 = arith.addf %135, %138 : vector<8x1xf32>
    %140 = math.rsqrt %139 : vector<8x1xf32>
    %141 = vector.broadcast %140 : vector<8x1xf32> to vector<8x32xf32>
    %142 = arith.mulf %137, %141 : vector<8x32xf32>
    %143 = vector.broadcast %122 : vector<1x32xf32> to vector<8x32xf32>
    %144 = arith.mulf %142, %143 : vector<8x32xf32>
    %145 = vector.broadcast %124 : vector<1x32xf32> to vector<8x32xf32>
    %146 = arith.addf %144, %145 : vector<8x32xf32>
    %c0_62 = arith.constant 0 : index
    %c0_63 = arith.constant 0 : index
    %c0_64 = arith.constant 0 : index
    %147 = vector.load %arg11[%c0_62, %c0_63, %c0_64] : memref<1x32x32xbf16, #tpu.memory_space<vmem>>, vector<1x32x32xbf16>
    %148 = vector.shape_cast %147 : vector<1x32x32xbf16> to vector<32x32xbf16>
    %149 = arith.truncf %146 : vector<8x32xf32> to vector<8x32xbf16>
    %cst_65 = arith.constant dense<0.000000e+00> : vector<8x32xf32>
    %150 = tpu.matmul %149, %148, %cst_65 {dimension_numbers = #tpu.dot_dimension_numbers<[1], [0], [0], [1], [0, 0, 1, 1], [], []>} : vector<8x32xbf16>, vector<32x32xbf16>, vector<8x32xf32> -> vector<8x32xf32>
    %c0_66 = arith.constant 0 : index
    %c0_67 = arith.constant 0 : index
    %c0_68 = arith.constant 0 : index
    %151 = vector.load %arg12[%c0_66, %c0_67, %c0_68] : memref<1x1x32xf32, #tpu.memory_space<vmem>>, vector<1x1x32xf32>
    %152 = vector.shape_cast %151 : vector<1x1x32xf32> to vector<1x32xf32>
    %153 = vector.broadcast %152 : vector<1x32xf32> to vector<8x32xf32>
    %154 = arith.addf %150, %153 : vector<8x32xf32>
    %cst_69 = arith.constant 0.353553385 : f32
    %155 = vector.broadcast %cst_69 : f32 to vector<8x32xf32>
    %156 = arith.mulf %154, %155 : vector<8x32xf32>
    %c0_70 = arith.constant 0 : index
    %c0_71 = arith.constant 0 : index
    %c0_72 = arith.constant 0 : index
    %157 = vector.load %arg13[%c0_70, %c0_71, %c0_72] : memref<1x32x64xbf16, #tpu.memory_space<vmem>>, vector<1x32x64xbf16>
    %158 = vector.shape_cast %157 : vector<1x32x64xbf16> to vector<32x64xbf16>
    %159 = arith.truncf %5 : vector<16x32xf32> to vector<16x32xbf16>
    %cst_73 = arith.constant dense<0.000000e+00> : vector<16x64xf32>
    %160 = tpu.matmul %159, %158, %cst_73 {dimension_numbers = #tpu.dot_dimension_numbers<[1], [0], [0], [1], [0, 0, 1, 1], [], []>} : vector<16x32xbf16>, vector<32x64xbf16>, vector<16x64xf32> -> vector<16x64xf32>
    %c0_74 = arith.constant 0 : index
    %c0_75 = arith.constant 0 : index
    %c0_76 = arith.constant 0 : index
    %161 = vector.load %arg14[%c0_74, %c0_75, %c0_76] : memref<1x1x64xf32, #tpu.memory_space<vmem>>, vector<1x1x64xf32>
    %162 = vector.shape_cast %161 : vector<1x1x64xf32> to vector<1x64xf32>
    %163 = vector.broadcast %162 : vector<1x64xf32> to vector<16x64xf32>
    %164 = arith.addf %160, %163 : vector<16x64xf32>
    %165 = vector.extract_strided_slice %164 {offsets = [0, 0], sizes = [16, 32], strides = [1, 1]} : vector<16x64xf32> to vector<16x32xf32>
    %166 = vector.extract_strided_slice %164 {offsets = [0, 32], sizes = [16, 32], strides = [1, 1]} : vector<16x64xf32> to vector<16x32xf32>
    %c0_77 = arith.constant 0 : index
    %c0_78 = arith.constant 0 : index
    %c0_79 = arith.constant 0 : index
    %167 = vector.load %arg15[%c0_77, %c0_78, %c0_79] : memref<1x32x32xbf16, #tpu.memory_space<vmem>>, vector<1x32x32xbf16>
    %168 = vector.shape_cast %167 : vector<1x32x32xbf16> to vector<32x32xbf16>
    %c0_80 = arith.constant 0 : index
    %c0_81 = arith.constant 0 : index
    %c0_82 = arith.constant 0 : index
    %169 = vector.load %arg16[%c0_80, %c0_81, %c0_82] : memref<1x1x32xf32, #tpu.memory_space<vmem>>, vector<1x1x32xf32>
    %170 = vector.shape_cast %169 : vector<1x1x32xf32> to vector<1x32xf32>
    %171 = vector.extract_strided_slice %156 {offsets = [0, 0], sizes = [8, 8], strides = [1, 1]} : vector<8x32xf32> to vector<8x8xf32>
    %172 = vector.extract_strided_slice %165 {offsets = [0, 0], sizes = [16, 8], strides = [1, 1]} : vector<16x32xf32> to vector<16x8xf32>
    %173 = arith.truncf %171 : vector<8x8xf32> to vector<8x8xbf16>
    %174 = arith.truncf %172 : vector<16x8xf32> to vector<16x8xbf16>
    %cst_83 = arith.constant dense<0.000000e+00> : vector<8x16xf32>
    %175 = tpu.matmul %173, %174, %cst_83 {dimension_numbers = #tpu.dot_dimension_numbers<[1], [1], [0], [0], [0, 0, 1, 0], [], []>} : vector<8x8xbf16>, vector<16x8xbf16>, vector<8x16xf32> -> vector<8x16xf32>
    %176 = vector.broadcast %9 : vector<1x16xf32> to vector<8x16xf32>
    %177 = arith.addf %175, %176 : vector<8x16xf32>
    %cst_84 = arith.constant dense<0xFF800000> : vector<8xf32>
    %178 = vector.multi_reduction <maximumf>, %177, %cst_84 [1] : vector<8x16xf32> to vector<8xf32>
    %179 = vector.shape_cast %178 : vector<8xf32> to vector<8x1xf32>
    %180 = vector.broadcast %179 : vector<8x1xf32> to vector<8x16xf32>
    %181 = arith.subf %177, %180 : vector<8x16xf32>
    %182 = math.exp %181 : vector<8x16xf32>
    %cst_85 = arith.constant dense<0.000000e+00> : vector<8xf32>
    %183 = vector.multi_reduction <add>, %182, %cst_85 [1] : vector<8x16xf32> to vector<8xf32>
    %184 = vector.shape_cast %183 : vector<8xf32> to vector<8x1xf32>
    %185 = tpu.reciprocal %184 {approx = true} : vector<8x1xf32> -> vector<8x1xf32>
    %186 = vector.broadcast %185 : vector<8x1xf32> to vector<8x16xf32>
    %187 = arith.mulf %182, %186 : vector<8x16xf32>
    %188 = vector.extract_strided_slice %166 {offsets = [0, 0], sizes = [16, 8], strides = [1, 1]} : vector<16x32xf32> to vector<16x8xf32>
    %189 = arith.truncf %187 : vector<8x16xf32> to vector<8x16xbf16>
    %190 = arith.truncf %188 : vector<16x8xf32> to vector<16x8xbf16>
    %cst_86 = arith.constant dense<0.000000e+00> : vector<8x8xf32>
    %191 = tpu.matmul %189, %190, %cst_86 {dimension_numbers = #tpu.dot_dimension_numbers<[1], [0], [0], [1], [0, 0, 1, 1], [], []>} : vector<8x16xbf16>, vector<16x8xbf16>, vector<8x8xf32> -> vector<8x8xf32>
    %c0_87 = arith.constant 0 : index
    %c0_88 = arith.constant 0 : index
    %192 = vector.load %arg33[%c0_87, %c0_88] : memref<8x32xf32, #tpu.memory_space<vmem>>, vector<8x8xf32>
    tpu.vector_store %arg33[%c0_87, %c0_88], %191 {strides = array<i32>} : memref<8x32xf32, #tpu.memory_space<vmem>>, vector<8x8xf32>,
    %193 = vector.extract_strided_slice %156 {offsets = [0, 8], sizes = [8, 8], strides = [1, 1]} : vector<8x32xf32> to vector<8x8xf32>
    %194 = vector.extract_strided_slice %165 {offsets = [0, 8], sizes = [16, 8], strides = [1, 1]} : vector<16x32xf32> to vector<16x8xf32>
    %195 = arith.truncf %193 : vector<8x8xf32> to vector<8x8xbf16>
    %196 = arith.truncf %194 : vector<16x8xf32> to vector<16x8xbf16>
    %cst_89 = arith.constant dense<0.000000e+00> : vector<8x16xf32>
    %197 = tpu.matmul %195, %196, %cst_89 {dimension_numbers = #tpu.dot_dimension_numbers<[1], [1], [0], [0], [0, 0, 1, 0], [], []>} : vector<8x8xbf16>, vector<16x8xbf16>, vector<8x16xf32> -> vector<8x16xf32>
    %198 = vector.broadcast %9 : vector<1x16xf32> to vector<8x16xf32>
    %199 = arith.addf %197, %198 : vector<8x16xf32>
    %cst_90 = arith.constant dense<0xFF800000> : vector<8xf32>
    %200 = vector.multi_reduction <maximumf>, %199, %cst_90 [1] : vector<8x16xf32> to vector<8xf32>
    %201 = vector.shape_cast %200 : vector<8xf32> to vector<8x1xf32>
    %202 = vector.broadcast %201 : vector<8x1xf32> to vector<8x16xf32>
    %203 = arith.subf %199, %202 : vector<8x16xf32>
    %204 = math.exp %203 : vector<8x16xf32>
    %cst_91 = arith.constant dense<0.000000e+00> : vector<8xf32>
    %205 = vector.multi_reduction <add>, %204, %cst_91 [1] : vector<8x16xf32> to vector<8xf32>
    %206 = vector.shape_cast %205 : vector<8xf32> to vector<8x1xf32>
    %207 = tpu.reciprocal %206 {approx = true} : vector<8x1xf32> -> vector<8x1xf32>
    %208 = vector.broadcast %207 : vector<8x1xf32> to vector<8x16xf32>
    %209 = arith.mulf %204, %208 : vector<8x16xf32>
    %210 = vector.extract_strided_slice %166 {offsets = [0, 8], sizes = [16, 8], strides = [1, 1]} : vector<16x32xf32> to vector<16x8xf32>
    %211 = arith.truncf %209 : vector<8x16xf32> to vector<8x16xbf16>
    %212 = arith.truncf %210 : vector<16x8xf32> to vector<16x8xbf16>
    %cst_92 = arith.constant dense<0.000000e+00> : vector<8x8xf32>
    %213 = tpu.matmul %211, %212, %cst_92 {dimension_numbers = #tpu.dot_dimension_numbers<[1], [0], [0], [1], [0, 0, 1, 1], [], []>} : vector<8x16xbf16>, vector<16x8xbf16>, vector<8x8xf32> -> vector<8x8xf32>
    %c0_93 = arith.constant 0 : index
    %c8_94 = arith.constant 8 : index
    %214 = vector.load %arg33[%c0_93, %c8_94] : memref<8x32xf32, #tpu.memory_space<vmem>>, vector<8x8xf32>
    tpu.vector_store %arg33[%c0_93, %c8_94], %213 {strides = array<i32>} : memref<8x32xf32, #tpu.memory_space<vmem>>, vector<8x8xf32>,
    %215 = vector.extract_strided_slice %156 {offsets = [0, 16], sizes = [8, 8], strides = [1, 1]} : vector<8x32xf32> to vector<8x8xf32>
    %216 = vector.extract_strided_slice %165 {offsets = [0, 16], sizes = [16, 8], strides = [1, 1]} : vector<16x32xf32> to vector<16x8xf32>
    %217 = arith.truncf %215 : vector<8x8xf32> to vector<8x8xbf16>
    %218 = arith.truncf %216 : vector<16x8xf32> to vector<16x8xbf16>
    %cst_95 = arith.constant dense<0.000000e+00> : vector<8x16xf32>
    %219 = tpu.matmul %217, %218, %cst_95 {dimension_numbers = #tpu.dot_dimension_numbers<[1], [1], [0], [0], [0, 0, 1, 0], [], []>} : vector<8x8xbf16>, vector<16x8xbf16>, vector<8x16xf32> -> vector<8x16xf32>
    %220 = vector.broadcast %9 : vector<1x16xf32> to vector<8x16xf32>
    %221 = arith.addf %219, %220 : vector<8x16xf32>
    %cst_96 = arith.constant dense<0xFF800000> : vector<8xf32>
    %222 = vector.multi_reduction <maximumf>, %221, %cst_96 [1] : vector<8x16xf32> to vector<8xf32>
    %223 = vector.shape_cast %222 : vector<8xf32> to vector<8x1xf32>
    %224 = vector.broadcast %223 : vector<8x1xf32> to vector<8x16xf32>
    %225 = arith.subf %221, %224 : vector<8x16xf32>
    %226 = math.exp %225 : vector<8x16xf32>
    %cst_97 = arith.constant dense<0.000000e+00> : vector<8xf32>
    %227 = vector.multi_reduction <add>, %226, %cst_97 [1] : vector<8x16xf32> to vector<8xf32>
    %228 = vector.shape_cast %227 : vector<8xf32> to vector<8x1xf32>
    %229 = tpu.reciprocal %228 {approx = true} : vector<8x1xf32> -> vector<8x1xf32>
    %230 = vector.broadcast %229 : vector<8x1xf32> to vector<8x16xf32>
    %231 = arith.mulf %226, %230 : vector<8x16xf32>
    %232 = vector.extract_strided_slice %166 {offsets = [0, 16], sizes = [16, 8], strides = [1, 1]} : vector<16x32xf32> to vector<16x8xf32>
    %233 = arith.truncf %231 : vector<8x16xf32> to vector<8x16xbf16>
    %234 = arith.truncf %232 : vector<16x8xf32> to vector<16x8xbf16>
    %cst_98 = arith.constant dense<0.000000e+00> : vector<8x8xf32>
    %235 = tpu.matmul %233, %234, %cst_98 {dimension_numbers = #tpu.dot_dimension_numbers<[1], [0], [0], [1], [0, 0, 1, 1], [], []>} : vector<8x16xbf16>, vector<16x8xbf16>, vector<8x8xf32> -> vector<8x8xf32>
    %c0_99 = arith.constant 0 : index
    %c16_100 = arith.constant 16 : index
    %236 = vector.load %arg33[%c0_99, %c16_100] : memref<8x32xf32, #tpu.memory_space<vmem>>, vector<8x8xf32>
    tpu.vector_store %arg33[%c0_99, %c16_100], %235 {strides = array<i32>} : memref<8x32xf32, #tpu.memory_space<vmem>>, vector<8x8xf32>,
    %237 = vector.extract_strided_slice %156 {offsets = [0, 24], sizes = [8, 8], strides = [1, 1]} : vector<8x32xf32> to vector<8x8xf32>
    %238 = vector.extract_strided_slice %165 {offsets = [0, 24], sizes = [16, 8], strides = [1, 1]} : vector<16x32xf32> to vector<16x8xf32>
    %239 = arith.truncf %237 : vector<8x8xf32> to vector<8x8xbf16>
    %240 = arith.truncf %238 : vector<16x8xf32> to vector<16x8xbf16>
    %cst_101 = arith.constant dense<0.000000e+00> : vector<8x16xf32>
    %241 = tpu.matmul %239, %240, %cst_101 {dimension_numbers = #tpu.dot_dimension_numbers<[1], [1], [0], [0], [0, 0, 1, 0], [], []>} : vector<8x8xbf16>, vector<16x8xbf16>, vector<8x16xf32> -> vector<8x16xf32>
    %242 = vector.broadcast %9 : vector<1x16xf32> to vector<8x16xf32>
    %243 = arith.addf %241, %242 : vector<8x16xf32>
    %cst_102 = arith.constant dense<0xFF800000> : vector<8xf32>
    %244 = vector.multi_reduction <maximumf>, %243, %cst_102 [1] : vector<8x16xf32> to vector<8xf32>
    %245 = vector.shape_cast %244 : vector<8xf32> to vector<8x1xf32>
    %246 = vector.broadcast %245 : vector<8x1xf32> to vector<8x16xf32>
    %247 = arith.subf %243, %246 : vector<8x16xf32>
    %248 = math.exp %247 : vector<8x16xf32>
    %cst_103 = arith.constant dense<0.000000e+00> : vector<8xf32>
    %249 = vector.multi_reduction <add>, %248, %cst_103 [1] : vector<8x16xf32> to vector<8xf32>
    %250 = vector.shape_cast %249 : vector<8xf32> to vector<8x1xf32>
    %251 = tpu.reciprocal %250 {approx = true} : vector<8x1xf32> -> vector<8x1xf32>
    %252 = vector.broadcast %251 : vector<8x1xf32> to vector<8x16xf32>
    %253 = arith.mulf %248, %252 : vector<8x16xf32>
    %254 = vector.extract_strided_slice %166 {offsets = [0, 24], sizes = [16, 8], strides = [1, 1]} : vector<16x32xf32> to vector<16x8xf32>
    %255 = arith.truncf %253 : vector<8x16xf32> to vector<8x16xbf16>
    %256 = arith.truncf %254 : vector<16x8xf32> to vector<16x8xbf16>
    %cst_104 = arith.constant dense<0.000000e+00> : vector<8x8xf32>
    %257 = tpu.matmul %255, %256, %cst_104 {dimension_numbers = #tpu.dot_dimension_numbers<[1], [0], [0], [1], [0, 0, 1, 1], [], []>} : vector<8x16xbf16>, vector<16x8xbf16>, vector<8x8xf32> -> vector<8x8xf32>
    %c0_105 = arith.constant 0 : index
    %c24_106 = arith.constant 24 : index
    %258 = vector.load %arg33[%c0_105, %c24_106] : memref<8x32xf32, #tpu.memory_space<vmem>>, vector<8x8xf32>
    tpu.vector_store %arg33[%c0_105, %c24_106], %257 {strides = array<i32>} : memref<8x32xf32, #tpu.memory_space<vmem>>, vector<8x8xf32>,
    %c0_107 = arith.constant 0 : index
    %c0_108 = arith.constant 0 : index
    %259 = vector.load %arg33[%c0_107, %c0_108] : memref<8x32xf32, #tpu.memory_space<vmem>>, vector<8x32xf32>
    %260 = arith.truncf %259 : vector<8x32xf32> to vector<8x32xbf16>
    %cst_109 = arith.constant dense<0.000000e+00> : vector<8x32xf32>
    %261 = tpu.matmul %260, %168, %cst_109 {dimension_numbers = #tpu.dot_dimension_numbers<[1], [0], [0], [1], [0, 0, 1, 1], [], []>} : vector<8x32xbf16>, vector<32x32xbf16>, vector<8x32xf32> -> vector<8x32xf32>
    %262 = vector.broadcast %170 : vector<1x32xf32> to vector<8x32xf32>
    %263 = arith.addf %261, %262 : vector<8x32xf32>
    %264 = arith.addf %146, %263 : vector<8x32xf32>
    %265 = vector.extract_strided_slice %11 {offsets = [1, 0, 0], sizes = [1, 1, 32], strides = [1, 1, 1]} : vector<4x1x32xf32> to vector<1x1x32xf32>
    %266 = vector.shape_cast %265 : vector<1x1x32xf32> to vector<1x32xf32>
    %267 = vector.extract_strided_slice %13 {offsets = [1, 0, 0], sizes = [1, 1, 32], strides = [1, 1, 1]} : vector<4x1x32xf32> to vector<1x1x32xf32>
    %268 = vector.shape_cast %267 : vector<1x1x32xf32> to vector<1x32xf32>
    %cst_110 = arith.constant dense<0.000000e+00> : vector<8xf32>
    %269 = vector.multi_reduction <add>, %264, %cst_110 [1] : vector<8x32xf32> to vector<8xf32>
    %270 = vector.shape_cast %269 : vector<8xf32> to vector<8x1xf32>
    %cst_111 = arith.constant 3.200000e+01 : f32
    %271 = vector.broadcast %cst_111 : f32 to vector<8x1xf32>
    %272 = arith.divf %270, %271 : vector<8x1xf32>
    %273 = vector.broadcast %272 : vector<8x1xf32> to vector<8x32xf32>
    %274 = arith.subf %264, %273 : vector<8x32xf32>
    %275 = arith.mulf %274, %274 : vector<8x32xf32>
    %cst_112 = arith.constant dense<0.000000e+00> : vector<8xf32>
    %276 = vector.multi_reduction <add>, %275, %cst_112 [1] : vector<8x32xf32> to vector<8xf32>
    %277 = vector.shape_cast %276 : vector<8xf32> to vector<8x1xf32>
    %cst_113 = arith.constant 3.200000e+01 : f32
    %278 = vector.broadcast %cst_113 : f32 to vector<8x1xf32>
    %279 = arith.divf %277, %278 : vector<8x1xf32>
    %280 = vector.broadcast %272 : vector<8x1xf32> to vector<8x32xf32>
    %281 = arith.subf %264, %280 : vector<8x32xf32>
    %cst_114 = arith.constant 9.99999974E-6 : f32
    %282 = vector.broadcast %cst_114 : f32 to vector<8x1xf32>
    %283 = arith.addf %279, %282 : vector<8x1xf32>
    %284 = math.rsqrt %283 : vector<8x1xf32>
    %285 = vector.broadcast %284 : vector<8x1xf32> to vector<8x32xf32>
    %286 = arith.mulf %281, %285 : vector<8x32xf32>
    %287 = vector.broadcast %266 : vector<1x32xf32> to vector<8x32xf32>
    %288 = arith.mulf %286, %287 : vector<8x32xf32>
    %289 = vector.broadcast %268 : vector<1x32xf32> to vector<8x32xf32>
    %290 = arith.addf %288, %289 : vector<8x32xf32>
    %c0_115 = arith.constant 0 : index
    %c0_116 = arith.constant 0 : index
    %c0_117 = arith.constant 0 : index
    %291 = vector.load %arg17[%c0_115, %c0_116, %c0_117] : memref<1x32x32xbf16, #tpu.memory_space<vmem>>, vector<1x32x32xbf16>
    %292 = vector.shape_cast %291 : vector<1x32x32xbf16> to vector<32x32xbf16>
    %293 = arith.truncf %290 : vector<8x32xf32> to vector<8x32xbf16>
    %cst_118 = arith.constant dense<0.000000e+00> : vector<8x32xf32>
    %294 = tpu.matmul %293, %292, %cst_118 {dimension_numbers = #tpu.dot_dimension_numbers<[1], [0], [0], [1], [0, 0, 1, 1], [], []>} : vector<8x32xbf16>, vector<32x32xbf16>, vector<8x32xf32> -> vector<8x32xf32>
    %c0_119 = arith.constant 0 : index
    %c0_120 = arith.constant 0 : index
    %c0_121 = arith.constant 0 : index
    %295 = vector.load %arg18[%c0_119, %c0_120, %c0_121] : memref<1x1x32xf32, #tpu.memory_space<vmem>>, vector<1x1x32xf32>
    %296 = vector.shape_cast %295 : vector<1x1x32xf32> to vector<1x32xf32>
    %297 = vector.broadcast %296 : vector<1x32xf32> to vector<8x32xf32>
    %298 = arith.addf %294, %297 : vector<8x32xf32>
    %cst_122 = arith.constant 0.353553385 : f32
    %299 = vector.broadcast %cst_122 : f32 to vector<8x32xf32>
    %300 = arith.mulf %298, %299 : vector<8x32xf32>
    %c0_123 = arith.constant 0 : index
    %c0_124 = arith.constant 0 : index
    %c0_125 = arith.constant 0 : index
    %301 = vector.load %arg19[%c0_123, %c0_124, %c0_125] : memref<1x32x64xbf16, #tpu.memory_space<vmem>>, vector<1x32x64xbf16>
    %302 = vector.shape_cast %301 : vector<1x32x64xbf16> to vector<32x64xbf16>
    %303 = arith.truncf %7 : vector<16x32xf32> to vector<16x32xbf16>
    %cst_126 = arith.constant dense<0.000000e+00> : vector<16x64xf32>
    %304 = tpu.matmul %303, %302, %cst_126 {dimension_numbers = #tpu.dot_dimension_numbers<[1], [0], [0], [1], [0, 0, 1, 1], [], []>} : vector<16x32xbf16>, vector<32x64xbf16>, vector<16x64xf32> -> vector<16x64xf32>
    %c0_127 = arith.constant 0 : index
    %c0_128 = arith.constant 0 : index
    %c0_129 = arith.constant 0 : index
    %305 = vector.load %arg20[%c0_127, %c0_128, %c0_129] : memref<1x1x64xf32, #tpu.memory_space<vmem>>, vector<1x1x64xf32>
    %306 = vector.shape_cast %305 : vector<1x1x64xf32> to vector<1x64xf32>
    %307 = vector.broadcast %306 : vector<1x64xf32> to vector<16x64xf32>
    %308 = arith.addf %304, %307 : vector<16x64xf32>
    %309 = vector.extract_strided_slice %308 {offsets = [0, 0], sizes = [16, 32], strides = [1, 1]} : vector<16x64xf32> to vector<16x32xf32>
    %310 = vector.extract_strided_slice %308 {offsets = [0, 32], sizes = [16, 32], strides = [1, 1]} : vector<16x64xf32> to vector<16x32xf32>
    %c0_130 = arith.constant 0 : index
    %c0_131 = arith.constant 0 : index
    %c0_132 = arith.constant 0 : index
    %311 = vector.load %arg21[%c0_130, %c0_131, %c0_132] : memref<1x32x32xbf16, #tpu.memory_space<vmem>>, vector<1x32x32xbf16>
    %312 = vector.shape_cast %311 : vector<1x32x32xbf16> to vector<32x32xbf16>
    %c0_133 = arith.constant 0 : index
    %c0_134 = arith.constant 0 : index
    %c0_135 = arith.constant 0 : index
    %313 = vector.load %arg22[%c0_133, %c0_134, %c0_135] : memref<1x1x32xf32, #tpu.memory_space<vmem>>, vector<1x1x32xf32>
    %314 = vector.shape_cast %313 : vector<1x1x32xf32> to vector<1x32xf32>
    %315 = vector.extract_strided_slice %300 {offsets = [0, 0], sizes = [8, 8], strides = [1, 1]} : vector<8x32xf32> to vector<8x8xf32>
    %316 = vector.extract_strided_slice %309 {offsets = [0, 0], sizes = [16, 8], strides = [1, 1]} : vector<16x32xf32> to vector<16x8xf32>
    %317 = arith.truncf %315 : vector<8x8xf32> to vector<8x8xbf16>
    %318 = arith.truncf %316 : vector<16x8xf32> to vector<16x8xbf16>
    %cst_136 = arith.constant dense<0.000000e+00> : vector<8x16xf32>
    %319 = tpu.matmul %317, %318, %cst_136 {dimension_numbers = #tpu.dot_dimension_numbers<[1], [1], [0], [0], [0, 0, 1, 0], [], []>} : vector<8x8xbf16>, vector<16x8xbf16>, vector<8x16xf32> -> vector<8x16xf32>
    %cst_137 = arith.constant dense<0xFF800000> : vector<8xf32>
    %320 = vector.multi_reduction <maximumf>, %319, %cst_137 [1] : vector<8x16xf32> to vector<8xf32>
    %321 = vector.shape_cast %320 : vector<8xf32> to vector<8x1xf32>
    %322 = vector.broadcast %321 : vector<8x1xf32> to vector<8x16xf32>
    %323 = arith.subf %319, %322 : vector<8x16xf32>
    %324 = math.exp %323 : vector<8x16xf32>
    %cst_138 = arith.constant dense<0.000000e+00> : vector<8xf32>
    %325 = vector.multi_reduction <add>, %324, %cst_138 [1] : vector<8x16xf32> to vector<8xf32>
    %326 = vector.shape_cast %325 : vector<8xf32> to vector<8x1xf32>
    %327 = tpu.reciprocal %326 {approx = true} : vector<8x1xf32> -> vector<8x1xf32>
    %328 = vector.broadcast %327 : vector<8x1xf32> to vector<8x16xf32>
    %329 = arith.mulf %324, %328 : vector<8x16xf32>
    %330 = vector.extract_strided_slice %310 {offsets = [0, 0], sizes = [16, 8], strides = [1, 1]} : vector<16x32xf32> to vector<16x8xf32>
    %331 = arith.truncf %329 : vector<8x16xf32> to vector<8x16xbf16>
    %332 = arith.truncf %330 : vector<16x8xf32> to vector<16x8xbf16>
    %cst_139 = arith.constant dense<0.000000e+00> : vector<8x8xf32>
    %333 = tpu.matmul %331, %332, %cst_139 {dimension_numbers = #tpu.dot_dimension_numbers<[1], [0], [0], [1], [0, 0, 1, 1], [], []>} : vector<8x16xbf16>, vector<16x8xbf16>, vector<8x8xf32> -> vector<8x8xf32>
    %c0_140 = arith.constant 0 : index
    %c0_141 = arith.constant 0 : index
    %334 = vector.load %arg33[%c0_140, %c0_141] : memref<8x32xf32, #tpu.memory_space<vmem>>, vector<8x8xf32>
    tpu.vector_store %arg33[%c0_140, %c0_141], %333 {strides = array<i32>} : memref<8x32xf32, #tpu.memory_space<vmem>>, vector<8x8xf32>,
    %335 = vector.extract_strided_slice %300 {offsets = [0, 8], sizes = [8, 8], strides = [1, 1]} : vector<8x32xf32> to vector<8x8xf32>
    %336 = vector.extract_strided_slice %309 {offsets = [0, 8], sizes = [16, 8], strides = [1, 1]} : vector<16x32xf32> to vector<16x8xf32>
    %337 = arith.truncf %335 : vector<8x8xf32> to vector<8x8xbf16>
    %338 = arith.truncf %336 : vector<16x8xf32> to vector<16x8xbf16>
    %cst_142 = arith.constant dense<0.000000e+00> : vector<8x16xf32>
    %339 = tpu.matmul %337, %338, %cst_142 {dimension_numbers = #tpu.dot_dimension_numbers<[1], [1], [0], [0], [0, 0, 1, 0], [], []>} : vector<8x8xbf16>, vector<16x8xbf16>, vector<8x16xf32> -> vector<8x16xf32>
    %cst_143 = arith.constant dense<0xFF800000> : vector<8xf32>
    %340 = vector.multi_reduction <maximumf>, %339, %cst_143 [1] : vector<8x16xf32> to vector<8xf32>
    %341 = vector.shape_cast %340 : vector<8xf32> to vector<8x1xf32>
    %342 = vector.broadcast %341 : vector<8x1xf32> to vector<8x16xf32>
    %343 = arith.subf %339, %342 : vector<8x16xf32>
    %344 = math.exp %343 : vector<8x16xf32>
    %cst_144 = arith.constant dense<0.000000e+00> : vector<8xf32>
    %345 = vector.multi_reduction <add>, %344, %cst_144 [1] : vector<8x16xf32> to vector<8xf32>
    %346 = vector.shape_cast %345 : vector<8xf32> to vector<8x1xf32>
    %347 = tpu.reciprocal %346 {approx = true} : vector<8x1xf32> -> vector<8x1xf32>
    %348 = vector.broadcast %347 : vector<8x1xf32> to vector<8x16xf32>
    %349 = arith.mulf %344, %348 : vector<8x16xf32>
    %350 = vector.extract_strided_slice %310 {offsets = [0, 8], sizes = [16, 8], strides = [1, 1]} : vector<16x32xf32> to vector<16x8xf32>
    %351 = arith.truncf %349 : vector<8x16xf32> to vector<8x16xbf16>
    %352 = arith.truncf %350 : vector<16x8xf32> to vector<16x8xbf16>
    %cst_145 = arith.constant dense<0.000000e+00> : vector<8x8xf32>
    %353 = tpu.matmul %351, %352, %cst_145 {dimension_numbers = #tpu.dot_dimension_numbers<[1], [0], [0], [1], [0, 0, 1, 1], [], []>} : vector<8x16xbf16>, vector<16x8xbf16>, vector<8x8xf32> -> vector<8x8xf32>
    %c0_146 = arith.constant 0 : index
    %c8_147 = arith.constant 8 : index
    %354 = vector.load %arg33[%c0_146, %c8_147] : memref<8x32xf32, #tpu.memory_space<vmem>>, vector<8x8xf32>
    tpu.vector_store %arg33[%c0_146, %c8_147], %353 {strides = array<i32>} : memref<8x32xf32, #tpu.memory_space<vmem>>, vector<8x8xf32>,
    %355 = vector.extract_strided_slice %300 {offsets = [0, 16], sizes = [8, 8], strides = [1, 1]} : vector<8x32xf32> to vector<8x8xf32>
    %356 = vector.extract_strided_slice %309 {offsets = [0, 16], sizes = [16, 8], strides = [1, 1]} : vector<16x32xf32> to vector<16x8xf32>
    %357 = arith.truncf %355 : vector<8x8xf32> to vector<8x8xbf16>
    %358 = arith.truncf %356 : vector<16x8xf32> to vector<16x8xbf16>
    %cst_148 = arith.constant dense<0.000000e+00> : vector<8x16xf32>
    %359 = tpu.matmul %357, %358, %cst_148 {dimension_numbers = #tpu.dot_dimension_numbers<[1], [1], [0], [0], [0, 0, 1, 0], [], []>} : vector<8x8xbf16>, vector<16x8xbf16>, vector<8x16xf32> -> vector<8x16xf32>
    %cst_149 = arith.constant dense<0xFF800000> : vector<8xf32>
    %360 = vector.multi_reduction <maximumf>, %359, %cst_149 [1] : vector<8x16xf32> to vector<8xf32>
    %361 = vector.shape_cast %360 : vector<8xf32> to vector<8x1xf32>
    %362 = vector.broadcast %361 : vector<8x1xf32> to vector<8x16xf32>
    %363 = arith.subf %359, %362 : vector<8x16xf32>
    %364 = math.exp %363 : vector<8x16xf32>
    %cst_150 = arith.constant dense<0.000000e+00> : vector<8xf32>
    %365 = vector.multi_reduction <add>, %364, %cst_150 [1] : vector<8x16xf32> to vector<8xf32>
    %366 = vector.shape_cast %365 : vector<8xf32> to vector<8x1xf32>
    %367 = tpu.reciprocal %366 {approx = true} : vector<8x1xf32> -> vector<8x1xf32>
    %368 = vector.broadcast %367 : vector<8x1xf32> to vector<8x16xf32>
    %369 = arith.mulf %364, %368 : vector<8x16xf32>
    %370 = vector.extract_strided_slice %310 {offsets = [0, 16], sizes = [16, 8], strides = [1, 1]} : vector<16x32xf32> to vector<16x8xf32>
    %371 = arith.truncf %369 : vector<8x16xf32> to vector<8x16xbf16>
    %372 = arith.truncf %370 : vector<16x8xf32> to vector<16x8xbf16>
    %cst_151 = arith.constant dense<0.000000e+00> : vector<8x8xf32>
    %373 = tpu.matmul %371, %372, %cst_151 {dimension_numbers = #tpu.dot_dimension_numbers<[1], [0], [0], [1], [0, 0, 1, 1], [], []>} : vector<8x16xbf16>, vector<16x8xbf16>, vector<8x8xf32> -> vector<8x8xf32>
    %c0_152 = arith.constant 0 : index
    %c16_153 = arith.constant 16 : index
    %374 = vector.load %arg33[%c0_152, %c16_153] : memref<8x32xf32, #tpu.memory_space<vmem>>, vector<8x8xf32>
    tpu.vector_store %arg33[%c0_152, %c16_153], %373 {strides = array<i32>} : memref<8x32xf32, #tpu.memory_space<vmem>>, vector<8x8xf32>,
    %375 = vector.extract_strided_slice %300 {offsets = [0, 24], sizes = [8, 8], strides = [1, 1]} : vector<8x32xf32> to vector<8x8xf32>
    %376 = vector.extract_strided_slice %309 {offsets = [0, 24], sizes = [16, 8], strides = [1, 1]} : vector<16x32xf32> to vector<16x8xf32>
    %377 = arith.truncf %375 : vector<8x8xf32> to vector<8x8xbf16>
    %378 = arith.truncf %376 : vector<16x8xf32> to vector<16x8xbf16>
    %cst_154 = arith.constant dense<0.000000e+00> : vector<8x16xf32>
    %379 = tpu.matmul %377, %378, %cst_154 {dimension_numbers = #tpu.dot_dimension_numbers<[1], [1], [0], [0], [0, 0, 1, 0], [], []>} : vector<8x8xbf16>, vector<16x8xbf16>, vector<8x16xf32> -> vector<8x16xf32>
    %cst_155 = arith.constant dense<0xFF800000> : vector<8xf32>
    %380 = vector.multi_reduction <maximumf>, %379, %cst_155 [1] : vector<8x16xf32> to vector<8xf32>
    %381 = vector.shape_cast %380 : vector<8xf32> to vector<8x1xf32>
    %382 = vector.broadcast %381 : vector<8x1xf32> to vector<8x16xf32>
    %383 = arith.subf %379, %382 : vector<8x16xf32>
    %384 = math.exp %383 : vector<8x16xf32>
    %cst_156 = arith.constant dense<0.000000e+00> : vector<8xf32>
    %385 = vector.multi_reduction <add>, %384, %cst_156 [1] : vector<8x16xf32> to vector<8xf32>
    %386 = vector.shape_cast %385 : vector<8xf32> to vector<8x1xf32>
    %387 = tpu.reciprocal %386 {approx = true} : vector<8x1xf32> -> vector<8x1xf32>
    %388 = vector.broadcast %387 : vector<8x1xf32> to vector<8x16xf32>
    %389 = arith.mulf %384, %388 : vector<8x16xf32>
    %390 = vector.extract_strided_slice %310 {offsets = [0, 24], sizes = [16, 8], strides = [1, 1]} : vector<16x32xf32> to vector<16x8xf32>
    %391 = arith.truncf %389 : vector<8x16xf32> to vector<8x16xbf16>
    %392 = arith.truncf %390 : vector<16x8xf32> to vector<16x8xbf16>
    %cst_157 = arith.constant dense<0.000000e+00> : vector<8x8xf32>
    %393 = tpu.matmul %391, %392, %cst_157 {dimension_numbers = #tpu.dot_dimension_numbers<[1], [0], [0], [1], [0, 0, 1, 1], [], []>} : vector<8x16xbf16>, vector<16x8xbf16>, vector<8x8xf32> -> vector<8x8xf32>
    %c0_158 = arith.constant 0 : index
    %c24_159 = arith.constant 24 : index
    %394 = vector.load %arg33[%c0_158, %c24_159] : memref<8x32xf32, #tpu.memory_space<vmem>>, vector<8x8xf32>
    tpu.vector_store %arg33[%c0_158, %c24_159], %393 {strides = array<i32>} : memref<8x32xf32, #tpu.memory_space<vmem>>, vector<8x8xf32>,
    %c0_160 = arith.constant 0 : index
    %c0_161 = arith.constant 0 : index
    %395 = vector.load %arg33[%c0_160, %c0_161] : memref<8x32xf32, #tpu.memory_space<vmem>>, vector<8x32xf32>
    %396 = arith.truncf %395 : vector<8x32xf32> to vector<8x32xbf16>
    %cst_162 = arith.constant dense<0.000000e+00> : vector<8x32xf32>
    %397 = tpu.matmul %396, %312, %cst_162 {dimension_numbers = #tpu.dot_dimension_numbers<[1], [0], [0], [1], [0, 0, 1, 1], [], []>} : vector<8x32xbf16>, vector<32x32xbf16>, vector<8x32xf32> -> vector<8x32xf32>
    %398 = vector.broadcast %314 : vector<1x32xf32> to vector<8x32xf32>
    %399 = arith.addf %397, %398 : vector<8x32xf32>
    %400 = arith.addf %290, %399 : vector<8x32xf32>
    %401 = vector.extract_strided_slice %11 {offsets = [2, 0, 0], sizes = [1, 1, 32], strides = [1, 1, 1]} : vector<4x1x32xf32> to vector<1x1x32xf32>
    %402 = vector.shape_cast %401 : vector<1x1x32xf32> to vector<1x32xf32>
    %403 = vector.extract_strided_slice %13 {offsets = [2, 0, 0], sizes = [1, 1, 32], strides = [1, 1, 1]} : vector<4x1x32xf32> to vector<1x1x32xf32>
    %404 = vector.shape_cast %403 : vector<1x1x32xf32> to vector<1x32xf32>
    %cst_163 = arith.constant dense<0.000000e+00> : vector<8xf32>
    %405 = vector.multi_reduction <add>, %400, %cst_163 [1] : vector<8x32xf32> to vector<8xf32>
    %406 = vector.shape_cast %405 : vector<8xf32> to vector<8x1xf32>
    %cst_164 = arith.constant 3.200000e+01 : f32
    %407 = vector.broadcast %cst_164 : f32 to vector<8x1xf32>
    %408 = arith.divf %406, %407 : vector<8x1xf32>
    %409 = vector.broadcast %408 : vector<8x1xf32> to vector<8x32xf32>
    %410 = arith.subf %400, %409 : vector<8x32xf32>
    %411 = arith.mulf %410, %410 : vector<8x32xf32>
    %cst_165 = arith.constant dense<0.000000e+00> : vector<8xf32>
    %412 = vector.multi_reduction <add>, %411, %cst_165 [1] : vector<8x32xf32> to vector<8xf32>
    %413 = vector.shape_cast %412 : vector<8xf32> to vector<8x1xf32>
    %cst_166 = arith.constant 3.200000e+01 : f32
    %414 = vector.broadcast %cst_166 : f32 to vector<8x1xf32>
    %415 = arith.divf %413, %414 : vector<8x1xf32>
    %416 = vector.broadcast %408 : vector<8x1xf32> to vector<8x32xf32>
    %417 = arith.subf %400, %416 : vector<8x32xf32>
    %cst_167 = arith.constant 9.99999974E-6 : f32
    %418 = vector.broadcast %cst_167 : f32 to vector<8x1xf32>
    %419 = arith.addf %415, %418 : vector<8x1xf32>
    %420 = math.rsqrt %419 : vector<8x1xf32>
    %421 = vector.broadcast %420 : vector<8x1xf32> to vector<8x32xf32>
    %422 = arith.mulf %417, %421 : vector<8x32xf32>
    %423 = vector.broadcast %402 : vector<1x32xf32> to vector<8x32xf32>
    %424 = arith.mulf %422, %423 : vector<8x32xf32>
    %425 = vector.broadcast %404 : vector<1x32xf32> to vector<8x32xf32>
    %426 = arith.addf %424, %425 : vector<8x32xf32>
    %c0_168 = arith.constant 0 : index
    %c0_169 = arith.constant 0 : index
    %c0_170 = arith.constant 0 : index
    %427 = vector.load %arg23[%c0_168, %c0_169, %c0_170] : memref<1x32x64xbf16, #tpu.memory_space<vmem>>, vector<1x32x64xbf16>
    %428 = vector.shape_cast %427 : vector<1x32x64xbf16> to vector<32x64xbf16>
    %429 = arith.truncf %426 : vector<8x32xf32> to vector<8x32xbf16>
    %cst_171 = arith.constant dense<0.000000e+00> : vector<8x64xf32>
    %430 = tpu.matmul %429, %428, %cst_171 {dimension_numbers = #tpu.dot_dimension_numbers<[1], [0], [0], [1], [0, 0, 1, 1], [], []>} : vector<8x32xbf16>, vector<32x64xbf16>, vector<8x64xf32> -> vector<8x64xf32>
    %c0_172 = arith.constant 0 : index
    %c0_173 = arith.constant 0 : index
    %c0_174 = arith.constant 0 : index
    %431 = vector.load %arg24[%c0_172, %c0_173, %c0_174] : memref<1x1x64xf32, #tpu.memory_space<vmem>>, vector<1x1x64xf32>
    %432 = vector.shape_cast %431 : vector<1x1x64xf32> to vector<1x64xf32>
    %433 = vector.broadcast %432 : vector<1x64xf32> to vector<8x64xf32>
    %434 = arith.addf %430, %433 : vector<8x64xf32>
    %cst_175 = arith.constant 0.000000e+00 : f32
    %435 = vector.broadcast %cst_175 : f32 to vector<8x64xf32>
    %436 = arith.maximumf %434, %435 : vector<8x64xf32>
    %c0_176 = arith.constant 0 : index
    %c0_177 = arith.constant 0 : index
    %c0_178 = arith.constant 0 : index
    %437 = vector.load %arg25[%c0_176, %c0_177, %c0_178] : memref<1x64x32xbf16, #tpu.memory_space<vmem>>, vector<1x64x32xbf16>
    %438 = vector.shape_cast %437 : vector<1x64x32xbf16> to vector<64x32xbf16>
    %439 = arith.truncf %436 : vector<8x64xf32> to vector<8x64xbf16>
    %cst_179 = arith.constant dense<0.000000e+00> : vector<8x32xf32>
    %440 = tpu.matmul %439, %438, %cst_179 {dimension_numbers = #tpu.dot_dimension_numbers<[1], [0], [0], [1], [0, 0, 1, 1], [], []>} : vector<8x64xbf16>, vector<64x32xbf16>, vector<8x32xf32> -> vector<8x32xf32>
    %c0_180 = arith.constant 0 : index
    %c0_181 = arith.constant 0 : index
    %c0_182 = arith.constant 0 : index
    %441 = vector.load %arg26[%c0_180, %c0_181, %c0_182] : memref<1x1x32xf32, #tpu.memory_space<vmem>>, vector<1x1x32xf32>
    %442 = vector.shape_cast %441 : vector<1x1x32xf32> to vector<1x32xf32>
    %443 = vector.broadcast %442 : vector<1x32xf32> to vector<8x32xf32>
    %444 = arith.addf %440, %443 : vector<8x32xf32>
    %445 = arith.addf %426, %444 : vector<8x32xf32>
    %446 = vector.extract_strided_slice %11 {offsets = [3, 0, 0], sizes = [1, 1, 32], strides = [1, 1, 1]} : vector<4x1x32xf32> to vector<1x1x32xf32>
    %447 = vector.shape_cast %446 : vector<1x1x32xf32> to vector<1x32xf32>
    %448 = vector.extract_strided_slice %13 {offsets = [3, 0, 0], sizes = [1, 1, 32], strides = [1, 1, 1]} : vector<4x1x32xf32> to vector<1x1x32xf32>
    %449 = vector.shape_cast %448 : vector<1x1x32xf32> to vector<1x32xf32>
    %cst_183 = arith.constant dense<0.000000e+00> : vector<8xf32>
    %450 = vector.multi_reduction <add>, %445, %cst_183 [1] : vector<8x32xf32> to vector<8xf32>
    %451 = vector.shape_cast %450 : vector<8xf32> to vector<8x1xf32>
    %cst_184 = arith.constant 3.200000e+01 : f32
    %452 = vector.broadcast %cst_184 : f32 to vector<8x1xf32>
    %453 = arith.divf %451, %452 : vector<8x1xf32>
    %454 = vector.broadcast %453 : vector<8x1xf32> to vector<8x32xf32>
    %455 = arith.subf %445, %454 : vector<8x32xf32>
    %456 = arith.mulf %455, %455 : vector<8x32xf32>
    %cst_185 = arith.constant dense<0.000000e+00> : vector<8xf32>
    %457 = vector.multi_reduction <add>, %456, %cst_185 [1] : vector<8x32xf32> to vector<8xf32>
    %458 = vector.shape_cast %457 : vector<8xf32> to vector<8x1xf32>
    %cst_186 = arith.constant 3.200000e+01 : f32
    %459 = vector.broadcast %cst_186 : f32 to vector<8x1xf32>
    %460 = arith.divf %458, %459 : vector<8x1xf32>
    %461 = vector.broadcast %453 : vector<8x1xf32> to vector<8x32xf32>
    %462 = arith.subf %445, %461 : vector<8x32xf32>
    %cst_187 = arith.constant 9.99999974E-6 : f32
    %463 = vector.broadcast %cst_187 : f32 to vector<8x1xf32>
    %464 = arith.addf %460, %463 : vector<8x1xf32>
    %465 = math.rsqrt %464 : vector<8x1xf32>
    %466 = vector.broadcast %465 : vector<8x1xf32> to vector<8x32xf32>
    %467 = arith.mulf %462, %466 : vector<8x32xf32>
    %468 = vector.broadcast %447 : vector<1x32xf32> to vector<8x32xf32>
    %469 = arith.mulf %467, %468 : vector<8x32xf32>
    %470 = vector.broadcast %449 : vector<1x32xf32> to vector<8x32xf32>
    %471 = arith.addf %469, %470 : vector<8x32xf32>
    %c0_188 = arith.constant 0 : index
    %c0_189 = arith.constant 0 : index
    %472 = vector.load %arg32[%c0_188, %c0_189] : memref<8x32xf32, #tpu.memory_space<vmem>>, vector<8x32xf32>
    tpu.vector_store %arg32[%c0_188, %c0_189], %471 {strides = array<i32>} : memref<8x32xf32, #tpu.memory_space<vmem>>, vector<8x32xf32>,
    %c1_i32 = arith.constant 1 : i32
    %473 = arith.cmpi eq, %arg1, %c1_i32 : i32
    %474 = arith.extui %473 : i1 to i32
    %c0_i32_190 = arith.constant 0 : i32
    %475 = arith.cmpi ne, %474, %c0_i32_190 : i32
    scf.if %475 {
      %c0_191 = arith.constant 0 : index
      %c0_192 = arith.constant 0 : index
      %476 = vector.load %arg29[%c0_191, %c0_192] : memref<1x32xf32, #tpu.memory_space<vmem>>, vector<1x32xf32>
      %c0_193 = arith.constant 0 : index
      %c0_194 = arith.constant 0 : index
      %477 = vector.load %arg30[%c0_193, %c0_194] : memref<1x32xf32, #tpu.memory_space<vmem>>, vector<1x32xf32>
      %cst_195 = arith.constant dense<0.000000e+00> : vector<8xf32>
      %478 = vector.multi_reduction <add>, %471, %cst_195 [1] : vector<8x32xf32> to vector<8xf32>
      %479 = vector.shape_cast %478 : vector<8xf32> to vector<8x1xf32>
      %cst_196 = arith.constant 3.200000e+01 : f32
      %480 = vector.broadcast %cst_196 : f32 to vector<8x1xf32>
      %481 = arith.divf %479, %480 : vector<8x1xf32>
      %482 = vector.broadcast %481 : vector<8x1xf32> to vector<8x32xf32>
      %483 = arith.subf %471, %482 : vector<8x32xf32>
      %484 = arith.mulf %483, %483 : vector<8x32xf32>
      %cst_197 = arith.constant dense<0.000000e+00> : vector<8xf32>
      %485 = vector.multi_reduction <add>, %484, %cst_197 [1] : vector<8x32xf32> to vector<8xf32>
      %486 = vector.shape_cast %485 : vector<8xf32> to vector<8x1xf32>
      %cst_198 = arith.constant 3.200000e+01 : f32
      %487 = vector.broadcast %cst_198 : f32 to vector<8x1xf32>
      %488 = arith.divf %486, %487 : vector<8x1xf32>
      %489 = vector.broadcast %481 : vector<8x1xf32> to vector<8x32xf32>
      %490 = arith.subf %471, %489 : vector<8x32xf32>
      %cst_199 = arith.constant 9.99999974E-6 : f32
      %491 = vector.broadcast %cst_199 : f32 to vector<8x1xf32>
      %492 = arith.addf %488, %491 : vector<8x1xf32>
      %493 = math.rsqrt %492 : vector<8x1xf32>
      %494 = vector.broadcast %493 : vector<8x1xf32> to vector<8x32xf32>
      %495 = arith.mulf %490, %494 : vector<8x32xf32>
      %496 = vector.broadcast %476 : vector<1x32xf32> to vector<8x32xf32>
      %497 = arith.mulf %495, %496 : vector<8x32xf32>
      %498 = vector.broadcast %477 : vector<1x32xf32> to vector<8x32xf32>
      %499 = arith.addf %497, %498 : vector<8x32xf32>
      %c0_200 = arith.constant 0 : index
      %c0_201 = arith.constant 0 : index
      %c0_202 = arith.constant 0 : index
      %500 = vector.load %arg31[%c0_200, %c0_201, %c0_202] : memref<1x8x32xf32, #tpu.memory_space<vmem>>, vector<1x8x32xf32>
      %501 = vector.shape_cast %500 : vector<1x8x32xf32> to vector<8x32xf32>
      %502 = vector.shape_cast %499 : vector<8x32xf32> to vector<1x8x32xf32>
      tpu.vector_store %arg31[%c0_200, %c0_201, %c0_202], %502 {strides = array<i32>} : memref<1x8x32xf32, #tpu.memory_space<vmem>>, vector<1x8x32xf32>,
    } else {
    }
    return
  }
  func.func @transform_0(%arg0: i32, %arg1: i32) -> (i32, i32, i32) {
    %c0_i32 = arith.constant 0 : i32
    %c0_i32_0 = arith.constant 0 : i32
    %c0_i32_1 = arith.constant 0 : i32
    return %arg0, %c0_i32, %c0_i32_0 : i32, i32, i32
  }
  func.func @transform_1(%arg0: i32, %arg1: i32) -> (i32, i32, i32) {
    %c0_i32 = arith.constant 0 : i32
    %c0_i32_0 = arith.constant 0 : i32
    %c0_i32_1 = arith.constant 0 : i32
    return %arg0, %c0_i32, %c0_i32_0 : i32, i32, i32
  }
  func.func @transform_2(%arg0: i32, %arg1: i32) -> (i32, i32, i32) {
    %c0_i32 = arith.constant 0 : i32
    %c0_i32_0 = arith.constant 0 : i32
    %c0_i32_1 = arith.constant 0 : i32
    return %arg0, %c0_i32, %c0_i32_0 : i32, i32, i32
  }
  func.func @transform_3(%arg0: i32, %arg1: i32) -> (i32, i32) {
    %c0_i32 = arith.constant 0 : i32
    %c0_i32_0 = arith.constant 0 : i32
    %c0_i32_1 = arith.constant 0 : i32
    return %c0_i32, %c0_i32_0 : i32, i32
  }
  func.func @transform_4(%arg0: i32, %arg1: i32) -> (i32, i32) {
    %c0_i32 = arith.constant 0 : i32
    %c0_i32_0 = arith.constant 0 : i32
    %c0_i32_1 = arith.constant 0 : i32
    return %c0_i32, %c0_i32_0 : i32, i32
  }
  func.func @transform_5(%arg0: i32, %arg1: i32) -> (i32, i32, i32) {
    %c0_i32 = arith.constant 0 : i32
    %c0_i32_0 = arith.constant 0 : i32
    %c0_i32_1 = arith.constant 0 : i32
    return %arg1, %c0_i32, %c0_i32_0 : i32, i32, i32
  }
  func.func @transform_6(%arg0: i32, %arg1: i32) -> (i32, i32, i32) {
    %c0_i32 = arith.constant 0 : i32
    %c0_i32_0 = arith.constant 0 : i32
    %c0_i32_1 = arith.constant 0 : i32
    return %arg1, %c0_i32, %c0_i32_0 : i32, i32, i32
  }
  func.func @transform_7(%arg0: i32, %arg1: i32) -> (i32, i32, i32) {
    %c0_i32 = arith.constant 0 : i32
    %c0_i32_0 = arith.constant 0 : i32
    %c0_i32_1 = arith.constant 0 : i32
    return %arg1, %c0_i32, %c0_i32_0 : i32, i32, i32
  }
  func.func @transform_8(%arg0: i32, %arg1: i32) -> (i32, i32, i32) {
    %c0_i32 = arith.constant 0 : i32
    %c0_i32_0 = arith.constant 0 : i32
    %c0_i32_1 = arith.constant 0 : i32
    return %arg1, %c0_i32, %c0_i32_0 : i32, i32, i32
  }
  func.func @transform_9(%arg0: i32, %arg1: i32) -> (i32, i32, i32) {
    %c0_i32 = arith.constant 0 : i32
    %c0_i32_0 = arith.constant 0 : i32
    %c0_i32_1 = arith.constant 0 : i32
    return %arg1, %c0_i32, %c0_i32_0 : i32, i32, i32
  }
  func.func @transform_10(%arg0: i32, %arg1: i32) -> (i32, i32, i32) {
    %c0_i32 = arith.constant 0 : i32
    %c0_i32_0 = arith.constant 0 : i32
    %c0_i32_1 = arith.constant 0 : i32
    return %arg1, %c0_i32, %c0_i32_0 : i32, i32, i32
  }
  func.func @transform_11(%arg0: i32, %arg1: i32) -> (i32, i32, i32) {
    %c0_i32 = arith.constant 0 : i32
    %c0_i32_0 = arith.constant 0 : i32
    %c0_i32_1 = arith.constant 0 : i32
    return %arg1, %c0_i32, %c0_i32_0 : i32, i32, i32
  }
  func.func @transform_12(%arg0: i32, %arg1: i32) -> (i32, i32, i32) {
    %c0_i32 = arith.constant 0 : i32
    %c0_i32_0 = arith.constant 0 : i32
    %c0_i32_1 = arith.constant 0 : i32
    return %arg1, %c0_i32, %c0_i32_0 : i32, i32, i32
  }
  func.func @transform_13(%arg0: i32, %arg1: i32) -> (i32, i32, i32) {
    %c0_i32 = arith.constant 0 : i32
    %c0_i32_0 = arith.constant 0 : i32
    %c0_i32_1 = arith.constant 0 : i32
    return %arg1, %c0_i32, %c0_i32_0 : i32, i32, i32
  }
  func.func @transform_14(%arg0: i32, %arg1: i32) -> (i32, i32, i32) {
    %c0_i32 = arith.constant 0 : i32
    %c0_i32_0 = arith.constant 0 : i32
    %c0_i32_1 = arith.constant 0 : i32
    return %arg1, %c0_i32, %c0_i32_0 : i32, i32, i32
  }
  func.func @transform_15(%arg0: i32, %arg1: i32) -> (i32, i32, i32) {
    %c0_i32 = arith.constant 0 : i32
    %c0_i32_0 = arith.constant 0 : i32
    %c0_i32_1 = arith.constant 0 : i32
    return %arg1, %c0_i32, %c0_i32_0 : i32, i32, i32
  }
  func.func @transform_16(%arg0: i32, %arg1: i32) -> (i32, i32, i32) {
    %c0_i32 = arith.constant 0 : i32
    %c0_i32_0 = arith.constant 0 : i32
    %c0_i32_1 = arith.constant 0 : i32
    return %arg1, %c0_i32, %c0_i32_0 : i32, i32, i32
  }
  func.func @transform_17(%arg0: i32, %arg1: i32) -> (i32, i32, i32) {
    %c0_i32 = arith.constant 0 : i32
    %c0_i32_0 = arith.constant 0 : i32
    %c0_i32_1 = arith.constant 0 : i32
    return %arg1, %c0_i32, %c0_i32_0 : i32, i32, i32
  }
  func.func @transform_18(%arg0: i32, %arg1: i32) -> (i32, i32, i32) {
    %c0_i32 = arith.constant 0 : i32
    %c0_i32_0 = arith.constant 0 : i32
    %c0_i32_1 = arith.constant 0 : i32
    return %arg1, %c0_i32, %c0_i32_0 : i32, i32, i32
  }
  func.func @transform_19(%arg0: i32, %arg1: i32) -> (i32, i32, i32) {
    %c0_i32 = arith.constant 0 : i32
    %c0_i32_0 = arith.constant 0 : i32
    %c0_i32_1 = arith.constant 0 : i32
    return %arg1, %c0_i32, %c0_i32_0 : i32, i32, i32
  }
  func.func @transform_20(%arg0: i32, %arg1: i32) -> (i32, i32, i32) {
    %c0_i32 = arith.constant 0 : i32
    %c0_i32_0 = arith.constant 0 : i32
    %c0_i32_1 = arith.constant 0 : i32
    return %arg1, %c0_i32, %c0_i32_0 : i32, i32, i32
  }
  func.func @transform_21(%arg0: i32, %arg1: i32) -> (i32, i32, i32) {
    %c0_i32 = arith.constant 0 : i32
    %c0_i32_0 = arith.constant 0 : i32
    %c0_i32_1 = arith.constant 0 : i32
    return %arg1, %c0_i32, %c0_i32_0 : i32, i32, i32
  }
  func.func @transform_22(%arg0: i32, %arg1: i32) -> (i32, i32, i32) {
    %c0_i32 = arith.constant 0 : i32
    %c0_i32_0 = arith.constant 0 : i32
    %c0_i32_1 = arith.constant 0 : i32
    return %arg1, %c0_i32, %c0_i32_0 : i32, i32, i32
  }
  func.func @transform_23(%arg0: i32, %arg1: i32) -> (i32, i32, i32) {
    %c0_i32 = arith.constant 0 : i32
    %c0_i32_0 = arith.constant 0 : i32
    %c0_i32_1 = arith.constant 0 : i32
    return %arg1, %c0_i32, %c0_i32_0 : i32, i32, i32
  }
  func.func @transform_24(%arg0: i32, %arg1: i32) -> (i32, i32, i32) {
    %c0_i32 = arith.constant 0 : i32
    %c0_i32_0 = arith.constant 0 : i32
    %c0_i32_1 = arith.constant 0 : i32
    return %arg1, %c0_i32, %c0_i32_0 : i32, i32, i32
  }
  func.func @transform_25(%arg0: i32, %arg1: i32) -> (i32, i32, i32, i32) {
    %c0_i32 = arith.constant 0 : i32
    %c0_i32_0 = arith.constant 0 : i32
    %c0_i32_1 = arith.constant 0 : i32
    %c0_i32_2 = arith.constant 0 : i32
    return %arg1, %c0_i32, %c0_i32_0, %c0_i32_1 : i32, i32, i32, i32
  }
  func.func @transform_26(%arg0: i32, %arg1: i32) -> (i32, i32, i32, i32) {
    %c0_i32 = arith.constant 0 : i32
    %c0_i32_0 = arith.constant 0 : i32
    %c0_i32_1 = arith.constant 0 : i32
    %c0_i32_2 = arith.constant 0 : i32
    return %arg1, %c0_i32, %c0_i32_0, %c0_i32_1 : i32, i32, i32, i32
  }
  func.func @transform_27(%arg0: i32, %arg1: i32) -> (i32, i32) {
    %c0_i32 = arith.constant 0 : i32
    %c0_i32_0 = arith.constant 0 : i32
    %c0_i32_1 = arith.constant 0 : i32
    return %c0_i32, %c0_i32_0 : i32, i32
  }
  func.func @transform_28(%arg0: i32, %arg1: i32) -> (i32, i32) {
    %c0_i32 = arith.constant 0 : i32
    %c0_i32_0 = arith.constant 0 : i32
    %c0_i32_1 = arith.constant 0 : i32
    return %c0_i32, %c0_i32_0 : i32, i32
  }
  func.func @transform_29(%arg0: i32, %arg1: i32) -> (i32, i32, i32) {
    %c0_i32 = arith.constant 0 : i32
    %c0_i32_0 = arith.constant 0 : i32
    %c0_i32_1 = arith.constant 0 : i32
    return %arg0, %c0_i32, %c0_i32_0 : i32, i32, i32
  }
}

</mosaic_0001>

<llo_original>
// kernel: double_sen_attn_transformer_decoder.1
$region0: #{double_sen_attn_transformer_decoder.1}
  #allocation0 [shape = 'u32[]', space=smem, size = 0x4, offset = 0x4, fixed_abs, tag = 'smem constant byte address 0x4 - core index']
  #allocation1 [shape = 'u32[144,128]{1,0:T(1,128)}', space=vmem, size = 0x12000, scoped, tag = 'internal scratch']
  #allocation2 [shape = 'f32[8,32]{1,0:T(8,128)}', space=vmem, size = 0x1000, scoped, tag = 'scratch operand']
  #allocation3 [shape = 'f32[8,32]{1,0:T(8,128)}', space=vmem, size = 0x1000, scoped, tag = 'scratch operand']
  %s0 = inlined_call_operand.smem [shape: u32[30], index: -1, kind: input, shape index: {}]
  %s1 = sld [smem:[%s0]]
  %s2 = scalar_lea.smem %s0, 1
  %s3 = sld [smem:[%s2]]
  %s4 = scalar_lea.smem %s0, 2
  %s5 = sld [smem:[%s4]]
  %s6 = scalar_lea.smem %s0, 3
  %s7 = sld [smem:[%s6]]
  %s8 = scalar_lea.smem %s0, 4
  %s9 = sld [smem:[%s8]]
  %s10 = scalar_lea.smem %s0, 5
  %s11 = sld [smem:[%s10]]
  %s12 = scalar_lea.smem %s0, 6
  %s13 = sld [smem:[%s12]]
  %s14 = scalar_lea.smem %s0, 7
  %s15 = sld [smem:[%s14]]
  %s16 = scalar_lea.smem %s0, 8
  %s17 = sld [smem:[%s16]]
  %s18 = scalar_lea.smem %s0, 9
  %s19 = sld [smem:[%s18]]
  %s20 = scalar_lea.smem %s0, 10
  %s21 = sld [smem:[%s20]]
  %s22 = scalar_lea.smem %s0, 11
  %s23 = sld [smem:[%s22]]
  %s24 = scalar_lea.smem %s0, 12
  %s25 = sld [smem:[%s24]]
  %s26 = scalar_lea.smem %s0, 13
  %s27 = sld [smem:[%s26]]
  %s28 = scalar_lea.smem %s0, 14
  %s29 = sld [smem:[%s28]]
  %s30 = scalar_lea.smem %s0, 15
  %s31 = sld [smem:[%s30]]
  %s32 = scalar_lea.smem %s0, 16
  %s33 = sld [smem:[%s32]]
  %s34 = scalar_lea.smem %s0, 17
  %s35 = sld [smem:[%s34]]
  %s36 = scalar_lea.smem %s0, 18
  %s37 = sld [smem:[%s36]]
  %s38 = scalar_lea.smem %s0, 19
  %s39 = sld [smem:[%s38]]
  %s40 = scalar_lea.smem %s0, 20
  %s41 = sld [smem:[%s40]]
  %s42 = scalar_lea.smem %s0, 21
  %s43 = sld [smem:[%s42]]
  %s44 = scalar_lea.smem %s0, 22
  %s45 = sld [smem:[%s44]]
  %s46 = scalar_lea.smem %s0, 23
  %s47 = sld [smem:[%s46]]
  %s48 = scalar_lea.smem %s0, 24
  %s49 = sld [smem:[%s48]]
  %s50 = scalar_lea.smem %s0, 25
  %s51 = sld [smem:[%s50]]
  %s52 = scalar_lea.smem %s0, 26
  %s53 = sld [smem:[%s52]]
  %s54 = scalar_lea.smem %s0, 27
  %s55 = sld [smem:[%s54]]
  %s56 = scalar_lea.smem %s0, 28
  %s57 = sld [smem:[%s56]]
  %s58 = scalar_lea.smem %s0, 29
  %s59 = sld [smem:[%s58]]
  %s60 = sld [smem:[#allocation0]]
  $region157: #{double_sen_attn_transformer_decoder.1} parent=0
    _
  %s62 = ssub.s32 1, %s60
  %s63 = scalar_select 0, %s62, %s60
  loop: start=0, step=1, limit=6
  $region2: #{double_sen_attn_transformer_decoder.1} parent=0 // loop_pre_header
    _
  $region3: #{double_sen_attn_transformer_decoder.1} parent=0 // loop_header
    %s65 = sphi 0, %s69
    %p66 = scmp.ge.s32.totalorder %s65, 6
    %s72 = sphi 0, %s84
    %s73 = sphi 0, %s80
    %s74 = sphi 0, %s72
    %s75 = sphi 0, %s73
    %s76 = sphi 0, %s74
    %s77 = sphi 0, %s75
    %s87 = sphi 0, %s89
    %s90 = sphi 0, %s87
    %s91 = sphi 0, %s90
    %s107 = sphi 0, %s91
    %s113 = sphi 0, %s115
    %s116 = sphi 0, %s113
    %s117 = sphi 0, %s116
    %s133 = sphi 0, %s117
    %s139 = sphi 0, %s141
    %s142 = sphi 0, %s139
    %s143 = sphi 0, %s142
    %s159 = sphi 0, %s143
    %s163 = sphi 0, %s163
    %s165 = sphi 0, %s163
    %s166 = sphi 0, %s165
    %s180 = sphi 0, %s166
    %s184 = sphi 0, %s184
    %s186 = sphi 0, %s184
    %s187 = sphi 0, %s186
    %s201 = sphi 0, %s187
    %s207 = sphi 0, %s209
    %s210 = sphi 0, %s207
    %s211 = sphi 0, %s210
    %s227 = sphi 0, %s211
    %s233 = sphi 0, %s235
    %s236 = sphi 0, %s233
    %s237 = sphi 0, %s236
    %s253 = sphi 0, %s237
    %s259 = sphi 0, %s261
    %s262 = sphi 0, %s259
    %s263 = sphi 0, %s262
    %s279 = sphi 0, %s263
    %s285 = sphi 0, %s287
    %s288 = sphi 0, %s285
    %s289 = sphi 0, %s288
    %s305 = sphi 0, %s289
    %s311 = sphi 0, %s313
    %s314 = sphi 0, %s311
    %s315 = sphi 0, %s314
    %s331 = sphi 0, %s315
    %s337 = sphi 0, %s339
    %s340 = sphi 0, %s337
    %s341 = sphi 0, %s340
    %s357 = sphi 0, %s341
    %s363 = sphi 0, %s365
    %s366 = sphi 0, %s363
    %s367 = sphi 0, %s366
    %s383 = sphi 0, %s367
    %s389 = sphi 0, %s391
    %s392 = sphi 0, %s389
    %s393 = sphi 0, %s392
    %s409 = sphi 0, %s393
    %s415 = sphi 0, %s417
    %s418 = sphi 0, %s415
    %s419 = sphi 0, %s418
    %s435 = sphi 0, %s419
    %s441 = sphi 0, %s443
    %s444 = sphi 0, %s441
    %s445 = sphi 0, %s444
    %s461 = sphi 0, %s445
    %s467 = sphi 0, %s469
    %s470 = sphi 0, %s467
    %s471 = sphi 0, %s470
    %s487 = sphi 0, %s471
    %s493 = sphi 0, %s495
    %s496 = sphi 0, %s493
    %s497 = sphi 0, %s496
    %s513 = sphi 0, %s497
    %s519 = sphi 0, %s521
    %s522 = sphi 0, %s519
    %s523 = sphi 0, %s522
    %s539 = sphi 0, %s523
    %s545 = sphi 0, %s547
    %s548 = sphi 0, %s545
    %s549 = sphi 0, %s548
    %s565 = sphi 0, %s549
    %s571 = sphi 0, %s573
    %s574 = sphi 0, %s571
    %s575 = sphi 0, %s574
    %s591 = sphi 0, %s575
    %s597 = sphi 0, %s599
    %s600 = sphi 0, %s597
    %s601 = sphi 0, %s600
    %s617 = sphi 0, %s601
    %s623 = sphi 0, %s625
    %s626 = sphi 0, %s623
    %s627 = sphi 0, %s626
    %s643 = sphi 0, %s627
    %s649 = sphi 0, %s651
    %s652 = sphi 0, %s649
    %s653 = sphi 0, %s652
    %s669 = sphi 0, %s653
    %s675 = sphi 0, %s677
    %s678 = sphi 0, %s675
    %s679 = sphi 0, %s678
    %s695 = sphi 0, %s679
    %s701 = sphi 0, %s703
    %s704 = sphi 0, %s701
    %s705 = sphi 0, %s704
    %s721 = sphi 0, %s705
    %s727 = sphi 0, %s729
    %s730 = sphi 0, %s727
    %s731 = sphi 0, %s730
    %s747 = sphi 0, %s731
    %s753 = sphi 0, %s755
    %s756 = sphi 0, %s753
    %s757 = sphi 0, %s756
    %s773 = sphi 0, %s757
    %s777 = sphi 0, %s777
    %s779 = sphi 0, %s777
    %s780 = sphi 0, %s779
    %s794 = sphi 0, %s780
    %s798 = sphi 0, %s798
    %s800 = sphi 0, %s798
    %s801 = sphi 0, %s800
    %s815 = sphi 0, %s801
    %s821 = sphi 0, %s823
    %s824 = sphi 0, %s821
    %s825 = sphi 0, %s824
    %s841 = sphi 0, %s825
  $region4: #{double_sen_attn_transformer_decoder.1} parent=0 // loop_header_branch
    %68 = sbr.rel (%p66) target = $region8
  $region5: #{double_sen_attn_transformer_decoder.1} parent=0 // loop_body
    %s70 = ssub.s32 %s65, 1
    %s71 = ssub.s32 %s65, 2
    %s78 = sadd.s32 1, %s73
    %p79 = scmp.ge.s32.totalorder %s78, 2
    %s80 = scalar_select %p79, 0, %s78
    %s81 = sadd.s32 1, %s72
    %s82 = scalar_select %p79, %s81, %s72
    %p83 = scmp.ge.s32.totalorder %s82, 2
    %s84 = scalar_select %p83, 0, %s82
    %s85 = ssub.s32 %s72, %s84
    %p86 = scmp.eq.s32.totalorder %s85, 0
    %s88 = sadd.s32 %s87, 1
    %s89 = scalar_select %p86, %s87, %s88
    %p92 = pneg %p86
    %p93 = scmp.eq.s32.totalorder %s65, 3
    %p94 = por %p92, %p93
    %p95 = scmp.ne.s32.totalorder %s87, %s90
    %p96 = scmp.eq.s32.totalorder %s65, 0
    %p97 = por %p95, %p96
    %p98 = scmp.ne.s32.totalorder %s87, %s90
    %p99 = scmp.eq.s32.totalorder %s70, 3
    %p100 = por %p98, %p99
    %p101 = scmp.ne.s32.totalorder %s90, %s91
    %p102 = scmp.eq.s32.totalorder %s70, 0
    %p103 = por %p101, %p102
    %p104 = scmp.ne.s32.totalorder %s90, %s91
    %p105 = scmp.eq.s32.totalorder %s71, 3
    %p106 = por %p104, %p105
    %p108 = scmp.ne.s32.totalorder %s91, %s107
    %p109 = scmp.eq.s32.totalorder %s71, 0
    %p110 = por %p108, %p109
    %s111 = ssub.s32 %s72, %s84
    %p112 = scmp.eq.s32.totalorder %s111, 0
    %s114 = sadd.s32 %s113, 1
    %s115 = scalar_select %p112, %s113, %s114
    %p118 = pneg %p112
    %p119 = scmp.eq.s32.totalorder %s65, 3
    %p120 = por %p118, %p119
    %p121 = scmp.ne.s32.totalorder %s113, %s116
    %p122 = scmp.eq.s32.totalorder %s65, 0
    %p123 = por %p121, %p122
    %p124 = scmp.ne.s32.totalorder %s113, %s116
    %p125 = scmp.eq.s32.totalorder %s70, 3
    %p126 = por %p124, %p125
    %p127 = scmp.ne.s32.totalorder %s116, %s117
    %p128 = scmp.eq.s32.totalorder %s70, 0
    %p129 = por %p127, %p128
    %p130 = scmp.ne.s32.totalorder %s116, %s117
    %p131 = scmp.eq.s32.totalorder %s71, 3
    %p132 = por %p130, %p131
    %p134 = scmp.ne.s32.totalorder %s117, %s133
    %p135 = scmp.eq.s32.totalorder %s71, 0
    %p136 = por %p134, %p135
    %s137 = ssub.s32 %s72, %s84
    %p138 = scmp.eq.s32.totalorder %s137, 0
    %s140 = sadd.s32 %s139, 1
    %s141 = scalar_select %p138, %s139, %s140
    %p144 = pneg %p138
    %p145 = scmp.eq.s32.totalorder %s65, 3
    %p146 = por %p144, %p145
    %p147 = scmp.ne.s32.totalorder %s139, %s142
    %p148 = scmp.eq.s32.totalorder %s65, 0
    %p149 = por %p147, %p148
    %p150 = scmp.ne.s32.totalorder %s139, %s142
    %p151 = scmp.eq.s32.totalorder %s70, 3
    %p152 = por %p150, %p151
    %p153 = scmp.ne.s32.totalorder %s142, %s143
    %p154 = scmp.eq.s32.totalorder %s70, 0
    %p155 = por %p153, %p154
    %p156 = scmp.ne.s32.totalorder %s142, %s143
    %p157 = scmp.eq.s32.totalorder %s71, 3
    %p158 = por %p156, %p157
    %p160 = scmp.ne.s32.totalorder %s143, %s159
    %p161 = scmp.eq.s32.totalorder %s71, 0
    %p162 = por %p160, %p161
    %s164 = sadd.s32 %s163, 1
    %p167 = scmp.eq.s32.totalorder %s65, 3
    %p168 = scmp.ne.s32.totalorder %s163, %s165
    %p169 = scmp.eq.s32.totalorder %s65, 0
    %p170 = por %p168, %p169
    %p171 = scmp.ne.s32.totalorder %s163, %s165
    %p172 = scmp.eq.s32.totalorder %s70, 3
    %p173 = por %p171, %p172
    %p174 = scmp.ne.s32.totalorder %s165, %s166
    %p175 = scmp.eq.s32.totalorder %s70, 0
    %p176 = por %p174, %p175
    %p177 = scmp.ne.s32.totalorder %s165, %s166
    %p178 = scmp.eq.s32.totalorder %s71, 3
    %p179 = por %p177, %p178
    %p181 = scmp.ne.s32.totalorder %s166, %s180
    %p182 = scmp.eq.s32.totalorder %s71, 0
    %p183 = por %p181, %p182
    %s185 = sadd.s32 %s184, 1
    %p188 = scmp.eq.s32.totalorder %s65, 3
    %p189 = scmp.ne.s32.totalorder %s184, %s186
    %p190 = scmp.eq.s32.totalorder %s65, 0
    %p191 = por %p189, %p190
    %p192 = scmp.ne.s32.totalorder %s184, %s186
    %p193 = scmp.eq.s32.totalorder %s70, 3
    %p194 = por %p192, %p193
    %p195 = scmp.ne.s32.totalorder %s186, %s187
    %p196 = scmp.eq.s32.totalorder %s70, 0
    %p197 = por %p195, %p196
    %p198 = scmp.ne.s32.totalorder %s186, %s187
    %p199 = scmp.eq.s32.totalorder %s71, 3
    %p200 = por %p198, %p199
    %p202 = scmp.ne.s32.totalorder %s187, %s201
    %p203 = scmp.eq.s32.totalorder %s71, 0
    %p204 = por %p202, %p203
    %s205 = ssub.s32 %s73, %s80
    %p206 = scmp.eq.s32.totalorder %s205, 0
    %s208 = sadd.s32 %s207, 1
    %s209 = scalar_select %p206, %s207, %s208
    %p212 = pneg %p206
    %p213 = scmp.eq.s32.totalorder %s65, 3
    %p214 = por %p212, %p213
    %p215 = scmp.ne.s32.totalorder %s207, %s210
    %p216 = scmp.eq.s32.totalorder %s65, 0
    %p217 = por %p215, %p216
    %p218 = scmp.ne.s32.totalorder %s207, %s210
    %p219 = scmp.eq.s32.totalorder %s70, 3
    %p220 = por %p218, %p219
    %p221 = scmp.ne.s32.totalorder %s210, %s211
    %p222 = scmp.eq.s32.totalorder %s70, 0
    %p223 = por %p221, %p222
    %p224 = scmp.ne.s32.totalorder %s210, %s211
    %p225 = scmp.eq.s32.totalorder %s71, 3
    %p226 = por %p224, %p225
    %p228 = scmp.ne.s32.totalorder %s211, %s227
    %p229 = scmp.eq.s32.totalorder %s71, 0
    %p230 = por %p228, %p229
    %s231 = ssub.s32 %s73, %s80
    %p232 = scmp.eq.s32.totalorder %s231, 0
    %s234 = sadd.s32 %s233, 1
    %s235 = scalar_select %p232, %s233, %s234
    %p238 = pneg %p232
    %p239 = scmp.eq.s32.totalorder %s65, 3
    %p240 = por %p238, %p239
    %p241 = scmp.ne.s32.totalorder %s233, %s236
    %p242 = scmp.eq.s32.totalorder %s65, 0
    %p243 = por %p241, %p242
    %p244 = scmp.ne.s32.totalorder %s233, %s236
    %p245 = scmp.eq.s32.totalorder %s70, 3
    %p246 = por %p244, %p245
    %p247 = scmp.ne.s32.totalorder %s236, %s237
    %p248 = scmp.eq.s32.totalorder %s70, 0
    %p249 = por %p247, %p248
    %p250 = scmp.ne.s32.totalorder %s236, %s237
    %p251 = scmp.eq.s32.totalorder %s71, 3
    %p252 = por %p250, %p251
    %p254 = scmp.ne.s32.totalorder %s237, %s253
    %p255 = scmp.eq.s32.totalorder %s71, 0
    %p256 = por %p254, %p255
    %s257 = ssub.s32 %s73, %s80
    %p258 = scmp.eq.s32.totalorder %s257, 0
    %s260 = sadd.s32 %s259, 1
    %s261 = scalar_select %p258, %s259, %s260
    %p264 = pneg %p258
    %p265 = scmp.eq.s32.totalorder %s65, 3
    %p266 = por %p264, %p265
    %p267 = scmp.ne.s32.totalorder %s259, %s262
    %p268 = scmp.eq.s32.totalorder %s65, 0
    %p269 = por %p267, %p268
    %p270 = scmp.ne.s32.totalorder %s259, %s262
    %p271 = scmp.eq.s32.totalorder %s70, 3
    %p272 = por %p270, %p271
    %p273 = scmp.ne.s32.totalorder %s262, %s263
    %p274 = scmp.eq.s32.totalorder %s70, 0
    %p275 = por %p273, %p274
    %p276 = scmp.ne.s32.totalorder %s262, %s263
    %p277 = scmp.eq.s32.totalorder %s71, 3
    %p278 = por %p276, %p277
    %p280 = scmp.ne.s32.totalorder %s263, %s279
    %p281 = scmp.eq.s32.totalorder %s71, 0
    %p282 = por %p280, %p281
    %s283 = ssub.s32 %s73, %s80
    %p284 = scmp.eq.s32.totalorder %s283, 0
    %s286 = sadd.s32 %s285, 1
    %s287 = scalar_select %p284, %s285, %s286
    %p290 = pneg %p284
    %p291 = scmp.eq.s32.totalorder %s65, 3
    %p292 = por %p290, %p291
    %p293 = scmp.ne.s32.totalorder %s285, %s288
    %p294 = scmp.eq.s32.totalorder %s65, 0
    %p295 = por %p293, %p294
    %p296 = scmp.ne.s32.totalorder %s285, %s288
    %p297 = scmp.eq.s32.totalorder %s70, 3
    %p298 = por %p296, %p297
    %p299 = scmp.ne.s32.totalorder %s288, %s289
    %p300 = scmp.eq.s32.totalorder %s70, 0
    %p301 = por %p299, %p300
    %p302 = scmp.ne.s32.totalorder %s288, %s289
    %p303 = scmp.eq.s32.totalorder %s71, 3
    %p304 = por %p302, %p303
    %p306 = scmp.ne.s32.totalorder %s289, %s305
    %p307 = scmp.eq.s32.totalorder %s71, 0
    %p308 = por %p306, %p307
    %s309 = ssub.s32 %s73, %s80
    %p310 = scmp.eq.s32.totalorder %s309, 0
    %s312 = sadd.s32 %s311, 1
    %s313 = scalar_select %p310, %s311, %s312
    %p316 = pneg %p310
    %p317 = scmp.eq.s32.totalorder %s65, 3
    %p318 = por %p316, %p317
    %p319 = scmp.ne.s32.totalorder %s311, %s314
    %p320 = scmp.eq.s32.totalorder %s65, 0
    %p321 = por %p319, %p320
    %p322 = scmp.ne.s32.totalorder %s311, %s314
    %p323 = scmp.eq.s32.totalorder %s70, 3
    %p324 = por %p322, %p323
    %p325 = scmp.ne.s32.totalorder %s314, %s315
    %p326 = scmp.eq.s32.totalorder %s70, 0
    %p327 = por %p325, %p326
    %p328 = scmp.ne.s32.totalorder %s314, %s315
    %p329 = scmp.eq.s32.totalorder %s71, 3
    %p330 = por %p328, %p329
    %p332 = scmp.ne.s32.totalorder %s315, %s331
    %p333 = scmp.eq.s32.totalorder %s71, 0
    %p334 = por %p332, %p333
    %s335 = ssub.s32 %s73, %s80
    %p336 = scmp.eq.s32.totalorder %s335, 0
    %s338 = sadd.s32 %s337, 1
    %s339 = scalar_select %p336, %s337, %s338
    %p342 = pneg %p336
    %p343 = scmp.eq.s32.totalorder %s65, 3
    %p344 = por %p342, %p343
    %p345 = scmp.ne.s32.totalorder %s337, %s340
    %p346 = scmp.eq.s32.totalorder %s65, 0
    %p347 = por %p345, %p346
    %p348 = scmp.ne.s32.totalorder %s337, %s340
    %p349 = scmp.eq.s32.totalorder %s70, 3
    %p350 = por %p348, %p349
    %p351 = scmp.ne.s32.totalorder %s340, %s341
    %p352 = scmp.eq.s32.totalorder %s70, 0
    %p353 = por %p351, %p352
    %p354 = scmp.ne.s32.totalorder %s340, %s341
    %p355 = scmp.eq.s32.totalorder %s71, 3
    %p356 = por %p354, %p355
    %p358 = scmp.ne.s32.totalorder %s341, %s357
    %p359 = scmp.eq.s32.totalorder %s71, 0
    %p360 = por %p358, %p359
    %s361 = ssub.s32 %s73, %s80
    %p362 = scmp.eq.s32.totalorder %s361, 0
    %s364 = sadd.s32 %s363, 1
    %s365 = scalar_select %p362, %s363, %s364
    %p368 = pneg %p362
    %p369 = scmp.eq.s32.totalorder %s65, 3
    %p370 = por %p368, %p369
    %p371 = scmp.ne.s32.totalorder %s363, %s366
    %p372 = scmp.eq.s32.totalorder %s65, 0
    %p373 = por %p371, %p372
    %p374 = scmp.ne.s32.totalorder %s363, %s366
    %p375 = scmp.eq.s32.totalorder %s70, 3
    %p376 = por %p374, %p375
    %p377 = scmp.ne.s32.totalorder %s366, %s367
    %p378 = scmp.eq.s32.totalorder %s70, 0
    %p379 = por %p377, %p378
    %p380 = scmp.ne.s32.totalorder %s366, %s367
    %p381 = scmp.eq.s32.totalorder %s71, 3
    %p382 = por %p380, %p381
    %p384 = scmp.ne.s32.totalorder %s367, %s383
    %p385 = scmp.eq.s32.totalorder %s71, 0
    %p386 = por %p384, %p385
    %s387 = ssub.s32 %s73, %s80
    %p388 = scmp.eq.s32.totalorder %s387, 0
    %s390 = sadd.s32 %s389, 1
    %s391 = scalar_select %p388, %s389, %s390
    %p394 = pneg %p388
    %p395 = scmp.eq.s32.totalorder %s65, 3
    %p396 = por %p394, %p395
    %p397 = scmp.ne.s32.totalorder %s389, %s392
    %p398 = scmp.eq.s32.totalorder %s65, 0
    %p399 = por %p397, %p398
    %p400 = scmp.ne.s32.totalorder %s389, %s392
    %p401 = scmp.eq.s32.totalorder %s70, 3
    %p402 = por %p400, %p401
    %p403 = scmp.ne.s32.totalorder %s392, %s393
    %p404 = scmp.eq.s32.totalorder %s70, 0
    %p405 = por %p403, %p404
    %p406 = scmp.ne.s32.totalorder %s392, %s393
    %p407 = scmp.eq.s32.totalorder %s71, 3
    %p408 = por %p406, %p407
    %p410 = scmp.ne.s32.totalorder %s393, %s409
    %p411 = scmp.eq.s32.totalorder %s71, 0
    %p412 = por %p410, %p411
    %s413 = ssub.s32 %s73, %s80
    %p414 = scmp.eq.s32.totalorder %s413, 0
    %s416 = sadd.s32 %s415, 1
    %s417 = scalar_select %p414, %s415, %s416
    %p420 = pneg %p414
    %p421 = scmp.eq.s32.totalorder %s65, 3
    %p422 = por %p420, %p421
    %p423 = scmp.ne.s32.totalorder %s415, %s418
    %p424 = scmp.eq.s32.totalorder %s65, 0
    %p425 = por %p423, %p424
    %p426 = scmp.ne.s32.totalorder %s415, %s418
    %p427 = scmp.eq.s32.totalorder %s70, 3
    %p428 = por %p426, %p427
    %p429 = scmp.ne.s32.totalorder %s418, %s419
    %p430 = scmp.eq.s32.totalorder %s70, 0
    %p431 = por %p429, %p430
    %p432 = scmp.ne.s32.totalorder %s418, %s419
    %p433 = scmp.eq.s32.totalorder %s71, 3
    %p434 = por %p432, %p433
    %p436 = scmp.ne.s32.totalorder %s419, %s435
    %p437 = scmp.eq.s32.totalorder %s71, 0
    %p438 = por %p436, %p437
    %s439 = ssub.s32 %s73, %s80
    %p440 = scmp.eq.s32.totalorder %s439, 0
    %s442 = sadd.s32 %s441, 1
    %s443 = scalar_select %p440, %s441, %s442
    %p446 = pneg %p440
    %p447 = scmp.eq.s32.totalorder %s65, 3
    %p448 = por %p446, %p447
    %p449 = scmp.ne.s32.totalorder %s441, %s444
    %p450 = scmp.eq.s32.totalorder %s65, 0
    %p451 = por %p449, %p450
    %p452 = scmp.ne.s32.totalorder %s441, %s444
    %p453 = scmp.eq.s32.totalorder %s70, 3
    %p454 = por %p452, %p453
    %p455 = scmp.ne.s32.totalorder %s444, %s445
    %p456 = scmp.eq.s32.totalorder %s70, 0
    %p457 = por %p455, %p456
    %p458 = scmp.ne.s32.totalorder %s444, %s445
    %p459 = scmp.eq.s32.totalorder %s71, 3
    %p460 = por %p458, %p459
    %p462 = scmp.ne.s32.totalorder %s445, %s461
    %p463 = scmp.eq.s32.totalorder %s71, 0
    %p464 = por %p462, %p463
    %s465 = ssub.s32 %s73, %s80
    %p466 = scmp.eq.s32.totalorder %s465, 0
    %s468 = sadd.s32 %s467, 1
    %s469 = scalar_select %p466, %s467, %s468
    %p472 = pneg %p466
    %p473 = scmp.eq.s32.totalorder %s65, 3
    %p474 = por %p472, %p473
    %p475 = scmp.ne.s32.totalorder %s467, %s470
    %p476 = scmp.eq.s32.totalorder %s65, 0
    %p477 = por %p475, %p476
    %p478 = scmp.ne.s32.totalorder %s467, %s470
    %p479 = scmp.eq.s32.totalorder %s70, 3
    %p480 = por %p478, %p479
    %p481 = scmp.ne.s32.totalorder %s470, %s471
    %p482 = scmp.eq.s32.totalorder %s70, 0
    %p483 = por %p481, %p482
    %p484 = scmp.ne.s32.totalorder %s470, %s471
    %p485 = scmp.eq.s32.totalorder %s71, 3
    %p486 = por %p484, %p485
    %p488 = scmp.ne.s32.totalorder %s471, %s487
    %p489 = scmp.eq.s32.totalorder %s71, 0
    %p490 = por %p488, %p489
    %s491 = ssub.s32 %s73, %s80
    %p492 = scmp.eq.s32.totalorder %s491, 0
    %s494 = sadd.s32 %s493, 1
    %s495 = scalar_select %p492, %s493, %s494
    %p498 = pneg %p492
    %p499 = scmp.eq.s32.totalorder %s65, 3
    %p500 = por %p498, %p499
    %p501 = scmp.ne.s32.totalorder %s493, %s496
    %p502 = scmp.eq.s32.totalorder %s65, 0
    %p503 = por %p501, %p502
    %p504 = scmp.ne.s32.totalorder %s493, %s496
    %p505 = scmp.eq.s32.totalorder %s70, 3
    %p506 = por %p504, %p505
    %p507 = scmp.ne.s32.totalorder %s496, %s497
    %p508 = scmp.eq.s32.totalorder %s70, 0
    %p509 = por %p507, %p508
    %p510 = scmp.ne.s32.totalorder %s496, %s497
    %p511 = scmp.eq.s32.totalorder %s71, 3
    %p512 = por %p510, %p511
    %p514 = scmp.ne.s32.totalorder %s497, %s513
    %p515 = scmp.eq.s32.totalorder %s71, 0
    %p516 = por %p514, %p515
    %s517 = ssub.s32 %s73, %s80
    %p518 = scmp.eq.s32.totalorder %s517, 0
    %s520 = sadd.s32 %s519, 1
    %s521 = scalar_select %p518, %s519, %s520
    %p524 = pneg %p518
    %p525 = scmp.eq.s32.totalorder %s65, 3
    %p526 = por %p524, %p525
    %p527 = scmp.ne.s32.totalorder %s519, %s522
    %p528 = scmp.eq.s32.totalorder %s65, 0
    %p529 = por %p527, %p528
    %p530 = scmp.ne.s32.totalorder %s519, %s522
    %p531 = scmp.eq.s32.totalorder %s70, 3
    %p532 = por %p530, %p531
    %p533 = scmp.ne.s32.totalorder %s522, %s523
    %p534 = scmp.eq.s32.totalorder %s70, 0
    %p535 = por %p533, %p534
    %p536 = scmp.ne.s32.totalorder %s522, %s523
    %p537 = scmp.eq.s32.totalorder %s71, 3
    %p538 = por %p536, %p537
    %p540 = scmp.ne.s32.totalorder %s523, %s539
    %p541 = scmp.eq.s32.totalorder %s71, 0
    %p542 = por %p540, %p541
    %s543 = ssub.s32 %s73, %s80
    %p544 = scmp.eq.s32.totalorder %s543, 0
    %s546 = sadd.s32 %s545, 1
    %s547 = scalar_select %p544, %s545, %s546
    %p550 = pneg %p544
    %p551 = scmp.eq.s32.totalorder %s65, 3
    %p552 = por %p550, %p551
    %p553 = scmp.ne.s32.totalorder %s545, %s548
    %p554 = scmp.eq.s32.totalorder %s65, 0
    %p555 = por %p553, %p554
    %p556 = scmp.ne.s32.totalorder %s545, %s548
    %p557 = scmp.eq.s32.totalorder %s70, 3
    %p558 = por %p556, %p557
    %p559 = scmp.ne.s32.totalorder %s548, %s549
    %p560 = scmp.eq.s32.totalorder %s70, 0
    %p561 = por %p559, %p560
    %p562 = scmp.ne.s32.totalorder %s548, %s549
    %p563 = scmp.eq.s32.totalorder %s71, 3
    %p564 = por %p562, %p563
    %p566 = scmp.ne.s32.totalorder %s549, %s565
    %p567 = scmp.eq.s32.totalorder %s71, 0
    %p568 = por %p566, %p567
    %s569 = ssub.s32 %s73, %s80
    %p570 = scmp.eq.s32.totalorder %s569, 0
    %s572 = sadd.s32 %s571, 1
    %s573 = scalar_select %p570, %s571, %s572
    %p576 = pneg %p570
    %p577 = scmp.eq.s32.totalorder %s65, 3
    %p578 = por %p576, %p577
    %p579 = scmp.ne.s32.totalorder %s571, %s574
    %p580 = scmp.eq.s32.totalorder %s65, 0
    %p581 = por %p579, %p580
    %p582 = scmp.ne.s32.totalorder %s571, %s574
    %p583 = scmp.eq.s32.totalorder %s70, 3
    %p584 = por %p582, %p583
    %p585 = scmp.ne.s32.totalorder %s574, %s575
    %p586 = scmp.eq.s32.totalorder %s70, 0
    %p587 = por %p585, %p586
    %p588 = scmp.ne.s32.totalorder %s574, %s575
    %p589 = scmp.eq.s32.totalorder %s71, 3
    %p590 = por %p588, %p589
    %p592 = scmp.ne.s32.totalorder %s575, %s591
    %p593 = scmp.eq.s32.totalorder %s71, 0
    %p594 = por %p592, %p593
    %s595 = ssub.s32 %s73, %s80
    %p596 = scmp.eq.s32.totalorder %s595, 0
    %s598 = sadd.s32 %s597, 1
    %s599 = scalar_select %p596, %s597, %s598
    %p602 = pneg %p596
    %p603 = scmp.eq.s32.totalorder %s65, 3
    %p604 = por %p602, %p603
    %p605 = scmp.ne.s32.totalorder %s597, %s600
    %p606 = scmp.eq.s32.totalorder %s65, 0
    %p607 = por %p605, %p606
    %p608 = scmp.ne.s32.totalorder %s597, %s600
    %p609 = scmp.eq.s32.totalorder %s70, 3
    %p610 = por %p608, %p609
    %p611 = scmp.ne.s32.totalorder %s600, %s601
    %p612 = scmp.eq.s32.totalorder %s70, 0
    %p613 = por %p611, %p612
    %p614 = scmp.ne.s32.totalorder %s600, %s601
    %p615 = scmp.eq.s32.totalorder %s71, 3
    %p616 = por %p614, %p615
    %p618 = scmp.ne.s32.totalorder %s601, %s617
    %p619 = scmp.eq.s32.totalorder %s71, 0
    %p620 = por %p618, %p619
    %s621 = ssub.s32 %s73, %s80
    %p622 = scmp.eq.s32.totalorder %s621, 0
    %s624 = sadd.s32 %s623, 1
    %s625 = scalar_select %p622, %s623, %s624
    %p628 = pneg %p622
    %p629 = scmp.eq.s32.totalorder %s65, 3
    %p630 = por %p628, %p629
    %p631 = scmp.ne.s32.totalorder %s623, %s626
    %p632 = scmp.eq.s32.totalorder %s65, 0
    %p633 = por %p631, %p632
    %p634 = scmp.ne.s32.totalorder %s623, %s626
    %p635 = scmp.eq.s32.totalorder %s70, 3
    %p636 = por %p634, %p635
    %p637 = scmp.ne.s32.totalorder %s626, %s627
    %p638 = scmp.eq.s32.totalorder %s70, 0
    %p639 = por %p637, %p638
    %p640 = scmp.ne.s32.totalorder %s626, %s627
    %p641 = scmp.eq.s32.totalorder %s71, 3
    %p642 = por %p640, %p641
    %p644 = scmp.ne.s32.totalorder %s627, %s643
    %p645 = scmp.eq.s32.totalorder %s71, 0
    %p646 = por %p644, %p645
    %s647 = ssub.s32 %s73, %s80
    %p648 = scmp.eq.s32.totalorder %s647, 0
    %s650 = sadd.s32 %s649, 1
    %s651 = scalar_select %p648, %s649, %s650
    %p654 = pneg %p648
    %p655 = scmp.eq.s32.totalorder %s65, 3
    %p656 = por %p654, %p655
    %p657 = scmp.ne.s32.totalorder %s649, %s652
    %p658 = scmp.eq.s32.totalorder %s65, 0
    %p659 = por %p657, %p658
    %p660 = scmp.ne.s32.totalorder %s649, %s652
    %p661 = scmp.eq.s32.totalorder %s70, 3
    %p662 = por %p660, %p661
    %p663 = scmp.ne.s32.totalorder %s652, %s653
    %p664 = scmp.eq.s32.totalorder %s70, 0
    %p665 = por %p663, %p664
    %p666 = scmp.ne.s32.totalorder %s652, %s653
    %p667 = scmp.eq.s32.totalorder %s71, 3
    %p668 = por %p666, %p667
    %p670 = scmp.ne.s32.totalorder %s653, %s669
    %p671 = scmp.eq.s32.totalorder %s71, 0
    %p672 = por %p670, %p671
    %s673 = ssub.s32 %s73, %s80
    %p674 = scmp.eq.s32.totalorder %s673, 0
    %s676 = sadd.s32 %s675, 1
    %s677 = scalar_select %p674, %s675, %s676
    %p680 = pneg %p674
    %p681 = scmp.eq.s32.totalorder %s65, 3
    %p682 = por %p680, %p681
    %p683 = scmp.ne.s32.totalorder %s675, %s678
    %p684 = scmp.eq.s32.totalorder %s65, 0
    %p685 = por %p683, %p684
    %p686 = scmp.ne.s32.totalorder %s675, %s678
    %p687 = scmp.eq.s32.totalorder %s70, 3
    %p688 = por %p686, %p687
    %p689 = scmp.ne.s32.totalorder %s678, %s679
    %p690 = scmp.eq.s32.totalorder %s70, 0
    %p691 = por %p689, %p690
    %p692 = scmp.ne.s32.totalorder %s678, %s679
    %p693 = scmp.eq.s32.totalorder %s71, 3
    %p694 = por %p692, %p693
    %p696 = scmp.ne.s32.totalorder %s679, %s695
    %p697 = scmp.eq.s32.totalorder %s71, 0
    %p698 = por %p696, %p697
    %s699 = ssub.s32 %s73, %s80
    %p700 = scmp.eq.s32.totalorder %s699, 0
    %s702 = sadd.s32 %s701, 1
    %s703 = scalar_select %p700, %s701, %s702
    %p706 = pneg %p700
    %p707 = scmp.eq.s32.totalorder %s65, 3
    %p708 = por %p706, %p707
    %p709 = scmp.ne.s32.totalorder %s701, %s704
    %p710 = scmp.eq.s32.totalorder %s65, 0
    %p711 = por %p709, %p710
    %p712 = scmp.ne.s32.totalorder %s701, %s704
    %p713 = scmp.eq.s32.totalorder %s70, 3
    %p714 = por %p712, %p713
    %p715 = scmp.ne.s32.totalorder %s704, %s705
    %p716 = scmp.eq.s32.totalorder %s70, 0
    %p717 = por %p715, %p716
    %p718 = scmp.ne.s32.totalorder %s704, %s705
    %p719 = scmp.eq.s32.totalorder %s71, 3
    %p720 = por %p718, %p719
    %p722 = scmp.ne.s32.totalorder %s705, %s721
    %p723 = scmp.eq.s32.totalorder %s71, 0
    %p724 = por %p722, %p723
    %s725 = ssub.s32 %s73, %s80
    %p726 = scmp.eq.s32.totalorder %s725, 0
    %s728 = sadd.s32 %s727, 1
    %s729 = scalar_select %p726, %s727, %s728
    %p732 = pneg %p726
    %p733 = scmp.eq.s32.totalorder %s65, 3
    %p734 = por %p732, %p733
    %p735 = scmp.ne.s32.totalorder %s727, %s730
    %p736 = scmp.eq.s32.totalorder %s65, 0
    %p737 = por %p735, %p736
    %p738 = scmp.ne.s32.totalorder %s727, %s730
    %p739 = scmp.eq.s32.totalorder %s70, 3
    %p740 = por %p738, %p739
    %p741 = scmp.ne.s32.totalorder %s730, %s731
    %p742 = scmp.eq.s32.totalorder %s70, 0
    %p743 = por %p741, %p742
    %p744 = scmp.ne.s32.totalorder %s730, %s731
    %p745 = scmp.eq.s32.totalorder %s71, 3
    %p746 = por %p744, %p745
    %p748 = scmp.ne.s32.totalorder %s731, %s747
    %p749 = scmp.eq.s32.totalorder %s71, 0
    %p750 = por %p748, %p749
    %s751 = ssub.s32 %s73, %s80
    %p752 = scmp.eq.s32.totalorder %s751, 0
    %s754 = sadd.s32 %s753, 1
    %s755 = scalar_select %p752, %s753, %s754
    %p758 = pneg %p752
    %p759 = scmp.eq.s32.totalorder %s65, 3
    %p760 = por %p758, %p759
    %p761 = scmp.ne.s32.totalorder %s753, %s756
    %p762 = scmp.eq.s32.totalorder %s65, 0
    %p763 = por %p761, %p762
    %p764 = scmp.ne.s32.totalorder %s753, %s756
    %p765 = scmp.eq.s32.totalorder %s70, 3
    %p766 = por %p764, %p765
    %p767 = scmp.ne.s32.totalorder %s756, %s757
    %p768 = scmp.eq.s32.totalorder %s70, 0
    %p769 = por %p767, %p768
    %p770 = scmp.ne.s32.totalorder %s756, %s757
    %p771 = scmp.eq.s32.totalorder %s71, 3
    %p772 = por %p770, %p771
    %p774 = scmp.ne.s32.totalorder %s757, %s773
    %p775 = scmp.eq.s32.totalorder %s71, 0
    %p776 = por %p774, %p775
    %s778 = sadd.s32 %s777, 1
    %p781 = scmp.eq.s32.totalorder %s65, 3
    %p782 = scmp.ne.s32.totalorder %s777, %s779
    %p783 = scmp.eq.s32.totalorder %s65, 0
    %p784 = por %p782, %p783
    %p785 = scmp.ne.s32.totalorder %s777, %s779
    %p786 = scmp.eq.s32.totalorder %s70, 3
    %p787 = por %p785, %p786
    %p788 = scmp.ne.s32.totalorder %s779, %s780
    %p789 = scmp.eq.s32.totalorder %s70, 0
    %p790 = por %p788, %p789
    %p791 = scmp.ne.s32.totalorder %s779, %s780
    %p792 = scmp.eq.s32.totalorder %s71, 3
    %p793 = por %p791, %p792
    %p795 = scmp.ne.s32.totalorder %s780, %s794
    %p796 = scmp.eq.s32.totalorder %s71, 0
    %p797 = por %p795, %p796
    %s799 = sadd.s32 %s798, 1
    %p802 = scmp.eq.s32.totalorder %s65, 3
    %p803 = scmp.ne.s32.totalorder %s798, %s800
    %p804 = scmp.eq.s32.totalorder %s65, 0
    %p805 = por %p803, %p804
    %p806 = scmp.ne.s32.totalorder %s798, %s800
    %p807 = scmp.eq.s32.totalorder %s70, 3
    %p808 = por %p806, %p807
    %p809 = scmp.ne.s32.totalorder %s800, %s801
    %p810 = scmp.eq.s32.totalorder %s70, 0
    %p811 = por %p809, %p810
    %p812 = scmp.ne.s32.totalorder %s800, %s801
    %p813 = scmp.eq.s32.totalorder %s71, 3
    %p814 = por %p812, %p813
    %p816 = scmp.ne.s32.totalorder %s801, %s815
    %p817 = scmp.eq.s32.totalorder %s71, 0
    %p818 = por %p816, %p817
    %s819 = ssub.s32 %s72, %s84
    %p820 = scmp.eq.s32.totalorder %s819, 0
    %s822 = sadd.s32 %s821, 1
    %s823 = scalar_select %p820, %s821, %s822
    %p826 = pneg %p820
    %p827 = scmp.eq.s32.totalorder %s65, 3
    %p828 = por %p826, %p827
    %p829 = scmp.ne.s32.totalorder %s821, %s824
    %p830 = scmp.eq.s32.totalorder %s65, 0
    %p831 = por %p829, %p830
    %p832 = scmp.ne.s32.totalorder %s821, %s824
    %p833 = scmp.eq.s32.totalorder %s70, 3
    %p834 = por %p832, %p833
    %p835 = scmp.ne.s32.totalorder %s824, %s825
    %p836 = scmp.eq.s32.totalorder %s70, 0
    %p837 = por %p835, %p836
    %p838 = scmp.ne.s32.totalorder %s824, %s825
    %p839 = scmp.eq.s32.totalorder %s71, 3
    %p840 = por %p838, %p839
    %p842 = scmp.ne.s32.totalorder %s825, %s841
    %p843 = scmp.eq.s32.totalorder %s71, 0
    %p844 = por %p842, %p843
    %p845 = scmp.le.s32.totalorder 1, %s65
    %p846 = scmp.lt.s32.totalorder %s65, 5
    %p847 = pnand %p845, %p846
    %p848 = pneg %p847
    // Predicated region
    $region9: #{double_sen_attn_transformer_decoder.1} parent=5 // pred_check
      _
    $region10: #{double_sen_attn_transformer_decoder.1} parent=5 // pred_check_branch
      %850 = sbr.rel (%p847) target = $region12
    $region11: #{double_sen_attn_transformer_decoder.1} parent=5 // pred_region
      %s851 = ssub.s32 %s65, 1
      // Predicated region
      $region13: #{double_sen_attn_transformer_decoder.1} parent=11 // pred_check
        %p852 = pneg %p176
      $region14: #{double_sen_attn_transformer_decoder.1} parent=11 // pred_check_branch
        %854 = sbr.rel (%p852) target = $region16
      $region15: #{double_sen_attn_transformer_decoder.1} parent=11 // pred_region
        _
      $region16: #{double_sen_attn_transformer_decoder.1} parent=11 // pred_fallthru
        _
      // Predicated region
      $region17: #{double_sen_attn_transformer_decoder.1} parent=11 // pred_check
        %p855 = pneg %p197
      $region18: #{double_sen_attn_transformer_decoder.1} parent=11 // pred_check_branch
        %857 = sbr.rel (%p855) target = $region20
      $region19: #{double_sen_attn_transformer_decoder.1} parent=11 // pred_region
        _
      $region20: #{double_sen_attn_transformer_decoder.1} parent=11 // pred_fallthru
        _
      // Predicated region
      $region21: #{double_sen_attn_transformer_decoder.1} parent=11 // pred_check
        %p858 = pneg %p790
      $region22: #{double_sen_attn_transformer_decoder.1} parent=11 // pred_check_branch
        %860 = sbr.rel (%p858) target = $region24
      $region23: #{double_sen_attn_transformer_decoder.1} parent=11 // pred_region
        _
      $region24: #{double_sen_attn_transformer_decoder.1} parent=11 // pred_fallthru
        _
      // Predicated region
      $region25: #{double_sen_attn_transformer_decoder.1} parent=11 // pred_check
        %p861 = pneg %p811
      $region26: #{double_sen_attn_transformer_decoder.1} parent=11 // pred_check_branch
        %863 = sbr.rel (%p861) target = $region28
      $region27: #{double_sen_attn_transformer_decoder.1} parent=11 // pred_region
        _
      $region28: #{double_sen_attn_transformer_decoder.1} parent=11 // pred_fallthru
        _
    $region12: #{double_sen_attn_transformer_decoder.1} parent=5 // pred_fallthru
      _
    %p864 = scmp.lt.s32.totalorder %s65, 4
    // Predicated region
    $region29: #{double_sen_attn_transformer_decoder.1} parent=5 // pred_check
      %p865 = pneg %p864
    $region30: #{double_sen_attn_transformer_decoder.1} parent=5 // pred_check_branch
      %867 = sbr.rel (%p865) target = $region32
    $region31: #{double_sen_attn_transformer_decoder.1} parent=5 // pred_region
      // Predicated region
      $region33: #{double_sen_attn_transformer_decoder.1} parent=31 // pred_check
        %p868 = pneg %p97
      $region34: #{double_sen_attn_transformer_decoder.1} parent=31 // pred_check_branch
        %870 = sbr.rel (%p868) target = $region36
      $region35: #{double_sen_attn_transformer_decoder.1} parent=31 // pred_region
        %p871 = scmp.lt.s32.totalorder %s72, 1
        %s872 = scalar_select %p871, %s72, 1
        %s873 = smul.addr %s872, 8
        %s874 = scalar_lea.vmem %s1, %s873
      $region36: #{double_sen_attn_transformer_decoder.1} parent=31 // pred_fallthru
        _
      // Predicated region
      $region37: #{double_sen_attn_transformer_decoder.1} parent=31 // pred_check
        %p875 = pneg %p123
      $region38: #{double_sen_attn_transformer_decoder.1} parent=31 // pred_check_branch
        %877 = sbr.rel (%p875) target = $region40
      $region39: #{double_sen_attn_transformer_decoder.1} parent=31 // pred_region
        %p878 = scmp.lt.s32.totalorder %s72, 1
        %s879 = scalar_select %p878, %s72, 1
        %s880 = smul.addr %s879, 2
        %s881 = smul.addr %s880, 8
        %s882 = scalar_lea.vmem %s3, %s881
      $region40: #{double_sen_attn_transformer_decoder.1} parent=31 // pred_fallthru
        _
      // Predicated region
      $region41: #{double_sen_attn_transformer_decoder.1} parent=31 // pred_check
        %p883 = pneg %p149
      $region42: #{double_sen_attn_transformer_decoder.1} parent=31 // pred_check_branch
        %885 = sbr.rel (%p883) target = $region44
      $region43: #{double_sen_attn_transformer_decoder.1} parent=31 // pred_region
        %p886 = scmp.lt.s32.totalorder %s72, 1
        %s887 = scalar_select %p886, %s72, 1
        %s888 = smul.addr %s887, 2
        %s889 = smul.addr %s888, 8
        %s890 = scalar_lea.vmem %s5, %s889
      $region44: #{double_sen_attn_transformer_decoder.1} parent=31 // pred_fallthru
        _
      // Predicated region
      $region45: #{double_sen_attn_transformer_decoder.1} parent=31 // pred_check
        %p891 = pneg %p217
      $region46: #{double_sen_attn_transformer_decoder.1} parent=31 // pred_check_branch
        %893 = sbr.rel (%p891) target = $region48
      $region47: #{double_sen_attn_transformer_decoder.1} parent=31 // pred_region
        %p894 = scmp.lt.s32.totalorder %s73, 1
        %s895 = scalar_select %p894, %s73, 1
        %s896 = smul.addr %s895, 4
        %s897 = smul.addr %s896, 4
        %s898 = scalar_lea.vmem %s11, %s897
      $region48: #{double_sen_attn_transformer_decoder.1} parent=31 // pred_fallthru
        _
      // Predicated region
      $region49: #{double_sen_attn_transformer_decoder.1} parent=31 // pred_check
        %p899 = pneg %p243
      $region50: #{double_sen_attn_transformer_decoder.1} parent=31 // pred_check_branch
        %901 = sbr.rel (%p899) target = $region52
      $region51: #{double_sen_attn_transformer_decoder.1} parent=31 // pred_region
        %p902 = scmp.lt.s32.totalorder %s73, 1
        %s903 = scalar_select %p902, %s73, 1
        %s904 = scalar_lea.vmem %s13, %s903
      $region52: #{double_sen_attn_transformer_decoder.1} parent=31 // pred_fallthru
        _
      // Predicated region
      $region53: #{double_sen_attn_transformer_decoder.1} parent=31 // pred_check
        %p905 = pneg %p269
      $region54: #{double_sen_attn_transformer_decoder.1} parent=31 // pred_check_branch
        %907 = sbr.rel (%p905) target = $region56
      $region55: #{double_sen_attn_transformer_decoder.1} parent=31 // pred_region
        %p908 = scmp.lt.s32.totalorder %s73, 1
        %s909 = scalar_select %p908, %s73, 1
        %s910 = smul.addr %s909, 4
        %s911 = smul.addr %s910, 4
        %s912 = scalar_lea.vmem %s15, %s911
      $region56: #{double_sen_attn_transformer_decoder.1} parent=31 // pred_fallthru
        _
      // Predicated region
      $region57: #{double_sen_attn_transformer_decoder.1} parent=31 // pred_check
        %p913 = pneg %p295
      $region58: #{double_sen_attn_transformer_decoder.1} parent=31 // pred_check_branch
        %915 = sbr.rel (%p913) target = $region60
      $region59: #{double_sen_attn_transformer_decoder.1} parent=31 // pred_region
        %p916 = scmp.lt.s32.totalorder %s73, 1
        %s917 = scalar_select %p916, %s73, 1
        %s918 = scalar_lea.vmem %s17, %s917
      $region60: #{double_sen_attn_transformer_decoder.1} parent=31 // pred_fallthru
        _
      // Predicated region
      $region61: #{double_sen_attn_transformer_decoder.1} parent=31 // pred_check
        %p919 = pneg %p321
      $region62: #{double_sen_attn_transformer_decoder.1} parent=31 // pred_check_branch
        %921 = sbr.rel (%p919) target = $region64
      $region63: #{double_sen_attn_transformer_decoder.1} parent=31 // pred_region
        %p922 = scmp.lt.s32.totalorder %s73, 1
        %s923 = scalar_select %p922, %s73, 1
        %s924 = smul.addr %s923, 4
        %s925 = smul.addr %s924, 4
        %s926 = scalar_lea.vmem %s19, %s925
      $region64: #{double_sen_attn_transformer_decoder.1} parent=31 // pred_fallthru
        _
      // Predicated region
      $region65: #{double_sen_attn_transformer_decoder.1} parent=31 // pred_check
        %p927 = pneg %p347
      $region66: #{double_sen_attn_transformer_decoder.1} parent=31 // pred_check_branch
        %929 = sbr.rel (%p927) target = $region68
      $region67: #{double_sen_attn_transformer_decoder.1} parent=31 // pred_region
        %p930 = scmp.lt.s32.totalorder %s73, 1
        %s931 = scalar_select %p930, %s73, 1
        %s932 = scalar_lea.vmem %s21, %s931
      $region68: #{double_sen_attn_transformer_decoder.1} parent=31 // pred_fallthru
        _
      // Predicated region
      $region69: #{double_sen_attn_transformer_decoder.1} parent=31 // pred_check
        %p933 = pneg %p373
      $region70: #{double_sen_attn_transformer_decoder.1} parent=31 // pred_check_branch
        %935 = sbr.rel (%p933) target = $region72
      $region71: #{double_sen_attn_transformer_decoder.1} parent=31 // pred_region
        %p936 = scmp.lt.s32.totalorder %s73, 1
        %s937 = scalar_select %p936, %s73, 1
        %s938 = smul.addr %s937, 4
        %s939 = smul.addr %s938, 4
        %s940 = scalar_lea.vmem %s23, %s939
      $region72: #{double_sen_attn_transformer_decoder.1} parent=31 // pred_fallthru
        _
      // Predicated region
      $region73: #{double_sen_attn_transformer_decoder.1} parent=31 // pred_check
        %p941 = pneg %p399
      $region74: #{double_sen_attn_transformer_decoder.1} parent=31 // pred_check_branch
        %943 = sbr.rel (%p941) target = $region76
      $region75: #{double_sen_attn_transformer_decoder.1} parent=31 // pred_region
        %p944 = scmp.lt.s32.totalorder %s73, 1
        %s945 = scalar_select %p944, %s73, 1
        %s946 = scalar_lea.vmem %s25, %s945
      $region76: #{double_sen_attn_transformer_decoder.1} parent=31 // pred_fallthru
        _
      // Predicated region
      $region77: #{double_sen_attn_transformer_decoder.1} parent=31 // pred_check
        %p947 = pneg %p425
      $region78: #{double_sen_attn_transformer_decoder.1} parent=31 // pred_check_branch
        %949 = sbr.rel (%p947) target = $region80
      $region79: #{double_sen_attn_transformer_decoder.1} parent=31 // pred_region
        %p950 = scmp.lt.s32.totalorder %s73, 1
        %s951 = scalar_select %p950, %s73, 1
        %s952 = smul.addr %s951, 4
        %s953 = smul.addr %s952, 4
        %s954 = scalar_lea.vmem %s27, %s953
      $region80: #{double_sen_attn_transformer_decoder.1} parent=31 // pred_fallthru
        _
      // Predicated region
      $region81: #{double_sen_attn_transformer_decoder.1} parent=31 // pred_check
        %p955 = pneg %p451
      $region82: #{double_sen_attn_transformer_decoder.1} parent=31 // pred_check_branch
        %957 = sbr.rel (%p955) target = $region84
      $region83: #{double_sen_attn_transformer_decoder.1} parent=31 // pred_region
        %p958 = scmp.lt.s32.totalorder %s73, 1
        %s959 = scalar_select %p958, %s73, 1
        %s960 = scalar_lea.vmem %s29, %s959
      $region84: #{double_sen_attn_transformer_decoder.1} parent=31 // pred_fallthru
        _
      // Predicated region
      $region85: #{double_sen_attn_transformer_decoder.1} parent=31 // pred_check
        %p961 = pneg %p477
      $region86: #{double_sen_attn_transformer_decoder.1} parent=31 // pred_check_branch
        %963 = sbr.rel (%p961) target = $region88
      $region87: #{double_sen_attn_transformer_decoder.1} parent=31 // pred_region
        %p964 = scmp.lt.s32.totalorder %s73, 1
        %s965 = scalar_select %p964, %s73, 1
        %s966 = smul.addr %s965, 4
        %s967 = smul.addr %s966, 4
        %s968 = scalar_lea.vmem %s31, %s967
      $region88: #{double_sen_attn_transformer_decoder.1} parent=31 // pred_fallthru
        _
      // Predicated region
      $region89: #{double_sen_attn_transformer_decoder.1} parent=31 // pred_check
        %p969 = pneg %p503
      $region90: #{double_sen_attn_transformer_decoder.1} parent=31 // pred_check_branch
        %971 = sbr.rel (%p969) target = $region92
      $region91: #{double_sen_attn_transformer_decoder.1} parent=31 // pred_region
        %p972 = scmp.lt.s32.totalorder %s73, 1
        %s973 = scalar_select %p972, %s73, 1
        %s974 = scalar_lea.vmem %s33, %s973
      $region92: #{double_sen_attn_transformer_decoder.1} parent=31 // pred_fallthru
        _
      // Predicated region
      $region93: #{double_sen_attn_transformer_decoder.1} parent=31 // pred_check
        %p975 = pneg %p529
      $region94: #{double_sen_attn_transformer_decoder.1} parent=31 // pred_check_branch
        %977 = sbr.rel (%p975) target = $region96
      $region95: #{double_sen_attn_transformer_decoder.1} parent=31 // pred_region
        %p978 = scmp.lt.s32.totalorder %s73, 1
        %s979 = scalar_select %p978, %s73, 1
        %s980 = smul.addr %s979, 4
        %s981 = smul.addr %s980, 4
        %s982 = scalar_lea.vmem %s35, %s981
      $region96: #{double_sen_attn_transformer_decoder.1} parent=31 // pred_fallthru
        _
      // Predicated region
      $region97: #{double_sen_attn_transformer_decoder.1} parent=31 // pred_check
        %p983 = pneg %p555
      $region98: #{double_sen_attn_transformer_decoder.1} parent=31 // pred_check_branch
        %985 = sbr.rel (%p983) target = $region100
      $region99: #{double_sen_attn_transformer_decoder.1} parent=31 // pred_region
        %p986 = scmp.lt.s32.totalorder %s73, 1
        %s987 = scalar_select %p986, %s73, 1
        %s988 = scalar_lea.vmem %s37, %s987
      $region100: #{double_sen_attn_transformer_decoder.1} parent=31 // pred_fallthru
        _
      // Predicated region
      $region101: #{double_sen_attn_transformer_decoder.1} parent=31 // pred_check
        %p989 = pneg %p581
      $region102: #{double_sen_attn_transformer_decoder.1} parent=31 // pred_check_branch
        %991 = sbr.rel (%p989) target = $region104
      $region103: #{double_sen_attn_transformer_decoder.1} parent=31 // pred_region
        %p992 = scmp.lt.s32.totalorder %s73, 1
        %s993 = scalar_select %p992, %s73, 1
        %s994 = smul.addr %s993, 4
        %s995 = smul.addr %s994, 4
        %s996 = scalar_lea.vmem %s39, %s995
      $region104: #{double_sen_attn_transformer_decoder.1} parent=31 // pred_fallthru
        _
      // Predicated region
      $region105: #{double_sen_attn_transformer_decoder.1} parent=31 // pred_check
        %p997 = pneg %p607
      $region106: #{double_sen_attn_transformer_decoder.1} parent=31 // pred_check_branch
        %999 = sbr.rel (%p997) target = $region108
      $region107: #{double_sen_attn_transformer_decoder.1} parent=31 // pred_region
        %p1000 = scmp.lt.s32.totalorder %s73, 1
        %s1001 = scalar_select %p1000, %s73, 1
        %s1002 = scalar_lea.vmem %s41, %s1001
      $region108: #{double_sen_attn_transformer_decoder.1} parent=31 // pred_fallthru
        _
      // Predicated region
      $region109: #{double_sen_attn_transformer_decoder.1} parent=31 // pred_check
        %p1003 = pneg %p633
      $region110: #{double_sen_attn_transformer_decoder.1} parent=31 // pred_check_branch
        %1005 = sbr.rel (%p1003) target = $region112
      $region111: #{double_sen_attn_transformer_decoder.1} parent=31 // pred_region
        %p1006 = scmp.lt.s32.totalorder %s73, 1
        %s1007 = scalar_select %p1006, %s73, 1
        %s1008 = smul.addr %s1007, 4
        %s1009 = smul.addr %s1008, 4
        %s1010 = scalar_lea.vmem %s43, %s1009
      $region112: #{double_sen_attn_transformer_decoder.1} parent=31 // pred_fallthru
        _
      // Predicated region
      $region113: #{double_sen_attn_transformer_decoder.1} parent=31 // pred_check
        %p1011 = pneg %p659
      $region114: #{double_sen_attn_transformer_decoder.1} parent=31 // pred_check_branch
        %1013 = sbr.rel (%p1011) target = $region116
      $region115: #{double_sen_attn_transformer_decoder.1} parent=31 // pred_region
        %p1014 = scmp.lt.s32.totalorder %s73, 1
        %s1015 = scalar_select %p1014, %s73, 1
        %s1016 = scalar_lea.vmem %s45, %s1015
      $region116: #{double_sen_attn_transformer_decoder.1} parent=31 // pred_fallthru
        _
      // Predicated region
      $region117: #{double_sen_attn_transformer_decoder.1} parent=31 // pred_check
        %p1017 = pneg %p685
      $region118: #{double_sen_attn_transformer_decoder.1} parent=31 // pred_check_branch
        %1019 = sbr.rel (%p1017) target = $region120
      $region119: #{double_sen_attn_transformer_decoder.1} parent=31 // pred_region
        %p1020 = scmp.lt.s32.totalorder %s73, 1
        %s1021 = scalar_select %p1020, %s73, 1
        %s1022 = smul.addr %s1021, 8
        %s1023 = smul.addr %s1022, 4
        %s1024 = scalar_lea.vmem %s47, %s1023
      $region120: #{double_sen_attn_transformer_decoder.1} parent=31 // pred_fallthru
        _
      // Predicated region
      $region121: #{double_sen_attn_transformer_decoder.1} parent=31 // pred_check
        %p1025 = pneg %p711
      $region122: #{double_sen_attn_transformer_decoder.1} parent=31 // pred_check_branch
        %1027 = sbr.rel (%p1025) target = $region124
      $region123: #{double_sen_attn_transformer_decoder.1} parent=31 // pred_region
        %p1028 = scmp.lt.s32.totalorder %s73, 1
        %s1029 = scalar_select %p1028, %s73, 1
        %s1030 = scalar_lea.vmem %s49, %s1029
      $region124: #{double_sen_attn_transformer_decoder.1} parent=31 // pred_fallthru
        _
      // Predicated region
      $region125: #{double_sen_attn_transformer_decoder.1} parent=31 // pred_check
        %p1031 = pneg %p737
      $region126: #{double_sen_attn_transformer_decoder.1} parent=31 // pred_check_branch
        %1033 = sbr.rel (%p1031) target = $region128
      $region127: #{double_sen_attn_transformer_decoder.1} parent=31 // pred_region
        %p1034 = scmp.lt.s32.totalorder %s73, 1
        %s1035 = scalar_select %p1034, %s73, 1
        %s1036 = smul.addr %s1035, 4
        %s1037 = scalar_lea.vmem %s51, %s1036
      $region128: #{double_sen_attn_transformer_decoder.1} parent=31 // pred_fallthru
        _
      // Predicated region
      $region129: #{double_sen_attn_transformer_decoder.1} parent=31 // pred_check
        %p1038 = pneg %p763
      $region130: #{double_sen_attn_transformer_decoder.1} parent=31 // pred_check_branch
        %1040 = sbr.rel (%p1038) target = $region132
      $region131: #{double_sen_attn_transformer_decoder.1} parent=31 // pred_region
        %p1041 = scmp.lt.s32.totalorder %s73, 1
        %s1042 = scalar_select %p1041, %s73, 1
        %s1043 = smul.addr %s1042, 4
        %s1044 = scalar_lea.vmem %s53, %s1043
      $region132: #{double_sen_attn_transformer_decoder.1} parent=31 // pred_fallthru
        _
    $region32: #{double_sen_attn_transformer_decoder.1} parent=5 // pred_fallthru
      _
    %p1045 = scmp.le.s32.totalorder 1, %s65
    %p1046 = scmp.lt.s32.totalorder %s65, 5
    %p1047 = pnand %p1045, %p1046
    %p1048 = pneg %p1047
    // Predicated region
    $region133: #{double_sen_attn_transformer_decoder.1} parent=5 // pred_check
      _
    $region134: #{double_sen_attn_transformer_decoder.1} parent=5 // pred_check_branch
      %1050 = sbr.rel (%p1047) target = $region136
    $region135: #{double_sen_attn_transformer_decoder.1} parent=5 // pred_region
      %s1051 = ssub.s32 %s65, 1
      %p1052 = scmp.lt.s32.totalorder %s74, 1
      %s1053 = scalar_select %p1052, %s74, 1
      %s1054 = smul.addr %s1053, 8
      %s1055 = scalar_lea.vmem %s1, %s1054
      %p1056 = pneg %p103
      %p1057 = pneg %p100
      %p1058 = scmp.lt.s32.totalorder %s74, 1
      %s1059 = scalar_select %p1058, %s74, 1
      %s1060 = smul.addr %s1059, 2
      %s1061 = smul.addr %s1060, 8
      %s1062 = scalar_lea.vmem %s3, %s1061
      %p1063 = pneg %p129
      %p1064 = pneg %p126
      %p1065 = scmp.lt.s32.totalorder %s74, 1
      %s1066 = scalar_select %p1065, %s74, 1
      %s1067 = smul.addr %s1066, 2
      %s1068 = smul.addr %s1067, 8
      %s1069 = scalar_lea.vmem %s5, %s1068
      %p1070 = pneg %p155
      %p1071 = pneg %p152
      %p1072 = pneg %p176
      %p1073 = pneg %p173
      %p1074 = pneg %p197
      %p1075 = pneg %p194
      %p1076 = scmp.lt.s32.totalorder %s75, 1
      %s1077 = scalar_select %p1076, %s75, 1
      %s1078 = smul.addr %s1077, 4
      %s1079 = smul.addr %s1078, 4
      %s1080 = scalar_lea.vmem %s11, %s1079
      %p1081 = pneg %p223
      %p1082 = pneg %p220
      %p1083 = scmp.lt.s32.totalorder %s75, 1
      %s1084 = scalar_select %p1083, %s75, 1
      %s1085 = scalar_lea.vmem %s13, %s1084
      %p1086 = pneg %p249
      %p1087 = pneg %p246
      %p1088 = scmp.lt.s32.totalorder %s75, 1
      %s1089 = scalar_select %p1088, %s75, 1
      %s1090 = smul.addr %s1089, 4
      %s1091 = smul.addr %s1090, 4
      %s1092 = scalar_lea.vmem %s15, %s1091
      %p1093 = pneg %p275
      %p1094 = pneg %p272
      %p1095 = scmp.lt.s32.totalorder %s75, 1
      %s1096 = scalar_select %p1095, %s75, 1
      %s1097 = scalar_lea.vmem %s17, %s1096
      %p1098 = pneg %p301
      %p1099 = pneg %p298
      %p1100 = scmp.lt.s32.totalorder %s75, 1
      %s1101 = scalar_select %p1100, %s75, 1
      %s1102 = smul.addr %s1101, 4
      %s1103 = smul.addr %s1102, 4
      %s1104 = scalar_lea.vmem %s19, %s1103
      %p1105 = pneg %p327
      %p1106 = pneg %p324
      %p1107 = scmp.lt.s32.totalorder %s75, 1
      %s1108 = scalar_select %p1107, %s75, 1
      %s1109 = scalar_lea.vmem %s21, %s1108
      %p1110 = pneg %p353
      %p1111 = pneg %p350
      %p1112 = scmp.lt.s32.totalorder %s75, 1
      %s1113 = scalar_select %p1112, %s75, 1
      %s1114 = smul.addr %s1113, 4
      %s1115 = smul.addr %s1114, 4
      %s1116 = scalar_lea.vmem %s23, %s1115
      %p1117 = pneg %p379
      %p1118 = pneg %p376
      %p1119 = scmp.lt.s32.totalorder %s75, 1
      %s1120 = scalar_select %p1119, %s75, 1
      %s1121 = scalar_lea.vmem %s25, %s1120
      %p1122 = pneg %p405
      %p1123 = pneg %p402
      %p1124 = scmp.lt.s32.totalorder %s75, 1
      %s1125 = scalar_select %p1124, %s75, 1
      %s1126 = smul.addr %s1125, 4
      %s1127 = smul.addr %s1126, 4
      %s1128 = scalar_lea.vmem %s27, %s1127
      %p1129 = pneg %p431
      %p1130 = pneg %p428
      %p1131 = scmp.lt.s32.totalorder %s75, 1
      %s1132 = scalar_select %p1131, %s75, 1
      %s1133 = scalar_lea.vmem %s29, %s1132
      %p1134 = pneg %p457
      %p1135 = pneg %p454
      %p1136 = scmp.lt.s32.totalorder %s75, 1
      %s1137 = scalar_select %p1136, %s75, 1
      %s1138 = smul.addr %s1137, 4
      %s1139 = smul.addr %s1138, 4
      %s1140 = scalar_lea.vmem %s31, %s1139
      %p1141 = pneg %p483
      %p1142 = pneg %p480
      %p1143 = scmp.lt.s32.totalorder %s75, 1
      %s1144 = scalar_select %p1143, %s75, 1
      %s1145 = scalar_lea.vmem %s33, %s1144
      %p1146 = pneg %p509
      %p1147 = pneg %p506
      %p1148 = scmp.lt.s32.totalorder %s75, 1
      %s1149 = scalar_select %p1148, %s75, 1
      %s1150 = smul.addr %s1149, 4
      %s1151 = smul.addr %s1150, 4
      %s1152 = scalar_lea.vmem %s35, %s1151
      %p1153 = pneg %p535
      %p1154 = pneg %p532
      %p1155 = scmp.lt.s32.totalorder %s75, 1
      %s1156 = scalar_select %p1155, %s75, 1
      %s1157 = scalar_lea.vmem %s37, %s1156
      %p1158 = pneg %p561
      %p1159 = pneg %p558
      %p1160 = scmp.lt.s32.totalorder %s75, 1
      %s1161 = scalar_select %p1160, %s75, 1
      %s1162 = smul.addr %s1161, 4
      %s1163 = smul.addr %s1162, 4
      %s1164 = scalar_lea.vmem %s39, %s1163
      %p1165 = pneg %p587
      %p1166 = pneg %p584
      %p1167 = scmp.lt.s32.totalorder %s75, 1
      %s1168 = scalar_select %p1167, %s75, 1
      %s1169 = scalar_lea.vmem %s41, %s1168
      %p1170 = pneg %p613
      %p1171 = pneg %p610
      %p1172 = scmp.lt.s32.totalorder %s75, 1
      %s1173 = scalar_select %p1172, %s75, 1
      %s1174 = smul.addr %s1173, 4
      %s1175 = smul.addr %s1174, 4
      %s1176 = scalar_lea.vmem %s43, %s1175
      %p1177 = pneg %p639
      %p1178 = pneg %p636
      %p1179 = scmp.lt.s32.totalorder %s75, 1
      %s1180 = scalar_select %p1179, %s75, 1
      %s1181 = scalar_lea.vmem %s45, %s1180
      %p1182 = pneg %p665
      %p1183 = pneg %p662
      %p1184 = scmp.lt.s32.totalorder %s75, 1
      %s1185 = scalar_select %p1184, %s75, 1
      %s1186 = smul.addr %s1185, 8
      %s1187 = smul.addr %s1186, 4
      %s1188 = scalar_lea.vmem %s47, %s1187
      %p1189 = pneg %p691
      %p1190 = pneg %p688
      %p1191 = scmp.lt.s32.totalorder %s75, 1
      %s1192 = scalar_select %p1191, %s75, 1
      %s1193 = scalar_lea.vmem %s49, %s1192
      %p1194 = pneg %p717
      %p1195 = pneg %p714
      %p1196 = scmp.lt.s32.totalorder %s75, 1
      %s1197 = scalar_select %p1196, %s75, 1
      %s1198 = smul.addr %s1197, 4
      %s1199 = scalar_lea.vmem %s51, %s1198
      %p1200 = pneg %p743
      %p1201 = pneg %p740
      %p1202 = scmp.lt.s32.totalorder %s75, 1
      %s1203 = scalar_select %p1202, %s75, 1
      %s1204 = smul.addr %s1203, 4
      %s1205 = scalar_lea.vmem %s53, %s1204
      %p1206 = pneg %p769
      %p1207 = pneg %p766
      %p1208 = pneg %p790
      %p1209 = pneg %p787
      %p1210 = pneg %p811
      %p1211 = pneg %p808
      %p1212 = pneg %p837
      %p1213 = pneg %p834
      %p1214 = scmp.lt.s32.totalorder %s74, 1
      %s1215 = scalar_select %p1214, %s74, 1
      %s1216 = smul.addr %s1215, 8
      %s1217 = scalar_lea.vmem %s59, %s1216
      %p1218 = scmp.lt.s32.totalorder %s74, 1
      %s1219 = scalar_select %p1218, %s74, 1
      %s1220 = smul.addr %s1219, 8
      %s1221 = scalar_lea.vmem %s1, %s1220
      %p1222 = scmp.lt.s32.totalorder %s74, 1
      %s1223 = scalar_select %p1222, %s74, 1
      %s1224 = smul.addr %s1223, 2
      %s1225 = smul.addr %s1224, 8
      %s1226 = scalar_lea.vmem %s3, %s1225
      %p1227 = scmp.lt.s32.totalorder %s74, 1
      %s1228 = scalar_select %p1227, %s74, 1
      %s1229 = smul.addr %s1228, 2
      %s1230 = smul.addr %s1229, 8
      %s1231 = scalar_lea.vmem %s5, %s1230
      %p1232 = scmp.lt.s32.totalorder %s75, 1
      %s1233 = scalar_select %p1232, %s75, 1
      %s1234 = smul.addr %s1233, 4
      %s1235 = smul.addr %s1234, 4
      %s1236 = scalar_lea.vmem %s11, %s1235
      %p1237 = scmp.lt.s32.totalorder %s75, 1
      %s1238 = scalar_select %p1237, %s75, 1
      %s1239 = scalar_lea.vmem %s13, %s1238
      %p1240 = scmp.lt.s32.totalorder %s75, 1
      %s1241 = scalar_select %p1240, %s75, 1
      %s1242 = smul.addr %s1241, 4
      %s1243 = smul.addr %s1242, 4
      %s1244 = scalar_lea.vmem %s15, %s1243
      %p1245 = scmp.lt.s32.totalorder %s75, 1
      %s1246 = scalar_select %p1245, %s75, 1
      %s1247 = scalar_lea.vmem %s17, %s1246
      %p1248 = scmp.lt.s32.totalorder %s75, 1
      %s1249 = scalar_select %p1248, %s75, 1
      %s1250 = smul.addr %s1249, 4
      %s1251 = smul.addr %s1250, 4
      %s1252 = scalar_lea.vmem %s19, %s1251
      %p1253 = scmp.lt.s32.totalorder %s75, 1
      %s1254 = scalar_select %p1253, %s75, 1
      %s1255 = scalar_lea.vmem %s21, %s1254
      %p1256 = scmp.lt.s32.totalorder %s75, 1
      %s1257 = scalar_select %p1256, %s75, 1
      %s1258 = smul.addr %s1257, 4
      %s1259 = smul.addr %s1258, 4
      %s1260 = scalar_lea.vmem %s23, %s1259
      %p1261 = scmp.lt.s32.totalorder %s75, 1
      %s1262 = scalar_select %p1261, %s75, 1
      %s1263 = scalar_lea.vmem %s25, %s1262
      %p1264 = scmp.lt.s32.totalorder %s75, 1
      %s1265 = scalar_select %p1264, %s75, 1
      %s1266 = smul.addr %s1265, 4
      %s1267 = smul.addr %s1266, 4
      %s1268 = scalar_lea.vmem %s27, %s1267
      %p1269 = scmp.lt.s32.totalorder %s75, 1
      %s1270 = scalar_select %p1269, %s75, 1
      %s1271 = scalar_lea.vmem %s29, %s1270
      %p1272 = scmp.lt.s32.totalorder %s75, 1
      %s1273 = scalar_select %p1272, %s75, 1
      %s1274 = smul.addr %s1273, 4
      %s1275 = smul.addr %s1274, 4
      %s1276 = scalar_lea.vmem %s31, %s1275
      %p1277 = scmp.lt.s32.totalorder %s75, 1
      %s1278 = scalar_select %p1277, %s75, 1
      %s1279 = scalar_lea.vmem %s33, %s1278
      %p1280 = scmp.lt.s32.totalorder %s75, 1
      %s1281 = scalar_select %p1280, %s75, 1
      %s1282 = smul.addr %s1281, 4
      %s1283 = smul.addr %s1282, 4
      %s1284 = scalar_lea.vmem %s35, %s1283
      %p1285 = scmp.lt.s32.totalorder %s75, 1
      %s1286 = scalar_select %p1285, %s75, 1
      %s1287 = scalar_lea.vmem %s37, %s1286
      %p1288 = scmp.lt.s32.totalorder %s75, 1
      %s1289 = scalar_select %p1288, %s75, 1
      %s1290 = smul.addr %s1289, 4
      %s1291 = smul.addr %s1290, 4
      %s1292 = scalar_lea.vmem %s39, %s1291
      %p1293 = scmp.lt.s32.totalorder %s75, 1
      %s1294 = scalar_select %p1293, %s75, 1
      %s1295 = scalar_lea.vmem %s41, %s1294
      %p1296 = scmp.lt.s32.totalorder %s75, 1
      %s1297 = scalar_select %p1296, %s75, 1
      %s1298 = smul.addr %s1297, 4
      %s1299 = smul.addr %s1298, 4
      %s1300 = scalar_lea.vmem %s43, %s1299
      %p1301 = scmp.lt.s32.totalorder %s75, 1
      %s1302 = scalar_select %p1301, %s75, 1
      %s1303 = scalar_lea.vmem %s45, %s1302
      %p1304 = scmp.lt.s32.totalorder %s75, 1
      %s1305 = scalar_select %p1304, %s75, 1
      %s1306 = smul.addr %s1305, 8
      %s1307 = smul.addr %s1306, 4
      %s1308 = scalar_lea.vmem %s47, %s1307
      %p1309 = scmp.lt.s32.totalorder %s75, 1
      %s1310 = scalar_select %p1309, %s75, 1
      %s1311 = scalar_lea.vmem %s49, %s1310
      %p1312 = scmp.lt.s32.totalorder %s75, 1
      %s1313 = scalar_select %p1312, %s75, 1
      %s1314 = smul.addr %s1313, 4
      %s1315 = scalar_lea.vmem %s51, %s1314
      %p1316 = scmp.lt.s32.totalorder %s75, 1
      %s1317 = scalar_select %p1316, %s75, 1
      %s1318 = smul.addr %s1317, 4
      %s1319 = scalar_lea.vmem %s53, %s1318
      %p1320 = scmp.lt.s32.totalorder %s74, 1
      %s1321 = scalar_select %p1320, %s74, 1
      %s1322 = smul.addr %s1321, 8
      %s1323 = scalar_lea.vmem %s59, %s1322
      %p1325 = scmp.eq.s32.totalorder %s75, 0
      // Predicated region
      $region137: #{double_sen_attn_transformer_decoder.1} parent=135 // pred_check
        %p1326 = pneg %p1325
      $region138: #{double_sen_attn_transformer_decoder.1} parent=135 // pred_check_branch
        %1328 = sbr.rel (%p1326) target = $region140
      $region139: #{double_sen_attn_transformer_decoder.1} parent=135 // pred_region
        %v1329 = vld [vmem:[%s1221] sm:$0xff]
        %vm1330 = vcmask 261120
        %1331 = vst.msk [vmem:[#allocation2] sm:$0xff] %vm1330, %v1329
      $region140: #{double_sen_attn_transformer_decoder.1} parent=135 // pred_fallthru
        _
      %v1332 = vld [vmem:[#allocation2] sm:$0xff]
      %v1333 = vld [vmem:[%s1226] sm:$0xff]
      %v1334 = vld [vmem:[%s1226 + $0x8] sm:$0xff]
      %v1335 = vld [vmem:[%s1231] sm:$0xff]
      %v1336 = vld [vmem:[%s1231 + $0x8] sm:$0xff]
      %v1337 = vld [vmem:[%s7] sm:$0xff]
      %v1338 = vld [vmem:[%s9] sm:$0x1]
      %v1339 = vld [vmem:[%s1315] sm:$0x1]
      %v1340 = vld [vmem:[%s1315 + $0x1] sm:$0x1]
      %v1341 = vld [vmem:[%s1315 + $0x2] sm:$0x1]
      %v1342 = vld [vmem:[%s1315 + $0x3] sm:$0x1]
      %v1343 = vld [vmem:[%s1319] sm:$0x1]
      %v1344 = vld [vmem:[%s1319 + $0x1] sm:$0x1]
      %v1345 = vld [vmem:[%s1319 + $0x2] sm:$0x1]
      %v1346 = vld [vmem:[%s1319 + $0x3] sm:$0x1]
      %v1347 = vld [vmem:[%s1236] sm:$0xf]
      %v1348 = vld [vmem:[%s1236 + $0x4] sm:$0xf]
      %v1349 = vld [vmem:[%s1236 + $0x8] sm:$0xf]
      %v1350 = vld [vmem:[%s1236 + $0xc] sm:$0xf]
      %v1351 = vpack.c.bf16 %v1332, %v1332
      %v1352 = vld [vmem:[%s1239] sm:$0x1]
      %v1354 = vlaneseq
      %v1355 = vshrl.u32 %v1354, 7
      %v1356 = vsub.s32 0, %v1355
      %v1357 = vrot.slane %v1352, %v1356
      %v1363 = vunpack.c.l.b16 %v1347
      %v1364 = vunpack.c.l.b16 %v1348
      %v1365 = vunpack.c.l.b16 %v1349
      %v1366 = vunpack.c.l.b16 %v1350
      %v1367 = vpack.c.b16 %v1364, %v1363
      %v1368 = vpack.c.b16 %v1366, %v1365
      %vm1371 = vcmask 261120
      %v1373 = vsel %vm1371, %v1351, 0
      %1375 = vmatprep.subr.bf16.mxu0 0
      %1376 = vmatpush1.bf16.msra.mxu0 %v1367
      %1377 = vmatprep.subr.bf16.mxu0 0
      %1378 = vmatpush1.bf16.msra.mxu0 %v1368
      %1379 = vmatprep.subr.bf16.mxu0 0
      %1380 = vmatpush1.bf16.msra.mxu0 0
      %1381 = vmatprep.subr.bf16.mxu0 0
      %1382 = vmatpush1.bf16.msra.mxu0 0
      %1383 = vmatprep.subr.bf16.mxu0 0
      %1384 = vmatpush1.bf16.msra.mxu0 0
      %1385 = vmatprep.subr.bf16.mxu0 0
      %1386 = vmatpush1.bf16.msra.mxu0 0
      %1387 = vmatprep.subr.bf16.mxu0 0
      %1388 = vmatpush1.bf16.msra.mxu0 0
      %1389 = vmatprep.subr.bf16.mxu0 0
      %1390 = vmatpush1.bf16.msra.mxu0 0
      %1391 = vmatprep.subr.bf16.mxu0 0
      %1392 = vmatpush1.bf16.msra.mxu0 0
      %1393 = vmatprep.subr.bf16.mxu0 0
      %1394 = vmatpush1.bf16.msra.mxu0 0
      %1395 = vmatprep.subr.bf16.mxu0 0
      %1396 = vmatpush1.bf16.msra.mxu0 0
      %1397 = vmatprep.subr.bf16.mxu0 0
      %1398 = vmatpush1.bf16.msra.mxu0 0
      %1399 = vmatprep.subr.bf16.mxu0 0
      %1400 = vmatpush1.bf16.msra.mxu0 0
      %1401 = vmatprep.subr.bf16.mxu0 0
      %1402 = vmatpush1.bf16.msra.mxu0 0
      %1403 = vmatprep.subr.bf16.mxu0 0
      %1404 = vmatpush1.bf16.msra.mxu0 0
      %1405 = vmatprep.subr.bf16.mxu0 0
      %1406 = vmatpush1.bf16.msra.mxu0 0
      %1407 = vmatprep.mubr.bf16.mxu0 0
      %1408 = vmatmul.mubr.bf16.gmra.mrb[0].mxu0 %v1373
      %v1409 = vpop.f32.mrb[0].mxu0
      %v1410 = vadd.f32 %v1357, %v1409
      %v1411 = vpop.f32.mrb[0].mxu0
      %v1412 = vpop.f32.mrb[0].mxu0
      %v1413 = vpop.f32.mrb[0].mxu0
      %1414 = vdwg.mxu0
      %v1415 = vmul.f32 %v1410, 0.35355338
      %v1416 = vld [vmem:[%s1244] sm:$0xf]
      %v1417 = vld [vmem:[%s1244 + $0x4] sm:$0xf]
      %v1418 = vld [vmem:[%s1244 + $0x8] sm:$0xf]
      %v1419 = vld [vmem:[%s1244 + $0xc] sm:$0xf]
      %v1420 = vld [vmem:[%s1247] sm:$0x1]
      %v1421 = vpack.c.bf16 %v1415, %v1415
      %v1422 = vpack.c.bf16 %v1410, %v1410
      %1424 = vrot.lane.b32.xlu0 %v1422, 96
      %v1425 = vpop.permute.xlu0 %1424
      %vm1426 = vcmask 64512
      %v1428 = vsel %vm1426, %v1421, 0
      %v1431 = vsel %vm1426, %v1425, 0
      %1433 = vmatprep.subr.bf16.mxu0 0
      %1434 = vmatpush1.bf16.xpose.msra.mxu0 %v1431
      %1435 = vmatprep.subr.bf16.mxu0 0
      %1436 = vmatpush1.bf16.xpose.msra.mxu0 0
      %1437 = vmatprep.subr.bf16.mxu0 0
      %1438 = vmatpush1.bf16.xpose.msra.mxu0 0
      %1439 = vmatprep.subr.bf16.mxu0 0
      %1440 = vmatpush1.bf16.xpose.msra.mxu0 0
      %1441 = vmatprep.subr.bf16.mxu0 0
      %1442 = vmatpush1.bf16.xpose.msra.mxu0 0
      %1443 = vmatprep.subr.bf16.mxu0 0
      %1444 = vmatpush1.bf16.xpose.msra.mxu0 0
      %1445 = vmatprep.subr.bf16.mxu0 0
      %1446 = vmatpush1.bf16.xpose.msra.mxu0 0
      %1447 = vmatprep.subr.bf16.mxu0 0
      %1448 = vmatpush1.bf16.xpose.msra.mxu0 0
      %1449 = vmatprep.subr.bf16.mxu0 0
      %1450 = vmatpush1.bf16.xpose.msra.mxu0 0
      %1451 = vmatprep.subr.bf16.mxu0 0
      %1452 = vmatpush1.bf16.xpose.msra.mxu0 0
      %1453 = vmatprep.subr.bf16.mxu0 0
      %1454 = vmatpush1.bf16.xpose.msra.mxu0 0
      %1455 = vmatprep.subr.bf16.mxu0 0
      %1456 = vmatpush1.bf16.xpose.msra.mxu0 0
      %1457 = vmatprep.subr.bf16.mxu0 0
      %1458 = vmatpush1.bf16.xpose.msra.mxu0 0
      %1459 = vmatprep.subr.bf16.mxu0 0
      %1460 = vmatpush1.bf16.xpose.msra.mxu0 0
      %1461 = vmatprep.subr.bf16.mxu0 0
      %1462 = vmatpush1.bf16.xpose.msra.mxu0 0
      %1463 = vmatprep.subr.bf16.mxu0 0
      %1464 = vmatpush1.bf16.xpose.msra.mxu0 0
      %1465 = vmatprep.mubr.bf16.mxu0 0
      %1466 = vmatmul.mubr.bf16.gmra.mrb[0].mxu0 %v1428
      %v1467 = vpop.f32.mrb[0].mxu0
      %v1468 = vadd.f32 %v1337, %v1467
      %v1469 = vpop.f32.mrb[0].mxu0
      %v1470 = vpop.f32.mrb[0].mxu0
      %v1471 = vpop.f32.mrb[0].mxu0
      %1472 = vdwg.mxu0
      %v1473 = vsel %vm1426, %v1468, -inf
      %1474 = vmax.xlane.f32.xlu0 %v1473
      %v1475 = vpop.xlane.xlu0 %1474
      %v1476 = vsub.f32 %v1468, %v1475
      %v1477 = vmul.f32 %v1476, 1.442695
      %v1478 = vpow.pop %v1477
      %v1479 = vsel %vm1426, %v1478, 0.0
      %1480 = vadd.xlane.f32.xlu0 %v1479
      %v1481 = vpop.xlane.xlu0 %1480
      %v1482 = vrcp.pop %v1481
      %v1483 = vmul.f32 %v1478, %v1482
      %v1484 = vpack.c.bf16 %v1483, %v1483
      %1485 = vrot.lane.b32.xlu0 %v1422, 64
      %v1486 = vpop.permute.xlu0 %1485
      %v1488 = vsel %vm1426, %v1484, 0
      %vm1490 = vcmask 1043456
      %v1492 = vsel %vm1490, %v1486, 0
      %1494 = vmatprep.subr.bf16.mxu0 0
      %1495 = vmatpush1.bf16.msra.mxu0 %v1492
      %1496 = vmatprep.subr.bf16.mxu0 0
      %1497 = vmatpush1.bf16.msra.mxu0 0
      %1498 = vmatprep.subr.bf16.mxu0 0
      %1499 = vmatpush1.bf16.msra.mxu0 0
      %1500 = vmatprep.subr.bf16.mxu0 0
      %1501 = vmatpush1.bf16.msra.mxu0 0
      %1502 = vmatprep.subr.bf16.mxu0 0
      %1503 = vmatpush1.bf16.msra.mxu0 0
      %1504 = vmatprep.subr.bf16.mxu0 0
      %1505 = vmatpush1.bf16.msra.mxu0 0
      %1506 = vmatprep.subr.bf16.mxu0 0
      %1507 = vmatpush1.bf16.msra.mxu0 0
      %1508 = vmatprep.subr.bf16.mxu0 0
      %1509 = vmatpush1.bf16.msra.mxu0 0
      %1510 = vmatprep.subr.bf16.mxu0 0
      %1511 = vmatpush1.bf16.msra.mxu0 0
      %1512 = vmatprep.subr.bf16.mxu0 0
      %1513 = vmatpush1.bf16.msra.mxu0 0
      %1514 = vmatprep.subr.bf16.mxu0 0
      %1515 = vmatpush1.bf16.msra.mxu0 0
      %1516 = vmatprep.subr.bf16.mxu0 0
      %1517 = vmatpush1.bf16.msra.mxu0 0
      %1518 = vmatprep.subr.bf16.mxu0 0
      %1519 = vmatpush1.bf16.msra.mxu0 0
      %1520 = vmatprep.subr.bf16.mxu0 0
      %1521 = vmatpush1.bf16.msra.mxu0 0
      %1522 = vmatprep.subr.bf16.mxu0 0
      %1523 = vmatpush1.bf16.msra.mxu0 0
      %1524 = vmatprep.subr.bf16.mxu0 0
      %1525 = vmatpush1.bf16.msra.mxu0 0
      %1526 = vmatprep.mubr.bf16.mxu0 0
      %1527 = vmatmul.mubr.bf16.gmra.mrb[0].mxu0 %v1488
      %v1528 = vpop.f32.mrb[0].mxu0
      %v1529 = vadd.f32 0.0, %v1528
      %v1530 = vpop.f32.mrb[0].mxu0
      %v1531 = vpop.f32.mrb[0].mxu0
      %v1532 = vpop.f32.mrb[0].mxu0
      %1533 = vdwg.mxu0
      %1534 = vst.msk [vmem:[#allocation3] sm:$0xff] %vm1426, %v1529
      %1536 = vrot.lane.b32.xlu0 %v1421, 120
      %v1537 = vpop.permute.xlu0 %1536
      %1538 = vrot.lane.b32.xlu0 %v1422, 88
      %v1539 = vpop.permute.xlu0 %1538
      %v1541 = vsel %vm1426, %v1537, 0
      %v1544 = vsel %vm1426, %v1539, 0
      %1546 = vmatprep.subr.bf16.mxu0 0
      %1547 = vmatpush1.bf16.xpose.msra.mxu0 %v1544
      %1548 = vmatprep.subr.bf16.mxu0 0
      %1549 = vmatpush1.bf16.xpose.msra.mxu0 0
      %1550 = vmatprep.subr.bf16.mxu0 0
      %1551 = vmatpush1.bf16.xpose.msra.mxu0 0
      %1552 = vmatprep.subr.bf16.mxu0 0
      %1553 = vmatpush1.bf16.xpose.msra.mxu0 0
      %1554 = vmatprep.subr.bf16.mxu0 0
      %1555 = vmatpush1.bf16.xpose.msra.mxu0 0
      %1556 = vmatprep.subr.bf16.mxu0 0
      %1557 = vmatpush1.bf16.xpose.msra.mxu0 0
      %1558 = vmatprep.subr.bf16.mxu0 0
      %1559 = vmatpush1.bf16.xpose.msra.mxu0 0
      %1560 = vmatprep.subr.bf16.mxu0 0
      %1561 = vmatpush1.bf16.xpose.msra.mxu0 0
      %1562 = vmatprep.subr.bf16.mxu0 0
      %1563 = vmatpush1.bf16.xpose.msra.mxu0 0
      %1564 = vmatprep.subr.bf16.mxu0 0
      %1565 = vmatpush1.bf16.xpose.msra.mxu0 0
      %1566 = vmatprep.subr.bf16.mxu0 0
      %1567 = vmatpush1.bf16.xpose.msra.mxu0 0
      %1568 = vmatprep.subr.bf16.mxu0 0
      %1569 = vmatpush1.bf16.xpose.msra.mxu0 0
      %1570 = vmatprep.subr.bf16.mxu0 0
      %1571 = vmatpush1.bf16.xpose.msra.mxu0 0
      %1572 = vmatprep.subr.bf16.mxu0 0
      %1573 = vmatpush1.bf16.xpose.msra.mxu0 0
      %1574 = vmatprep.subr.bf16.mxu0 0
      %1575 = vmatpush1.bf16.xpose.msra.mxu0 0
      %1576 = vmatprep.subr.bf16.mxu0 0
      %1577 = vmatpush1.bf16.xpose.msra.mxu0 0
      %1578 = vmatprep.mubr.bf16.mxu0 0
      %1579 = vmatmul.mubr.bf16.gmra.mrb[0].mxu0 %v1541
      %v1580 = vpop.f32.mrb[0].mxu0
      %v1581 = vadd.f32 %v1337, %v1580
      %v1582 = vpop.f32.mrb[0].mxu0
      %v1583 = vpop.f32.mrb[0].mxu0
      %v1584 = vpop.f32.mrb[0].mxu0
      %1585 = vdwg.mxu0
      %v1586 = vsel %vm1426, %v1581, -inf
      %1587 = vmax.xlane.f32.xlu0 %v1586
      %v1588 = vpop.xlane.xlu0 %1587
      %v1589 = vsub.f32 %v1581, %v1588
      %v1590 = vmul.f32 %v1589, 1.442695
      %v1591 = vpow.pop %v1590
      %v1592 = vsel %vm1426, %v1591, 0.0
      %1593 = vadd.xlane.f32.xlu0 %v1592
      %v1594 = vpop.xlane.xlu0 %1593
      %v1595 = vrcp.pop %v1594
      %v1596 = vmul.f32 %v1591, %v1595
      %v1597 = vpack.c.bf16 %v1596, %v1596
      %1598 = vrot.lane.b32.xlu0 %v1422, 56
      %v1599 = vpop.permute.xlu0 %1598
      %v1601 = vsel %vm1426, %v1597, 0
      %v1604 = vsel %vm1490, %v1599, 0
      %1606 = vmatprep.subr.bf16.mxu0 0
      %1607 = vmatpush1.bf16.msra.mxu0 %v1604
      %1608 = vmatprep.subr.bf16.mxu0 0
      %1609 = vmatpush1.bf16.msra.mxu0 0
      %1610 = vmatprep.subr.bf16.mxu0 0
      %1611 = vmatpush1.bf16.msra.mxu0 0
      %1612 = vmatprep.subr.bf16.mxu0 0
      %1613 = vmatpush1.bf16.msra.mxu0 0
      %1614 = vmatprep.subr.bf16.mxu0 0
      %1615 = vmatpush1.bf16.msra.mxu0 0
      %1616 = vmatprep.subr.bf16.mxu0 0
      %1617 = vmatpush1.bf16.msra.mxu0 0
      %1618 = vmatprep.subr.bf16.mxu0 0
      %1619 = vmatpush1.bf16.msra.mxu0 0
      %1620 = vmatprep.subr.bf16.mxu0 0
      %1621 = vmatpush1.bf16.msra.mxu0 0
      %1622 = vmatprep.subr.bf16.mxu0 0
      %1623 = vmatpush1.bf16.msra.mxu0 0
      %1624 = vmatprep.subr.bf16.mxu0 0
      %1625 = vmatpush1.bf16.msra.mxu0 0
      %1626 = vmatprep.subr.bf16.mxu0 0
      %1627 = vmatpush1.bf16.msra.mxu0 0
      %1628 = vmatprep.subr.bf16.mxu0 0
      %1629 = vmatpush1.bf16.msra.mxu0 0
      %1630 = vmatprep.subr.bf16.mxu0 0
      %1631 = vmatpush1.bf16.msra.mxu0 0
      %1632 = vmatprep.subr.bf16.mxu0 0
      %1633 = vmatpush1.bf16.msra.mxu0 0
      %1634 = vmatprep.subr.bf16.mxu0 0
      %1635 = vmatpush1.bf16.msra.mxu0 0
      %1636 = vmatprep.subr.bf16.mxu0 0
      %1637 = vmatpush1.bf16.msra.mxu0 0
      %1638 = vmatprep.mubr.bf16.mxu0 0
      %1639 = vmatmul.mubr.bf16.gmra.mrb[0].mxu0 %v1601
      %v1640 = vpop.f32.mrb[0].mxu0
      %v1641 = vadd.f32 0.0, %v1640
      %v1642 = vpop.f32.mrb[0].mxu0
      %v1643 = vpop.f32.mrb[0].mxu0
      %v1644 = vpop.f32.mrb[0].mxu0
      %1645 = vdwg.mxu0
      %1647 = vrot.lane.b32.xlu0 %v1641, 8
      %v1648 = vpop.permute.xlu0 %1647
      %vm1650 = vcmask 130112
      %1651 = vst.msk [vmem:[#allocation3] sm:$0xff] %vm1650, %v1648
      %1652 = vrot.lane.b32.xlu0 %v1421, 112
      %v1653 = vpop.permute.xlu0 %1652
      %1654 = vrot.lane.b32.xlu0 %v1422, 80
      %v1655 = vpop.permute.xlu0 %1654
      %v1657 = vsel %vm1426, %v1653, 0
      %v1660 = vsel %vm1426, %v1655, 0
      %1662 = vmatprep.subr.bf16.mxu0 0
      %1663 = vmatpush1.bf16.xpose.msra.mxu0 %v1660
      %1664 = vmatprep.subr.bf16.mxu0 0
      %1665 = vmatpush1.bf16.xpose.msra.mxu0 0
      %1666 = vmatprep.subr.bf16.mxu0 0
      %1667 = vmatpush1.bf16.xpose.msra.mxu0 0
      %1668 = vmatprep.subr.bf16.mxu0 0
      %1669 = vmatpush1.bf16.xpose.msra.mxu0 0
      %1670 = vmatprep.subr.bf16.mxu0 0
      %1671 = vmatpush1.bf16.xpose.msra.mxu0 0
      %1672 = vmatprep.subr.bf16.mxu0 0
      %1673 = vmatpush1.bf16.xpose.msra.mxu0 0
      %1674 = vmatprep.subr.bf16.mxu0 0
      %1675 = vmatpush1.bf16.xpose.msra.mxu0 0
      %1676 = vmatprep.subr.bf16.mxu0 0
      %1677 = vmatpush1.bf16.xpose.msra.mxu0 0
      %1678 = vmatprep.subr.bf16.mxu0 0
      %1679 = vmatpush1.bf16.xpose.msra.mxu0 0
      %1680 = vmatprep.subr.bf16.mxu0 0
      %1681 = vmatpush1.bf16.xpose.msra.mxu0 0
      %1682 = vmatprep.subr.bf16.mxu0 0
      %1683 = vmatpush1.bf16.xpose.msra.mxu0 0
      %1684 = vmatprep.subr.bf16.mxu0 0
      %1685 = vmatpush1.bf16.xpose.msra.mxu0 0
      %1686 = vmatprep.subr.bf16.mxu0 0
      %1687 = vmatpush1.bf16.xpose.msra.mxu0 0
      %1688 = vmatprep.subr.bf16.mxu0 0
      %1689 = vmatpush1.bf16.xpose.msra.mxu0 0
      %1690 = vmatprep.subr.bf16.mxu0 0
      %1691 = vmatpush1.bf16.xpose.msra.mxu0 0
      %1692 = vmatprep.subr.bf16.mxu0 0
      %1693 = vmatpush1.bf16.xpose.msra.mxu0 0
      %1694 = vmatprep.mubr.bf16.mxu0 0
      %1695 = vmatmul.mubr.bf16.gmra.mrb[0].mxu0 %v1657
      %v1696 = vpop.f32.mrb[0].mxu0
      %v1697 = vadd.f32 %v1337, %v1696
      %v1698 = vpop.f32.mrb[0].mxu0
      %v1699 = vpop.f32.mrb[0].mxu0
      %v1700 = vpop.f32.mrb[0].mxu0
      %1701 = vdwg.mxu0
      %v1702 = vsel %vm1426, %v1697, -inf
      %1703 = vmax.xlane.f32.xlu0 %v1702
      %v1704 = vpop.xlane.xlu0 %1703
      %v1705 = vsub.f32 %v1697, %v1704
      %v1706 = vmul.f32 %v1705, 1.442695
      %v1707 = vpow.pop %v1706
      %v1708 = vsel %vm1426, %v1707, 0.0
      %1709 = vadd.xlane.f32.xlu0 %v1708
      %v1710 = vpop.xlane.xlu0 %1709
      %v1711 = vrcp.pop %v1710
      %v1712 = vmul.f32 %v1707, %v1711
      %v1713 = vpack.c.bf16 %v1712, %v1712
      %1714 = vrot.lane.b32.xlu0 %v1422, 48
      %v1715 = vpop.permute.xlu0 %1714
      %v1717 = vsel %vm1426, %v1713, 0
      %v1720 = vsel %vm1490, %v1715, 0
      %1722 = vmatprep.subr.bf16.mxu0 0
      %1723 = vmatpush1.bf16.msra.mxu0 %v1720
      %1724 = vmatprep.subr.bf16.mxu0 0
      %1725 = vmatpush1.bf16.msra.mxu0 0
      %1726 = vmatprep.subr.bf16.mxu0 0
      %1727 = vmatpush1.bf16.msra.mxu0 0
      %1728 = vmatprep.subr.bf16.mxu0 0
      %1729 = vmatpush1.bf16.msra.mxu0 0
      %1730 = vmatprep.subr.bf16.mxu0 0
      %1731 = vmatpush1.bf16.msra.mxu0 0
      %1732 = vmatprep.subr.bf16.mxu0 0
      %1733 = vmatpush1.bf16.msra.mxu0 0
      %1734 = vmatprep.subr.bf16.mxu0 0
      %1735 = vmatpush1.bf16.msra.mxu0 0
      %1736 = vmatprep.subr.bf16.mxu0 0
      %1737 = vmatpush1.bf16.msra.mxu0 0
      %1738 = vmatprep.subr.bf16.mxu0 0
      %1739 = vmatpush1.bf16.msra.mxu0 0
      %1740 = vmatprep.subr.bf16.mxu0 0
      %1741 = vmatpush1.bf16.msra.mxu0 0
      %1742 = vmatprep.subr.bf16.mxu0 0
      %1743 = vmatpush1.bf16.msra.mxu0 0
      %1744 = vmatprep.subr.bf16.mxu0 0
      %1745 = vmatpush1.bf16.msra.mxu0 0
      %1746 = vmatprep.subr.bf16.mxu0 0
      %1747 = vmatpush1.bf16.msra.mxu0 0
      %1748 = vmatprep.subr.bf16.mxu0 0
      %1749 = vmatpush1.bf16.msra.mxu0 0
      %1750 = vmatprep.subr.bf16.mxu0 0
      %1751 = vmatpush1.bf16.msra.mxu0 0
      %1752 = vmatprep.subr.bf16.mxu0 0
      %1753 = vmatpush1.bf16.msra.mxu0 0
      %1754 = vmatprep.mubr.bf16.mxu0 0
      %1755 = vmatmul.mubr.bf16.gmra.mrb[0].mxu0 %v1717
      %v1756 = vpop.f32.mrb[0].mxu0
      %v1757 = vadd.f32 0.0, %v1756
      %v1758 = vpop.f32.mrb[0].mxu0
      %v1759 = vpop.f32.mrb[0].mxu0
      %v1760 = vpop.f32.mrb[0].mxu0
      %1761 = vdwg.mxu0
      %1763 = vrot.lane.b32.xlu0 %v1757, 16
      %v1764 = vpop.permute.xlu0 %1763
      %vm1766 = vcmask 195712
      %1767 = vst.msk [vmem:[#allocation3] sm:$0xff] %vm1766, %v1764
      %1768 = vrot.lane.b32.xlu0 %v1421, 104
      %v1769 = vpop.permute.xlu0 %1768
      %1770 = vrot.lane.b32.xlu0 %v1422, 72
      %v1771 = vpop.permute.xlu0 %1770
      %v1773 = vsel %vm1426, %v1769, 0
      %v1776 = vsel %vm1426, %v1771, 0
      %1778 = vmatprep.subr.bf16.mxu0 0
      %1779 = vmatpush1.bf16.xpose.msra.mxu0 %v1776
      %1780 = vmatprep.subr.bf16.mxu0 0
      %1781 = vmatpush1.bf16.xpose.msra.mxu0 0
      %1782 = vmatprep.subr.bf16.mxu0 0
      %1783 = vmatpush1.bf16.xpose.msra.mxu0 0
      %1784 = vmatprep.subr.bf16.mxu0 0
      %1785 = vmatpush1.bf16.xpose.msra.mxu0 0
      %1786 = vmatprep.subr.bf16.mxu0 0
      %1787 = vmatpush1.bf16.xpose.msra.mxu0 0
      %1788 = vmatprep.subr.bf16.mxu0 0
      %1789 = vmatpush1.bf16.xpose.msra.mxu0 0
      %1790 = vmatprep.subr.bf16.mxu0 0
      %1791 = vmatpush1.bf16.xpose.msra.mxu0 0
      %1792 = vmatprep.subr.bf16.mxu0 0
      %1793 = vmatpush1.bf16.xpose.msra.mxu0 0
      %1794 = vmatprep.subr.bf16.mxu0 0
      %1795 = vmatpush1.bf16.xpose.msra.mxu0 0
      %1796 = vmatprep.subr.bf16.mxu0 0
      %1797 = vmatpush1.bf16.xpose.msra.mxu0 0
      %1798 = vmatprep.subr.bf16.mxu0 0
      %1799 = vmatpush1.bf16.xpose.msra.mxu0 0
      %1800 = vmatprep.subr.bf16.mxu0 0
      %1801 = vmatpush1.bf16.xpose.msra.mxu0 0
      %1802 = vmatprep.subr.bf16.mxu0 0
      %1803 = vmatpush1.bf16.xpose.msra.mxu0 0
      %1804 = vmatprep.subr.bf16.mxu0 0
      %1805 = vmatpush1.bf16.xpose.msra.mxu0 0
      %1806 = vmatprep.subr.bf16.mxu0 0
      %1807 = vmatpush1.bf16.xpose.msra.mxu0 0
      %1808 = vmatprep.subr.bf16.mxu0 0
      %1809 = vmatpush1.bf16.xpose.msra.mxu0 0
      %1810 = vmatprep.mubr.bf16.mxu0 0
      %1811 = vmatmul.mubr.bf16.gmra.mrb[0].mxu0 %v1773
      %v1812 = vpop.f32.mrb[0].mxu0
      %v1813 = vadd.f32 %v1337, %v1812
      %v1814 = vpop.f32.mrb[0].mxu0
      %v1815 = vpop.f32.mrb[0].mxu0
      %v1816 = vpop.f32.mrb[0].mxu0
      %1817 = vdwg.mxu0
      %v1818 = vsel %vm1426, %v1813, -inf
      %1819 = vmax.xlane.f32.xlu0 %v1818
      %v1820 = vpop.xlane.xlu0 %1819
      %v1821 = vsub.f32 %v1813, %v1820
      %v1822 = vmul.f32 %v1821, 1.442695
      %v1823 = vpow.pop %v1822
      %v1824 = vsel %vm1426, %v1823, 0.0
      %1825 = vadd.xlane.f32.xlu0 %v1824
      %v1826 = vpop.xlane.xlu0 %1825
      %v1827 = vrcp.pop %v1826
      %v1828 = vmul.f32 %v1823, %v1827
      %v1829 = vpack.c.bf16 %v1828, %v1828
      %1830 = vrot.lane.b32.xlu0 %v1422, 40
      %v1831 = vpop.permute.xlu0 %1830
      %v1833 = vsel %vm1426, %v1829, 0
      %v1836 = vsel %vm1490, %v1831, 0
      %1838 = vmatprep.subr.bf16.mxu0 0
      %1839 = vmatpush1.bf16.msra.mxu0 %v1836
      %1840 = vmatprep.subr.bf16.mxu0 0
      %1841 = vmatpush1.bf16.msra.mxu0 0
      %1842 = vmatprep.subr.bf16.mxu0 0
      %1843 = vmatpush1.bf16.msra.mxu0 0
      %1844 = vmatprep.subr.bf16.mxu0 0
      %1845 = vmatpush1.bf16.msra.mxu0 0
      %1846 = vmatprep.subr.bf16.mxu0 0
      %1847 = vmatpush1.bf16.msra.mxu0 0
      %1848 = vmatprep.subr.bf16.mxu0 0
      %1849 = vmatpush1.bf16.msra.mxu0 0
      %1850 = vmatprep.subr.bf16.mxu0 0
      %1851 = vmatpush1.bf16.msra.mxu0 0
      %1852 = vmatprep.subr.bf16.mxu0 0
      %1853 = vmatpush1.bf16.msra.mxu0 0
      %1854 = vmatprep.subr.bf16.mxu0 0
      %1855 = vmatpush1.bf16.msra.mxu0 0
      %1856 = vmatprep.subr.bf16.mxu0 0
      %1857 = vmatpush1.bf16.msra.mxu0 0
      %1858 = vmatprep.subr.bf16.mxu0 0
      %1859 = vmatpush1.bf16.msra.mxu0 0
      %1860 = vmatprep.subr.bf16.mxu0 0
      %1861 = vmatpush1.bf16.msra.mxu0 0
      %1862 = vmatprep.subr.bf16.mxu0 0
      %1863 = vmatpush1.bf16.msra.mxu0 0
      %1864 = vmatprep.subr.bf16.mxu0 0
      %1865 = vmatpush1.bf16.msra.mxu0 0
      %1866 = vmatprep.subr.bf16.mxu0 0
      %1867 = vmatpush1.bf16.msra.mxu0 0
      %1868 = vmatprep.subr.bf16.mxu0 0
      %1869 = vmatpush1.bf16.msra.mxu0 0
      %1870 = vmatprep.mubr.bf16.mxu0 0
      %1871 = vmatmul.mubr.bf16.gmra.mrb[0].mxu0 %v1833
      %v1872 = vpop.f32.mrb[0].mxu0
      %v1873 = vadd.f32 0.0, %v1872
      %v1874 = vpop.f32.mrb[0].mxu0
      %v1875 = vpop.f32.mrb[0].mxu0
      %v1876 = vpop.f32.mrb[0].mxu0
      %1877 = vdwg.mxu0
      %1879 = vrot.lane.b32.xlu0 %v1873, 24
      %v1880 = vpop.permute.xlu0 %1879
      %vm1882 = vcmask 261312
      %1883 = vst.msk [vmem:[#allocation3] sm:$0xff] %vm1882, %v1880
      %v1884 = vld [vmem:[#allocation3] sm:$0xff]
      %v1885 = vpack.c.bf16 %v1884, %v1884
      %v1887 = vlaneseq
      %v1888 = vshrl.u32 %v1887, 7
      %v1889 = vsub.s32 0, %v1888
      %v1890 = vrot.slane %v1420, %v1889
      %v1896 = vunpack.c.l.b16 %v1416
      %v1897 = vunpack.c.l.b16 %v1417
      %v1898 = vunpack.c.l.b16 %v1418
      %v1899 = vunpack.c.l.b16 %v1419
      %v1900 = vpack.c.b16 %v1897, %v1896
      %v1901 = vpack.c.b16 %v1899, %v1898
      %v1905 = vsel %vm1371, %v1885, 0
      %1907 = vmatprep.subr.bf16.mxu0 0
      %1908 = vmatpush1.bf16.msra.mxu0 %v1900
      %1909 = vmatprep.subr.bf16.mxu0 0
      %1910 = vmatpush1.bf16.msra.mxu0 %v1901
      %1911 = vmatprep.subr.bf16.mxu0 0
      %1912 = vmatpush1.bf16.msra.mxu0 0
      %1913 = vmatprep.subr.bf16.mxu0 0
      %1914 = vmatpush1.bf16.msra.mxu0 0
      %1915 = vmatprep.subr.bf16.mxu0 0
      %1916 = vmatpush1.bf16.msra.mxu0 0
      %1917 = vmatprep.subr.bf16.mxu0 0
      %1918 = vmatpush1.bf16.msra.mxu0 0
      %1919 = vmatprep.subr.bf16.mxu0 0
      %1920 = vmatpush1.bf16.msra.mxu0 0
      %1921 = vmatprep.subr.bf16.mxu0 0
      %1922 = vmatpush1.bf16.msra.mxu0 0
      %1923 = vmatprep.subr.bf16.mxu0 0
      %1924 = vmatpush1.bf16.msra.mxu0 0
      %1925 = vmatprep.subr.bf16.mxu0 0
      %1926 = vmatpush1.bf16.msra.mxu0 0
      %1927 = vmatprep.subr.bf16.mxu0 0
      %1928 = vmatpush1.bf16.msra.mxu0 0
      %1929 = vmatprep.subr.bf16.mxu0 0
      %1930 = vmatpush1.bf16.msra.mxu0 0
      %1931 = vmatprep.subr.bf16.mxu0 0
      %1932 = vmatpush1.bf16.msra.mxu0 0
      %1933 = vmatprep.subr.bf16.mxu0 0
      %1934 = vmatpush1.bf16.msra.mxu0 0
      %1935 = vmatprep.subr.bf16.mxu0 0
      %1936 = vmatpush1.bf16.msra.mxu0 0
      %1937 = vmatprep.subr.bf16.mxu0 0
      %1938 = vmatpush1.bf16.msra.mxu0 0
      %1939 = vmatprep.mubr.bf16.mxu0 0
      %1940 = vmatmul.mubr.bf16.gmra.mrb[0].mxu0 %v1905
      %v1941 = vpop.f32.mrb[0].mxu0
      %v1942 = vadd.f32 %v1890, %v1941
      %v1943 = vpop.f32.mrb[0].mxu0
      %v1944 = vpop.f32.mrb[0].mxu0
      %v1945 = vpop.f32.mrb[0].mxu0
      %1946 = vdwg.mxu0
      %v1947 = vadd.f32 %v1332, %v1942
      %v1948 = vsel %vm1371, %v1947, 0.0
      %1949 = vadd.xlane.f32.xlu0 %v1948
      %v1950 = vpop.xlane.xlu0 %1949
      %v1951 = vrcp.pop 32.0
      %v1952 = vmul.f32 %v1950, %v1951
      %v1953 = vsub.f32 %v1947, %v1952
      %v1954 = vmul.f32 %v1953, %v1953
      %v1955 = vsel %vm1371, %v1954, 0.0
      %1956 = vadd.xlane.f32.xlu0 %v1955
      %v1957 = vpop.xlane.xlu0 %1956
      %v1958 = vmul.f32 %v1957, %v1951
      %v1959 = vadd.f32 %v1958, 1e-05
      %v1960 = vrsqrt.pop %v1959
      %v1961 = vmul.f32 %v1953, %v1960
      %v1963 = vlaneseq
      %v1964 = vshrl.u32 %v1963, 7
      %v1965 = vsub.s32 0, %v1964
      %v1966 = vrot.slane %v1339, %v1965
      %v1968 = vmul.f32 %v1961, %v1966
      %v1970 = vlaneseq
      %v1971 = vshrl.u32 %v1970, 7
      %v1972 = vsub.s32 0, %v1971
      %v1973 = vrot.slane %v1343, %v1972
      %v1975 = vadd.f32 %v1968, %v1973
      %v1976 = vld [vmem:[%s1252] sm:$0xf]
      %v1977 = vld [vmem:[%s1252 + $0x4] sm:$0xf]
      %v1978 = vld [vmem:[%s1252 + $0x8] sm:$0xf]
      %v1979 = vld [vmem:[%s1252 + $0xc] sm:$0xf]
      %v1980 = vpack.c.bf16 %v1975, %v1975
      %v1981 = vld [vmem:[%s1255] sm:$0x1]
      %v1983 = vlaneseq
      %v1984 = vshrl.u32 %v1983, 7
      %v1985 = vsub.s32 0, %v1984
      %v1986 = vrot.slane %v1981, %v1985
      %v1992 = vunpack.c.l.b16 %v1976
      %v1993 = vunpack.c.l.b16 %v1977
      %v1994 = vunpack.c.l.b16 %v1978
      %v1995 = vunpack.c.l.b16 %v1979
      %v1996 = vpack.c.b16 %v1993, %v1992
      %v1997 = vpack.c.b16 %v1995, %v1994
      %v2001 = vsel %vm1371, %v1980, 0
      %2003 = vmatprep.subr.bf16.mxu0 0
      %2004 = vmatpush1.bf16.msra.mxu0 %v1996
      %2005 = vmatprep.subr.bf16.mxu0 0
      %2006 = vmatpush1.bf16.msra.mxu0 %v1997
      %2007 = vmatprep.subr.bf16.mxu0 0
      %2008 = vmatpush1.bf16.msra.mxu0 0
      %2009 = vmatprep.subr.bf16.mxu0 0
      %2010 = vmatpush1.bf16.msra.mxu0 0
      %2011 = vmatprep.subr.bf16.mxu0 0
      %2012 = vmatpush1.bf16.msra.mxu0 0
      %2013 = vmatprep.subr.bf16.mxu0 0
      %2014 = vmatpush1.bf16.msra.mxu0 0
      %2015 = vmatprep.subr.bf16.mxu0 0
      %2016 = vmatpush1.bf16.msra.mxu0 0
      %2017 = vmatprep.subr.bf16.mxu0 0
      %2018 = vmatpush1.bf16.msra.mxu0 0
      %2019 = vmatprep.subr.bf16.mxu0 0
      %2020 = vmatpush1.bf16.msra.mxu0 0
      %2021 = vmatprep.subr.bf16.mxu0 0
      %2022 = vmatpush1.bf16.msra.mxu0 0
      %2023 = vmatprep.subr.bf16.mxu0 0
      %2024 = vmatpush1.bf16.msra.mxu0 0
      %2025 = vmatprep.subr.bf16.mxu0 0
      %2026 = vmatpush1.bf16.msra.mxu0 0
      %2027 = vmatprep.subr.bf16.mxu0 0
      %2028 = vmatpush1.bf16.msra.mxu0 0
      %2029 = vmatprep.subr.bf16.mxu0 0
      %2030 = vmatpush1.bf16.msra.mxu0 0
      %2031 = vmatprep.subr.bf16.mxu0 0
      %2032 = vmatpush1.bf16.msra.mxu0 0
      %2033 = vmatprep.subr.bf16.mxu0 0
      %2034 = vmatpush1.bf16.msra.mxu0 0
      %2035 = vmatprep.mubr.bf16.mxu0 0
      %2036 = vmatmul.mubr.bf16.gmra.mrb[0].mxu0 %v2001
      %v2037 = vpop.f32.mrb[0].mxu0
      %v2038 = vadd.f32 %v1986, %v2037
      %v2039 = vpop.f32.mrb[0].mxu0
      %v2040 = vpop.f32.mrb[0].mxu0
      %v2041 = vpop.f32.mrb[0].mxu0
      %2042 = vdwg.mxu0
      %v2043 = vmul.f32 %v2038, 0.35355338
      %v2044 = vld [vmem:[%s1260] sm:$0xf]
      %v2045 = vld [vmem:[%s1260 + $0x4] sm:$0xf]
      %v2046 = vld [vmem:[%s1260 + $0x8] sm:$0xf]
      %v2047 = vld [vmem:[%s1260 + $0xc] sm:$0xf]
      %v2048 = vpack.c.bf16 %v1334, %v1333
      %v2049 = vld [vmem:[%s1263] sm:$0x1]
      %v2051 = vlaneseq
      %v2052 = vshrl.u32 %v2051, 7
      %v2053 = vsub.s32 0, %v2052
      %v2054 = vrot.slane %v2049, %v2053
      %v2060 = vunpack.c.l.b16 %v2044
      %v2061 = vunpack.c.l.b16 %v2045
      %v2062 = vunpack.c.l.b16 %v2046
      %v2063 = vunpack.c.l.b16 %v2047
      %v2064 = vpack.c.b16 %v2061, %v2060
      %v2065 = vpack.c.b16 %v2063, %v2062
      %v2069 = vsel %vm1371, %v2048, 0
      %2071 = vmatprep.subr.bf16.mxu0 0
      %2072 = vmatpush1.bf16.msra.mxu0 %v2064
      %2073 = vmatprep.subr.bf16.mxu0 0
      %2074 = vmatpush1.bf16.msra.mxu0 %v2065
      %2075 = vmatprep.subr.bf16.mxu0 0
      %2076 = vmatpush1.bf16.msra.mxu0 0
      %2077 = vmatprep.subr.bf16.mxu0 0
      %2078 = vmatpush1.bf16.msra.mxu0 0
      %2079 = vmatprep.subr.bf16.mxu0 0
      %2080 = vmatpush1.bf16.msra.mxu0 0
      %2081 = vmatprep.subr.bf16.mxu0 0
      %2082 = vmatpush1.bf16.msra.mxu0 0
      %2083 = vmatprep.subr.bf16.mxu0 0
      %2084 = vmatpush1.bf16.msra.mxu0 0
      %2085 = vmatprep.subr.bf16.mxu0 0
      %2086 = vmatpush1.bf16.msra.mxu0 0
      %2087 = vmatprep.subr.bf16.mxu0 0
      %2088 = vmatpush1.bf16.msra.mxu0 0
      %2089 = vmatprep.subr.bf16.mxu0 0
      %2090 = vmatpush1.bf16.msra.mxu0 0
      %2091 = vmatprep.subr.bf16.mxu0 0
      %2092 = vmatpush1.bf16.msra.mxu0 0
      %2093 = vmatprep.subr.bf16.mxu0 0
      %2094 = vmatpush1.bf16.msra.mxu0 0
      %2095 = vmatprep.subr.bf16.mxu0 0
      %2096 = vmatpush1.bf16.msra.mxu0 0
      %2097 = vmatprep.subr.bf16.mxu0 0
      %2098 = vmatpush1.bf16.msra.mxu0 0
      %2099 = vmatprep.subr.bf16.mxu0 0
      %2100 = vmatpush1.bf16.msra.mxu0 0
      %2101 = vmatprep.subr.bf16.mxu0 0
      %2102 = vmatpush1.bf16.msra.mxu0 0
      %2103 = vmatprep.mubr.bf16.mxu0 0
      %2104 = vmatmul.mubr.bf16.gmra.mrb[0].mxu0 %v2069
      %v2105 = vpop.f32.mrb[0].mxu0
      %v2106 = vadd.f32 %v2054, %v2105
      %v2107 = vpop.f32.mrb[0].mxu0
      %v2108 = vpop.f32.mrb[0].mxu0
      %v2109 = vadd.f32 %v2054, %v2108
      %v2110 = vpop.f32.mrb[0].mxu0
      %2111 = vdwg.mxu0
      %v2112 = vld [vmem:[%s1268] sm:$0xf]
      %v2113 = vld [vmem:[%s1268 + $0x4] sm:$0xf]
      %v2114 = vld [vmem:[%s1268 + $0x8] sm:$0xf]
      %v2115 = vld [vmem:[%s1268 + $0xc] sm:$0xf]
      %v2116 = vld [vmem:[%s1271] sm:$0x1]
      %v2117 = vpack.c.bf16 %v2043, %v2043
      %v2118 = vpack.c.bf16 %v2109, %v2106
      %v2120 = vlaneseq
      %v2121 = vshrl.u32 %v2120, 7
      %v2122 = vsub.s32 0, %v2121
      %v2123 = vrot.slane %v1338, %v2122
      %v2126 = vsel %vm1426, %v2117, 0
      %v2129 = vsel %vm1426, %v2118, 0
      %2131 = vmatprep.subr.bf16.mxu0 0
      %2132 = vmatpush1.bf16.xpose.msra.mxu0 %v2129
      %2133 = vmatprep.subr.bf16.mxu0 0
      %2134 = vmatpush1.bf16.xpose.msra.mxu0 0
      %2135 = vmatprep.subr.bf16.mxu0 0
      %2136 = vmatpush1.bf16.xpose.msra.mxu0 0
      %2137 = vmatprep.subr.bf16.mxu0 0
      %2138 = vmatpush1.bf16.xpose.msra.mxu0 0
      %2139 = vmatprep.subr.bf16.mxu0 0
      %2140 = vmatpush1.bf16.xpose.msra.mxu0 0
      %2141 = vmatprep.subr.bf16.mxu0 0
      %2142 = vmatpush1.bf16.xpose.msra.mxu0 0
      %2143 = vmatprep.subr.bf16.mxu0 0
      %2144 = vmatpush1.bf16.xpose.msra.mxu0 0
      %2145 = vmatprep.subr.bf16.mxu0 0
      %2146 = vmatpush1.bf16.xpose.msra.mxu0 0
      %2147 = vmatprep.subr.bf16.mxu0 0
      %2148 = vmatpush1.bf16.xpose.msra.mxu0 0
      %2149 = vmatprep.subr.bf16.mxu0 0
      %2150 = vmatpush1.bf16.xpose.msra.mxu0 0
      %2151 = vmatprep.subr.bf16.mxu0 0
      %2152 = vmatpush1.bf16.xpose.msra.mxu0 0
      %2153 = vmatprep.subr.bf16.mxu0 0
      %2154 = vmatpush1.bf16.xpose.msra.mxu0 0
      %2155 = vmatprep.subr.bf16.mxu0 0
      %2156 = vmatpush1.bf16.xpose.msra.mxu0 0
      %2157 = vmatprep.subr.bf16.mxu0 0
      %2158 = vmatpush1.bf16.xpose.msra.mxu0 0
      %2159 = vmatprep.subr.bf16.mxu0 0
      %2160 = vmatpush1.bf16.xpose.msra.mxu0 0
      %2161 = vmatprep.subr.bf16.mxu0 0
      %2162 = vmatpush1.bf16.xpose.msra.mxu0 0
      %2163 = vmatprep.mubr.bf16.mxu0 0
      %2164 = vmatmul.mubr.bf16.gmra.mrb[0].mxu0 %v2126
      %v2165 = vpop.f32.mrb[0].mxu0
      %v2166 = vadd.f32 %v2123, %v2165
      %v2167 = vpop.f32.mrb[0].mxu0
      %v2168 = vpop.f32.mrb[0].mxu0
      %v2169 = vpop.f32.mrb[0].mxu0
      %2170 = vdwg.mxu0
      %vm2171 = vcmask 130048
      %v2172 = vsel %vm2171, %v2166, -inf
      %2173 = vmax.xlane.f32.xlu0 %v2172
      %v2174 = vpop.xlane.xlu0 %2173
      %v2175 = vsub.f32 %v2166, %v2174
      %v2176 = vmul.f32 %v2175, 1.442695
      %v2177 = vpow.pop %v2176
      %v2178 = vsel %vm2171, %v2177, 0.0
      %2179 = vadd.xlane.f32.xlu0 %v2178
      %v2180 = vpop.xlane.xlu0 %2179
      %v2181 = vrcp.pop %v2180
      %v2182 = vmul.f32 %v2177, %v2181
      %v2183 = vpack.c.bf16 %v2182, %v2182
      %2185 = vrot.lane.b32.xlu0 %v2118, 96
      %v2186 = vpop.permute.xlu0 %2185
      %v2189 = vsel %vm2171, %v2183, 0
      %2191 = vmatprep.subr.bf16.mxu0 0
      %2192 = vmatpush1.bf16.msra.mxu0 %v2186
      %2193 = vmatprep.subr.bf16.mxu0 0
      %2194 = vmatpush1.bf16.msra.mxu0 0
      %2195 = vmatprep.subr.bf16.mxu0 0
      %2196 = vmatpush1.bf16.msra.mxu0 0
      %2197 = vmatprep.subr.bf16.mxu0 0
      %2198 = vmatpush1.bf16.msra.mxu0 0
      %2199 = vmatprep.subr.bf16.mxu0 0
      %2200 = vmatpush1.bf16.msra.mxu0 0
      %2201 = vmatprep.subr.bf16.mxu0 0
      %2202 = vmatpush1.bf16.msra.mxu0 0
      %2203 = vmatprep.subr.bf16.mxu0 0
      %2204 = vmatpush1.bf16.msra.mxu0 0
      %2205 = vmatprep.subr.bf16.mxu0 0
      %2206 = vmatpush1.bf16.msra.mxu0 0
      %2207 = vmatprep.subr.bf16.mxu0 0
      %2208 = vmatpush1.bf16.msra.mxu0 0
      %2209 = vmatprep.subr.bf16.mxu0 0
      %2210 = vmatpush1.bf16.msra.mxu0 0
      %2211 = vmatprep.subr.bf16.mxu0 0
      %2212 = vmatpush1.bf16.msra.mxu0 0
      %2213 = vmatprep.subr.bf16.mxu0 0
      %2214 = vmatpush1.bf16.msra.mxu0 0
      %2215 = vmatprep.subr.bf16.mxu0 0
      %2216 = vmatpush1.bf16.msra.mxu0 0
      %2217 = vmatprep.subr.bf16.mxu0 0
      %2218 = vmatpush1.bf16.msra.mxu0 0
      %2219 = vmatprep.subr.bf16.mxu0 0
      %2220 = vmatpush1.bf16.msra.mxu0 0
      %2221 = vmatprep.subr.bf16.mxu0 0
      %2222 = vmatpush1.bf16.msra.mxu0 0
      %2223 = vmatprep.mubr.bf16.mxu0 0
      %2224 = vmatmul.mubr.bf16.gmra.mrb[0].mxu0 %v2189
      %v2225 = vpop.f32.mrb[0].mxu0
      %v2226 = vadd.f32 0.0, %v2225
      %v2227 = vpop.f32.mrb[0].mxu0
      %v2228 = vpop.f32.mrb[0].mxu0
      %v2229 = vpop.f32.mrb[0].mxu0
      %2230 = vdwg.mxu0
      %2231 = vst.msk [vmem:[#allocation3] sm:$0xff] %vm1426, %v2226
      %2233 = vrot.lane.b32.xlu0 %v2117, 120
      %v2234 = vpop.permute.xlu0 %2233
      %2235 = vrot.lane.b32.xlu0 %v2118, 120
      %v2236 = vpop.permute.xlu0 %2235
      %v2238 = vsel %vm1426, %v2234, 0
      %v2241 = vsel %vm1426, %v2236, 0
      %2243 = vmatprep.subr.bf16.mxu0 0
      %2244 = vmatpush1.bf16.xpose.msra.mxu0 %v2241
      %2245 = vmatprep.subr.bf16.mxu0 0
      %2246 = vmatpush1.bf16.xpose.msra.mxu0 0
      %2247 = vmatprep.subr.bf16.mxu0 0
      %2248 = vmatpush1.bf16.xpose.msra.mxu0 0
      %2249 = vmatprep.subr.bf16.mxu0 0
      %2250 = vmatpush1.bf16.xpose.msra.mxu0 0
      %2251 = vmatprep.subr.bf16.mxu0 0
      %2252 = vmatpush1.bf16.xpose.msra.mxu0 0
      %2253 = vmatprep.subr.bf16.mxu0 0
      %2254 = vmatpush1.bf16.xpose.msra.mxu0 0
      %2255 = vmatprep.subr.bf16.mxu0 0
      %2256 = vmatpush1.bf16.xpose.msra.mxu0 0
      %2257 = vmatprep.subr.bf16.mxu0 0
      %2258 = vmatpush1.bf16.xpose.msra.mxu0 0
      %2259 = vmatprep.subr.bf16.mxu0 0
      %2260 = vmatpush1.bf16.xpose.msra.mxu0 0
      %2261 = vmatprep.subr.bf16.mxu0 0
      %2262 = vmatpush1.bf16.xpose.msra.mxu0 0
      %2263 = vmatprep.subr.bf16.mxu0 0
      %2264 = vmatpush1.bf16.xpose.msra.mxu0 0
      %2265 = vmatprep.subr.bf16.mxu0 0
      %2266 = vmatpush1.bf16.xpose.msra.mxu0 0
      %2267 = vmatprep.subr.bf16.mxu0 0
      %2268 = vmatpush1.bf16.xpose.msra.mxu0 0
      %2269 = vmatprep.subr.bf16.mxu0 0
      %2270 = vmatpush1.bf16.xpose.msra.mxu0 0
      %2271 = vmatprep.subr.bf16.mxu0 0
      %2272 = vmatpush1.bf16.xpose.msra.mxu0 0
      %2273 = vmatprep.subr.bf16.mxu0 0
      %2274 = vmatpush1.bf16.xpose.msra.mxu0 0
      %2275 = vmatprep.mubr.bf16.mxu0 0
      %2276 = vmatmul.mubr.bf16.gmra.mrb[0].mxu0 %v2238
      %v2277 = vpop.f32.mrb[0].mxu0
      %v2278 = vadd.f32 %v2123, %v2277
      %v2279 = vpop.f32.mrb[0].mxu0
      %v2280 = vpop.f32.mrb[0].mxu0
      %v2281 = vpop.f32.mrb[0].mxu0
      %2282 = vdwg.mxu0
      %v2283 = vsel %vm2171, %v2278, -inf
      %2284 = vmax.xlane.f32.xlu0 %v2283
      %v2285 = vpop.xlane.xlu0 %2284
      %v2286 = vsub.f32 %v2278, %v2285
      %v2287 = vmul.f32 %v2286, 1.442695
      %v2288 = vpow.pop %v2287
      %v2289 = vsel %vm2171, %v2288, 0.0
      %2290 = vadd.xlane.f32.xlu0 %v2289
      %v2291 = vpop.xlane.xlu0 %2290
      %v2292 = vrcp.pop %v2291
      %v2293 = vmul.f32 %v2288, %v2292
      %v2294 = vpack.c.bf16 %v2293, %v2293
      %2295 = vrot.lane.b32.xlu0 %v2118, 88
      %v2296 = vpop.permute.xlu0 %2295
      %v2299 = vsel %vm2171, %v2294, 0
      %2301 = vmatprep.subr.bf16.mxu0 0
      %2302 = vmatpush1.bf16.msra.mxu0 %v2296
      %2303 = vmatprep.subr.bf16.mxu0 0
      %2304 = vmatpush1.bf16.msra.mxu0 0
      %2305 = vmatprep.subr.bf16.mxu0 0
      %2306 = vmatpush1.bf16.msra.mxu0 0
      %2307 = vmatprep.subr.bf16.mxu0 0
      %2308 = vmatpush1.bf16.msra.mxu0 0
      %2309 = vmatprep.subr.bf16.mxu0 0
      %2310 = vmatpush1.bf16.msra.mxu0 0
      %2311 = vmatprep.subr.bf16.mxu0 0
      %2312 = vmatpush1.bf16.msra.mxu0 0
      %2313 = vmatprep.subr.bf16.mxu0 0
      %2314 = vmatpush1.bf16.msra.mxu0 0
      %2315 = vmatprep.subr.bf16.mxu0 0
      %2316 = vmatpush1.bf16.msra.mxu0 0
      %2317 = vmatprep.subr.bf16.mxu0 0
      %2318 = vmatpush1.bf16.msra.mxu0 0
      %2319 = vmatprep.subr.bf16.mxu0 0
      %2320 = vmatpush1.bf16.msra.mxu0 0
      %2321 = vmatprep.subr.bf16.mxu0 0
      %2322 = vmatpush1.bf16.msra.mxu0 0
      %2323 = vmatprep.subr.bf16.mxu0 0
      %2324 = vmatpush1.bf16.msra.mxu0 0
      %2325 = vmatprep.subr.bf16.mxu0 0
      %2326 = vmatpush1.bf16.msra.mxu0 0
      %2327 = vmatprep.subr.bf16.mxu0 0
      %2328 = vmatpush1.bf16.msra.mxu0 0
      %2329 = vmatprep.subr.bf16.mxu0 0
      %2330 = vmatpush1.bf16.msra.mxu0 0
      %2331 = vmatprep.subr.bf16.mxu0 0
      %2332 = vmatpush1.bf16.msra.mxu0 0
      %2333 = vmatprep.mubr.bf16.mxu0 0
      %2334 = vmatmul.mubr.bf16.gmra.mrb[0].mxu0 %v2299
      %v2335 = vpop.f32.mrb[0].mxu0
      %v2336 = vadd.f32 0.0, %v2335
      %v2337 = vpop.f32.mrb[0].mxu0
      %v2338 = vpop.f32.mrb[0].mxu0
      %v2339 = vpop.f32.mrb[0].mxu0
      %2340 = vdwg.mxu0
      %2342 = vrot.lane.b32.xlu0 %v2336, 8
      %v2343 = vpop.permute.xlu0 %2342
      %2345 = vst.msk [vmem:[#allocation3] sm:$0xff] %vm1650, %v2343
      %2346 = vrot.lane.b32.xlu0 %v2117, 112
      %v2347 = vpop.permute.xlu0 %2346
      %2348 = vrot.lane.b32.xlu0 %v2118, 112
      %v2349 = vpop.permute.xlu0 %2348
      %v2351 = vsel %vm1426, %v2347, 0
      %v2354 = vsel %vm1426, %v2349, 0
      %2356 = vmatprep.subr.bf16.mxu0 0
      %2357 = vmatpush1.bf16.xpose.msra.mxu0 %v2354
      %2358 = vmatprep.subr.bf16.mxu0 0
      %2359 = vmatpush1.bf16.xpose.msra.mxu0 0
      %2360 = vmatprep.subr.bf16.mxu0 0
      %2361 = vmatpush1.bf16.xpose.msra.mxu0 0
      %2362 = vmatprep.subr.bf16.mxu0 0
      %2363 = vmatpush1.bf16.xpose.msra.mxu0 0
      %2364 = vmatprep.subr.bf16.mxu0 0
      %2365 = vmatpush1.bf16.xpose.msra.mxu0 0
      %2366 = vmatprep.subr.bf16.mxu0 0
      %2367 = vmatpush1.bf16.xpose.msra.mxu0 0
      %2368 = vmatprep.subr.bf16.mxu0 0
      %2369 = vmatpush1.bf16.xpose.msra.mxu0 0
      %2370 = vmatprep.subr.bf16.mxu0 0
      %2371 = vmatpush1.bf16.xpose.msra.mxu0 0
      %2372 = vmatprep.subr.bf16.mxu0 0
      %2373 = vmatpush1.bf16.xpose.msra.mxu0 0
      %2374 = vmatprep.subr.bf16.mxu0 0
      %2375 = vmatpush1.bf16.xpose.msra.mxu0 0
      %2376 = vmatprep.subr.bf16.mxu0 0
      %2377 = vmatpush1.bf16.xpose.msra.mxu0 0
      %2378 = vmatprep.subr.bf16.mxu0 0
      %2379 = vmatpush1.bf16.xpose.msra.mxu0 0
      %2380 = vmatprep.subr.bf16.mxu0 0
      %2381 = vmatpush1.bf16.xpose.msra.mxu0 0
      %2382 = vmatprep.subr.bf16.mxu0 0
      %2383 = vmatpush1.bf16.xpose.msra.mxu0 0
      %2384 = vmatprep.subr.bf16.mxu0 0
      %2385 = vmatpush1.bf16.xpose.msra.mxu0 0
      %2386 = vmatprep.subr.bf16.mxu0 0
      %2387 = vmatpush1.bf16.xpose.msra.mxu0 0
      %2388 = vmatprep.mubr.bf16.mxu0 0
      %2389 = vmatmul.mubr.bf16.gmra.mrb[0].mxu0 %v2351
      %v2390 = vpop.f32.mrb[0].mxu0
      %v2391 = vadd.f32 %v2123, %v2390
      %v2392 = vpop.f32.mrb[0].mxu0
      %v2393 = vpop.f32.mrb[0].mxu0
      %v2394 = vpop.f32.mrb[0].mxu0
      %2395 = vdwg.mxu0
      %v2396 = vsel %vm2171, %v2391, -inf
      %2397 = vmax.xlane.f32.xlu0 %v2396
      %v2398 = vpop.xlane.xlu0 %2397
      %v2399 = vsub.f32 %v2391, %v2398
      %v2400 = vmul.f32 %v2399, 1.442695
      %v2401 = vpow.pop %v2400
      %v2402 = vsel %vm2171, %v2401, 0.0
      %2403 = vadd.xlane.f32.xlu0 %v2402
      %v2404 = vpop.xlane.xlu0 %2403
      %v2405 = vrcp.pop %v2404
      %v2406 = vmul.f32 %v2401, %v2405
      %v2407 = vpack.c.bf16 %v2406, %v2406
      %2408 = vrot.lane.b32.xlu0 %v2118, 80
      %v2409 = vpop.permute.xlu0 %2408
      %v2412 = vsel %vm2171, %v2407, 0
      %2414 = vmatprep.subr.bf16.mxu0 0
      %2415 = vmatpush1.bf16.msra.mxu0 %v2409
      %2416 = vmatprep.subr.bf16.mxu0 0
      %2417 = vmatpush1.bf16.msra.mxu0 0
      %2418 = vmatprep.subr.bf16.mxu0 0
      %2419 = vmatpush1.bf16.msra.mxu0 0
      %2420 = vmatprep.subr.bf16.mxu0 0
      %2421 = vmatpush1.bf16.msra.mxu0 0
      %2422 = vmatprep.subr.bf16.mxu0 0
      %2423 = vmatpush1.bf16.msra.mxu0 0
      %2424 = vmatprep.subr.bf16.mxu0 0
      %2425 = vmatpush1.bf16.msra.mxu0 0
      %2426 = vmatprep.subr.bf16.mxu0 0
      %2427 = vmatpush1.bf16.msra.mxu0 0
      %2428 = vmatprep.subr.bf16.mxu0 0
      %2429 = vmatpush1.bf16.msra.mxu0 0
      %2430 = vmatprep.subr.bf16.mxu0 0
      %2431 = vmatpush1.bf16.msra.mxu0 0
      %2432 = vmatprep.subr.bf16.mxu0 0
      %2433 = vmatpush1.bf16.msra.mxu0 0
      %2434 = vmatprep.subr.bf16.mxu0 0
      %2435 = vmatpush1.bf16.msra.mxu0 0
      %2436 = vmatprep.subr.bf16.mxu0 0
      %2437 = vmatpush1.bf16.msra.mxu0 0
      %2438 = vmatprep.subr.bf16.mxu0 0
      %2439 = vmatpush1.bf16.msra.mxu0 0
      %2440 = vmatprep.subr.bf16.mxu0 0
      %2441 = vmatpush1.bf16.msra.mxu0 0
      %2442 = vmatprep.subr.bf16.mxu0 0
      %2443 = vmatpush1.bf16.msra.mxu0 0
      %2444 = vmatprep.subr.bf16.mxu0 0
      %2445 = vmatpush1.bf16.msra.mxu0 0
      %2446 = vmatprep.mubr.bf16.mxu0 0
      %2447 = vmatmul.mubr.bf16.gmra.mrb[0].mxu0 %v2412
      %v2448 = vpop.f32.mrb[0].mxu0
      %v2449 = vadd.f32 0.0, %v2448
      %v2450 = vpop.f32.mrb[0].mxu0
      %v2451 = vpop.f32.mrb[0].mxu0
      %v2452 = vpop.f32.mrb[0].mxu0
      %2453 = vdwg.mxu0
      %2455 = vrot.lane.b32.xlu0 %v2449, 16
      %v2456 = vpop.permute.xlu0 %2455
      %2458 = vst.msk [vmem:[#allocation3] sm:$0xff] %vm1766, %v2456
      %2459 = vrot.lane.b32.xlu0 %v2117, 104
      %v2460 = vpop.permute.xlu0 %2459
      %2461 = vrot.lane.b32.xlu0 %v2118, 104
      %v2462 = vpop.permute.xlu0 %2461
      %v2464 = vsel %vm1426, %v2460, 0
      %v2467 = vsel %vm1426, %v2462, 0
      %2469 = vmatprep.subr.bf16.mxu0 0
      %2470 = vmatpush1.bf16.xpose.msra.mxu0 %v2467
      %2471 = vmatprep.subr.bf16.mxu0 0
      %2472 = vmatpush1.bf16.xpose.msra.mxu0 0
      %2473 = vmatprep.subr.bf16.mxu0 0
      %2474 = vmatpush1.bf16.xpose.msra.mxu0 0
      %2475 = vmatprep.subr.bf16.mxu0 0
      %2476 = vmatpush1.bf16.xpose.msra.mxu0 0
      %2477 = vmatprep.subr.bf16.mxu0 0
      %2478 = vmatpush1.bf16.xpose.msra.mxu0 0
      %2479 = vmatprep.subr.bf16.mxu0 0
      %2480 = vmatpush1.bf16.xpose.msra.mxu0 0
      %2481 = vmatprep.subr.bf16.mxu0 0
      %2482 = vmatpush1.bf16.xpose.msra.mxu0 0
      %2483 = vmatprep.subr.bf16.mxu0 0
      %2484 = vmatpush1.bf16.xpose.msra.mxu0 0
      %2485 = vmatprep.subr.bf16.mxu0 0
      %2486 = vmatpush1.bf16.xpose.msra.mxu0 0
      %2487 = vmatprep.subr.bf16.mxu0 0
      %2488 = vmatpush1.bf16.xpose.msra.mxu0 0
      %2489 = vmatprep.subr.bf16.mxu0 0
      %2490 = vmatpush1.bf16.xpose.msra.mxu0 0
      %2491 = vmatprep.subr.bf16.mxu0 0
      %2492 = vmatpush1.bf16.xpose.msra.mxu0 0
      %2493 = vmatprep.subr.bf16.mxu0 0
      %2494 = vmatpush1.bf16.xpose.msra.mxu0 0
      %2495 = vmatprep.subr.bf16.mxu0 0
      %2496 = vmatpush1.bf16.xpose.msra.mxu0 0
      %2497 = vmatprep.subr.bf16.mxu0 0
      %2498 = vmatpush1.bf16.xpose.msra.mxu0 0
      %2499 = vmatprep.subr.bf16.mxu0 0
      %2500 = vmatpush1.bf16.xpose.msra.mxu0 0
      %2501 = vmatprep.mubr.bf16.mxu0 0
      %2502 = vmatmul.mubr.bf16.gmra.mrb[0].mxu0 %v2464
      %v2503 = vpop.f32.mrb[0].mxu0
      %v2504 = vadd.f32 %v2123, %v2503
      %v2505 = vpop.f32.mrb[0].mxu0
      %v2506 = vpop.f32.mrb[0].mxu0
      %v2507 = vpop.f32.mrb[0].mxu0
      %2508 = vdwg.mxu0
      %v2509 = vsel %vm2171, %v2504, -inf
      %2510 = vmax.xlane.f32.xlu0 %v2509
      %v2511 = vpop.xlane.xlu0 %2510
      %v2512 = vsub.f32 %v2504, %v2511
      %v2513 = vmul.f32 %v2512, 1.442695
      %v2514 = vpow.pop %v2513
      %v2515 = vsel %vm2171, %v2514, 0.0
      %2516 = vadd.xlane.f32.xlu0 %v2515
      %v2517 = vpop.xlane.xlu0 %2516
      %v2518 = vrcp.pop %v2517
      %v2519 = vmul.f32 %v2514, %v2518
      %v2520 = vpack.c.bf16 %v2519, %v2519
      %2521 = vrot.lane.b32.xlu0 %v2118, 72
      %v2522 = vpop.permute.xlu0 %2521
      %v2525 = vsel %vm2171, %v2520, 0
      %2527 = vmatprep.subr.bf16.mxu0 0
      %2528 = vmatpush1.bf16.msra.mxu0 %v2522
      %2529 = vmatprep.subr.bf16.mxu0 0
      %2530 = vmatpush1.bf16.msra.mxu0 0
      %2531 = vmatprep.subr.bf16.mxu0 0
      %2532 = vmatpush1.bf16.msra.mxu0 0
      %2533 = vmatprep.subr.bf16.mxu0 0
      %2534 = vmatpush1.bf16.msra.mxu0 0
      %2535 = vmatprep.subr.bf16.mxu0 0
      %2536 = vmatpush1.bf16.msra.mxu0 0
      %2537 = vmatprep.subr.bf16.mxu0 0
      %2538 = vmatpush1.bf16.msra.mxu0 0
      %2539 = vmatprep.subr.bf16.mxu0 0
      %2540 = vmatpush1.bf16.msra.mxu0 0
      %2541 = vmatprep.subr.bf16.mxu0 0
      %2542 = vmatpush1.bf16.msra.mxu0 0
      %2543 = vmatprep.subr.bf16.mxu0 0
      %2544 = vmatpush1.bf16.msra.mxu0 0
      %2545 = vmatprep.subr.bf16.mxu0 0
      %2546 = vmatpush1.bf16.msra.mxu0 0
      %2547 = vmatprep.subr.bf16.mxu0 0
      %2548 = vmatpush1.bf16.msra.mxu0 0
      %2549 = vmatprep.subr.bf16.mxu0 0
      %2550 = vmatpush1.bf16.msra.mxu0 0
      %2551 = vmatprep.subr.bf16.mxu0 0
      %2552 = vmatpush1.bf16.msra.mxu0 0
      %2553 = vmatprep.subr.bf16.mxu0 0
      %2554 = vmatpush1.bf16.msra.mxu0 0
      %2555 = vmatprep.subr.bf16.mxu0 0
      %2556 = vmatpush1.bf16.msra.mxu0 0
      %2557 = vmatprep.subr.bf16.mxu0 0
      %2558 = vmatpush1.bf16.msra.mxu0 0
      %2559 = vmatprep.mubr.bf16.mxu0 0
      %2560 = vmatmul.mubr.bf16.gmra.mrb[0].mxu0 %v2525
      %v2561 = vpop.f32.mrb[0].mxu0
      %v2562 = vadd.f32 0.0, %v2561
      %v2563 = vpop.f32.mrb[0].mxu0
      %v2564 = vpop.f32.mrb[0].mxu0
      %v2565 = vpop.f32.mrb[0].mxu0
      %2566 = vdwg.mxu0
      %2568 = vrot.lane.b32.xlu0 %v2562, 24
      %v2569 = vpop.permute.xlu0 %2568
      %2571 = vst.msk [vmem:[#allocation3] sm:$0xff] %vm1882, %v2569
      %v2572 = vld [vmem:[#allocation3] sm:$0xff]
      %v2573 = vpack.c.bf16 %v2572, %v2572
      %v2575 = vlaneseq
      %v2576 = vshrl.u32 %v2575, 7
      %v2577 = vsub.s32 0, %v2576
      %v2578 = vrot.slane %v2116, %v2577
      %v2584 = vunpack.c.l.b16 %v2112
      %v2585 = vunpack.c.l.b16 %v2113
      %v2586 = vunpack.c.l.b16 %v2114
      %v2587 = vunpack.c.l.b16 %v2115
      %v2588 = vpack.c.b16 %v2585, %v2584
      %v2589 = vpack.c.b16 %v2587, %v2586
      %v2593 = vsel %vm1371, %v2573, 0
      %2595 = vmatprep.subr.bf16.mxu0 0
      %2596 = vmatpush1.bf16.msra.mxu0 %v2588
      %2597 = vmatprep.subr.bf16.mxu0 0
      %2598 = vmatpush1.bf16.msra.mxu0 %v2589
      %2599 = vmatprep.subr.bf16.mxu0 0
      %2600 = vmatpush1.bf16.msra.mxu0 0
      %2601 = vmatprep.subr.bf16.mxu0 0
      %2602 = vmatpush1.bf16.msra.mxu0 0
      %2603 = vmatprep.subr.bf16.mxu0 0
      %2604 = vmatpush1.bf16.msra.mxu0 0
      %2605 = vmatprep.subr.bf16.mxu0 0
      %2606 = vmatpush1.bf16.msra.mxu0 0
      %2607 = vmatprep.subr.bf16.mxu0 0
      %2608 = vmatpush1.bf16.msra.mxu0 0
      %2609 = vmatprep.subr.bf16.mxu0 0
      %2610 = vmatpush1.bf16.msra.mxu0 0
      %2611 = vmatprep.subr.bf16.mxu0 0
      %2612 = vmatpush1.bf16.msra.mxu0 0
      %2613 = vmatprep.subr.bf16.mxu0 0
      %2614 = vmatpush1.bf16.msra.mxu0 0
      %2615 = vmatprep.subr.bf16.mxu0 0
      %2616 = vmatpush1.bf16.msra.mxu0 0
      %2617 = vmatprep.subr.bf16.mxu0 0
      %2618 = vmatpush1.bf16.msra.mxu0 0
      %2619 = vmatprep.subr.bf16.mxu0 0
      %2620 = vmatpush1.bf16.msra.mxu0 0
      %2621 = vmatprep.subr.bf16.mxu0 0
      %2622 = vmatpush1.bf16.msra.mxu0 0
      %2623 = vmatprep.subr.bf16.mxu0 0
      %2624 = vmatpush1.bf16.msra.mxu0 0
      %2625 = vmatprep.subr.bf16.mxu0 0
      %2626 = vmatpush1.bf16.msra.mxu0 0
      %2627 = vmatprep.mubr.bf16.mxu0 0
      %2628 = vmatmul.mubr.bf16.gmra.mrb[0].mxu0 %v2593
      %v2629 = vpop.f32.mrb[0].mxu0
      %v2630 = vadd.f32 %v2578, %v2629
      %v2631 = vpop.f32.mrb[0].mxu0
      %v2632 = vpop.f32.mrb[0].mxu0
      %v2633 = vpop.f32.mrb[0].mxu0
      %2634 = vdwg.mxu0
      %v2635 = vadd.f32 %v1975, %v2630
      %v2636 = vsel %vm1371, %v2635, 0.0
      %2637 = vadd.xlane.f32.xlu0 %v2636
      %v2638 = vpop.xlane.xlu0 %2637
      %v2639 = vmul.f32 %v2638, %v1951
      %v2640 = vsub.f32 %v2635, %v2639
      %v2641 = vmul.f32 %v2640, %v2640
      %v2642 = vsel %vm1371, %v2641, 0.0
      %2643 = vadd.xlane.f32.xlu0 %v2642
      %v2644 = vpop.xlane.xlu0 %2643
      %v2645 = vmul.f32 %v2644, %v1951
      %v2646 = vadd.f32 %v2645, 1e-05
      %v2647 = vrsqrt.pop %v2646
      %v2648 = vmul.f32 %v2640, %v2647
      %v2650 = vlaneseq
      %v2651 = vshrl.u32 %v2650, 7
      %v2652 = vsub.s32 0, %v2651
      %v2653 = vrot.slane %v1340, %v2652
      %v2655 = vmul.f32 %v2648, %v2653
      %v2657 = vlaneseq
      %v2658 = vshrl.u32 %v2657, 7
      %v2659 = vsub.s32 0, %v2658
      %v2660 = vrot.slane %v1344, %v2659
      %v2662 = vadd.f32 %v2655, %v2660
      %v2663 = vld [vmem:[%s1276] sm:$0xf]
      %v2664 = vld [vmem:[%s1276 + $0x4] sm:$0xf]
      %v2665 = vld [vmem:[%s1276 + $0x8] sm:$0xf]
      %v2666 = vld [vmem:[%s1276 + $0xc] sm:$0xf]
      %v2667 = vpack.c.bf16 %v2662, %v2662
      %v2668 = vld [vmem:[%s1279] sm:$0x1]
      %v2670 = vlaneseq
      %v2671 = vshrl.u32 %v2670, 7
      %v2672 = vsub.s32 0, %v2671
      %v2673 = vrot.slane %v2668, %v2672
      %v2679 = vunpack.c.l.b16 %v2663
      %v2680 = vunpack.c.l.b16 %v2664
      %v2681 = vunpack.c.l.b16 %v2665
      %v2682 = vunpack.c.l.b16 %v2666
      %v2683 = vpack.c.b16 %v2680, %v2679
      %v2684 = vpack.c.b16 %v2682, %v2681
      %v2688 = vsel %vm1371, %v2667, 0
      %2690 = vmatprep.subr.bf16.mxu0 0
      %2691 = vmatpush1.bf16.msra.mxu0 %v2683
      %2692 = vmatprep.subr.bf16.mxu0 0
      %2693 = vmatpush1.bf16.msra.mxu0 %v2684
      %2694 = vmatprep.subr.bf16.mxu0 0
      %2695 = vmatpush1.bf16.msra.mxu0 0
      %2696 = vmatprep.subr.bf16.mxu0 0
      %2697 = vmatpush1.bf16.msra.mxu0 0
      %2698 = vmatprep.subr.bf16.mxu0 0
      %2699 = vmatpush1.bf16.msra.mxu0 0
      %2700 = vmatprep.subr.bf16.mxu0 0
      %2701 = vmatpush1.bf16.msra.mxu0 0
      %2702 = vmatprep.subr.bf16.mxu0 0
      %2703 = vmatpush1.bf16.msra.mxu0 0
      %2704 = vmatprep.subr.bf16.mxu0 0
      %2705 = vmatpush1.bf16.msra.mxu0 0
      %2706 = vmatprep.subr.bf16.mxu0 0
      %2707 = vmatpush1.bf16.msra.mxu0 0
      %2708 = vmatprep.subr.bf16.mxu0 0
      %2709 = vmatpush1.bf16.msra.mxu0 0
      %2710 = vmatprep.subr.bf16.mxu0 0
      %2711 = vmatpush1.bf16.msra.mxu0 0
      %2712 = vmatprep.subr.bf16.mxu0 0
      %2713 = vmatpush1.bf16.msra.mxu0 0
      %2714 = vmatprep.subr.bf16.mxu0 0
      %2715 = vmatpush1.bf16.msra.mxu0 0
      %2716 = vmatprep.subr.bf16.mxu0 0
      %2717 = vmatpush1.bf16.msra.mxu0 0
      %2718 = vmatprep.subr.bf16.mxu0 0
      %2719 = vmatpush1.bf16.msra.mxu0 0
      %2720 = vmatprep.subr.bf16.mxu0 0
      %2721 = vmatpush1.bf16.msra.mxu0 0
      %2722 = vmatprep.mubr.bf16.mxu0 0
      %2723 = vmatmul.mubr.bf16.gmra.mrb[0].mxu0 %v2688
      %v2724 = vpop.f32.mrb[0].mxu0
      %v2725 = vadd.f32 %v2673, %v2724
      %v2726 = vpop.f32.mrb[0].mxu0
      %v2727 = vpop.f32.mrb[0].mxu0
      %v2728 = vpop.f32.mrb[0].mxu0
      %2729 = vdwg.mxu0
      %v2730 = vmul.f32 %v2725, 0.35355338
      %v2731 = vld [vmem:[%s1284] sm:$0xf]
      %v2732 = vld [vmem:[%s1284 + $0x4] sm:$0xf]
      %v2733 = vld [vmem:[%s1284 + $0x8] sm:$0xf]
      %v2734 = vld [vmem:[%s1284 + $0xc] sm:$0xf]
      %v2735 = vpack.c.bf16 %v1336, %v1335
      %v2736 = vld [vmem:[%s1287] sm:$0x1]
      %v2738 = vlaneseq
      %v2739 = vshrl.u32 %v2738, 7
      %v2740 = vsub.s32 0, %v2739
      %v2741 = vrot.slane %v2736, %v2740
      %v2747 = vunpack.c.l.b16 %v2731
      %v2748 = vunpack.c.l.b16 %v2732
      %v2749 = vunpack.c.l.b16 %v2733
      %v2750 = vunpack.c.l.b16 %v2734
      %v2751 = vpack.c.b16 %v2748, %v2747
      %v2752 = vpack.c.b16 %v2750, %v2749
      %v2756 = vsel %vm1371, %v2735, 0
      %2758 = vmatprep.subr.bf16.mxu0 0
      %2759 = vmatpush1.bf16.msra.mxu0 %v2751
      %2760 = vmatprep.subr.bf16.mxu0 0
      %2761 = vmatpush1.bf16.msra.mxu0 %v2752
      %2762 = vmatprep.subr.bf16.mxu0 0
      %2763 = vmatpush1.bf16.msra.mxu0 0
      %2764 = vmatprep.subr.bf16.mxu0 0
      %2765 = vmatpush1.bf16.msra.mxu0 0
      %2766 = vmatprep.subr.bf16.mxu0 0
      %2767 = vmatpush1.bf16.msra.mxu0 0
      %2768 = vmatprep.subr.bf16.mxu0 0
      %2769 = vmatpush1.bf16.msra.mxu0 0
      %2770 = vmatprep.subr.bf16.mxu0 0
      %2771 = vmatpush1.bf16.msra.mxu0 0
      %2772 = vmatprep.subr.bf16.mxu0 0
      %2773 = vmatpush1.bf16.msra.mxu0 0
      %2774 = vmatprep.subr.bf16.mxu0 0
      %2775 = vmatpush1.bf16.msra.mxu0 0
      %2776 = vmatprep.subr.bf16.mxu0 0
      %2777 = vmatpush1.bf16.msra.mxu0 0
      %2778 = vmatprep.subr.bf16.mxu0 0
      %2779 = vmatpush1.bf16.msra.mxu0 0
      %2780 = vmatprep.subr.bf16.mxu0 0
      %2781 = vmatpush1.bf16.msra.mxu0 0
      %2782 = vmatprep.subr.bf16.mxu0 0
      %2783 = vmatpush1.bf16.msra.mxu0 0
      %2784 = vmatprep.subr.bf16.mxu0 0
      %2785 = vmatpush1.bf16.msra.mxu0 0
      %2786 = vmatprep.subr.bf16.mxu0 0
      %2787 = vmatpush1.bf16.msra.mxu0 0
      %2788 = vmatprep.subr.bf16.mxu0 0
      %2789 = vmatpush1.bf16.msra.mxu0 0
      %2790 = vmatprep.mubr.bf16.mxu0 0
      %2791 = vmatmul.mubr.bf16.gmra.mrb[0].mxu0 %v2756
      %v2792 = vpop.f32.mrb[0].mxu0
      %v2793 = vadd.f32 %v2741, %v2792
      %v2794 = vpop.f32.mrb[0].mxu0
      %v2795 = vpop.f32.mrb[0].mxu0
      %v2796 = vadd.f32 %v2741, %v2795
      %v2797 = vpop.f32.mrb[0].mxu0
      %2798 = vdwg.mxu0
      %v2799 = vld [vmem:[%s1292] sm:$0xf]
      %v2800 = vld [vmem:[%s1292 + $0x4] sm:$0xf]
      %v2801 = vld [vmem:[%s1292 + $0x8] sm:$0xf]
      %v2802 = vld [vmem:[%s1292 + $0xc] sm:$0xf]
      %v2803 = vld [vmem:[%s1295] sm:$0x1]
      %v2804 = vpack.c.bf16 %v2730, %v2730
      %v2805 = vpack.c.bf16 %v2796, %v2793
      %v2807 = vsel %vm1426, %v2804, 0
      %v2810 = vsel %vm1426, %v2805, 0
      %2812 = vmatprep.subr.bf16.mxu0 0
      %2813 = vmatpush1.bf16.xpose.msra.mxu0 %v2810
      %2814 = vmatprep.subr.bf16.mxu0 0
      %2815 = vmatpush1.bf16.xpose.msra.mxu0 0
      %2816 = vmatprep.subr.bf16.mxu0 0
      %2817 = vmatpush1.bf16.xpose.msra.mxu0 0
      %2818 = vmatprep.subr.bf16.mxu0 0
      %2819 = vmatpush1.bf16.xpose.msra.mxu0 0
      %2820 = vmatprep.subr.bf16.mxu0 0
      %2821 = vmatpush1.bf16.xpose.msra.mxu0 0
      %2822 = vmatprep.subr.bf16.mxu0 0
      %2823 = vmatpush1.bf16.xpose.msra.mxu0 0
      %2824 = vmatprep.subr.bf16.mxu0 0
      %2825 = vmatpush1.bf16.xpose.msra.mxu0 0
      %2826 = vmatprep.subr.bf16.mxu0 0
      %2827 = vmatpush1.bf16.xpose.msra.mxu0 0
      %2828 = vmatprep.subr.bf16.mxu0 0
      %2829 = vmatpush1.bf16.xpose.msra.mxu0 0
      %2830 = vmatprep.subr.bf16.mxu0 0
      %2831 = vmatpush1.bf16.xpose.msra.mxu0 0
      %2832 = vmatprep.subr.bf16.mxu0 0
      %2833 = vmatpush1.bf16.xpose.msra.mxu0 0
      %2834 = vmatprep.subr.bf16.mxu0 0
      %2835 = vmatpush1.bf16.xpose.msra.mxu0 0
      %2836 = vmatprep.subr.bf16.mxu0 0
      %2837 = vmatpush1.bf16.xpose.msra.mxu0 0
      %2838 = vmatprep.subr.bf16.mxu0 0
      %2839 = vmatpush1.bf16.xpose.msra.mxu0 0
      %2840 = vmatprep.subr.bf16.mxu0 0
      %2841 = vmatpush1.bf16.xpose.msra.mxu0 0
      %2842 = vmatprep.subr.bf16.mxu0 0
      %2843 = vmatpush1.bf16.xpose.msra.mxu0 0
      %2844 = vmatprep.mubr.bf16.mxu0 0
      %2845 = vmatmul.mubr.bf16.gmra.mrb[0].mxu0 %v2807
      %v2846 = vpop.f32.mrb[0].mxu0
      %v2847 = vadd.f32 0.0, %v2846
      %v2848 = vpop.f32.mrb[0].mxu0
      %v2849 = vpop.f32.mrb[0].mxu0
      %v2850 = vpop.f32.mrb[0].mxu0
      %2851 = vdwg.mxu0
      %v2852 = vsel %vm2171, %v2847, -inf
      %2853 = vmax.xlane.f32.xlu0 %v2852
      %v2854 = vpop.xlane.xlu0 %2853
      %v2855 = vsub.f32 %v2847, %v2854
      %v2856 = vmul.f32 %v2855, 1.442695
      %v2857 = vpow.pop %v2856
      %v2858 = vsel %vm2171, %v2857, 0.0
      %2859 = vadd.xlane.f32.xlu0 %v2858
      %v2860 = vpop.xlane.xlu0 %2859
      %v2861 = vrcp.pop %v2860
      %v2862 = vmul.f32 %v2857, %v2861
      %v2863 = vpack.c.bf16 %v2862, %v2862
      %2865 = vrot.lane.b32.xlu0 %v2805, 96
      %v2866 = vpop.permute.xlu0 %2865
      %v2869 = vsel %vm2171, %v2863, 0
      %2871 = vmatprep.subr.bf16.mxu0 0
      %2872 = vmatpush1.bf16.msra.mxu0 %v2866
      %2873 = vmatprep.subr.bf16.mxu0 0
      %2874 = vmatpush1.bf16.msra.mxu0 0
      %2875 = vmatprep.subr.bf16.mxu0 0
      %2876 = vmatpush1.bf16.msra.mxu0 0
      %2877 = vmatprep.subr.bf16.mxu0 0
      %2878 = vmatpush1.bf16.msra.mxu0 0
      %2879 = vmatprep.subr.bf16.mxu0 0
      %2880 = vmatpush1.bf16.msra.mxu0 0
      %2881 = vmatprep.subr.bf16.mxu0 0
      %2882 = vmatpush1.bf16.msra.mxu0 0
      %2883 = vmatprep.subr.bf16.mxu0 0
      %2884 = vmatpush1.bf16.msra.mxu0 0
      %2885 = vmatprep.subr.bf16.mxu0 0
      %2886 = vmatpush1.bf16.msra.mxu0 0
      %2887 = vmatprep.subr.bf16.mxu0 0
      %2888 = vmatpush1.bf16.msra.mxu0 0
      %2889 = vmatprep.subr.bf16.mxu0 0
      %2890 = vmatpush1.bf16.msra.mxu0 0
      %2891 = vmatprep.subr.bf16.mxu0 0
      %2892 = vmatpush1.bf16.msra.mxu0 0
      %2893 = vmatprep.subr.bf16.mxu0 0
      %2894 = vmatpush1.bf16.msra.mxu0 0
      %2895 = vmatprep.subr.bf16.mxu0 0
      %2896 = vmatpush1.bf16.msra.mxu0 0
      %2897 = vmatprep.subr.bf16.mxu0 0
      %2898 = vmatpush1.bf16.msra.mxu0 0
      %2899 = vmatprep.subr.bf16.mxu0 0
      %2900 = vmatpush1.bf16.msra.mxu0 0
      %2901 = vmatprep.subr.bf16.mxu0 0
      %2902 = vmatpush1.bf16.msra.mxu0 0
      %2903 = vmatprep.mubr.bf16.mxu0 0
      %2904 = vmatmul.mubr.bf16.gmra.mrb[0].mxu0 %v2869
      %v2905 = vpop.f32.mrb[0].mxu0
      %v2906 = vadd.f32 0.0, %v2905
      %v2907 = vpop.f32.mrb[0].mxu0
      %v2908 = vpop.f32.mrb[0].mxu0
      %v2909 = vpop.f32.mrb[0].mxu0
      %2910 = vdwg.mxu0
      %2911 = vst.msk [vmem:[#allocation3] sm:$0xff] %vm1426, %v2906
      %2913 = vrot.lane.b32.xlu0 %v2804, 120
      %v2914 = vpop.permute.xlu0 %2913
      %2915 = vrot.lane.b32.xlu0 %v2805, 120
      %v2916 = vpop.permute.xlu0 %2915
      %v2918 = vsel %vm1426, %v2914, 0
      %v2921 = vsel %vm1426, %v2916, 0
      %2923 = vmatprep.subr.bf16.mxu0 0
      %2924 = vmatpush1.bf16.xpose.msra.mxu0 %v2921
      %2925 = vmatprep.subr.bf16.mxu0 0
      %2926 = vmatpush1.bf16.xpose.msra.mxu0 0
      %2927 = vmatprep.subr.bf16.mxu0 0
      %2928 = vmatpush1.bf16.xpose.msra.mxu0 0
      %2929 = vmatprep.subr.bf16.mxu0 0
      %2930 = vmatpush1.bf16.xpose.msra.mxu0 0
      %2931 = vmatprep.subr.bf16.mxu0 0
      %2932 = vmatpush1.bf16.xpose.msra.mxu0 0
      %2933 = vmatprep.subr.bf16.mxu0 0
      %2934 = vmatpush1.bf16.xpose.msra.mxu0 0
      %2935 = vmatprep.subr.bf16.mxu0 0
      %2936 = vmatpush1.bf16.xpose.msra.mxu0 0
      %2937 = vmatprep.subr.bf16.mxu0 0
      %2938 = vmatpush1.bf16.xpose.msra.mxu0 0
      %2939 = vmatprep.subr.bf16.mxu0 0
      %2940 = vmatpush1.bf16.xpose.msra.mxu0 0
      %2941 = vmatprep.subr.bf16.mxu0 0
      %2942 = vmatpush1.bf16.xpose.msra.mxu0 0
      %2943 = vmatprep.subr.bf16.mxu0 0
      %2944 = vmatpush1.bf16.xpose.msra.mxu0 0
      %2945 = vmatprep.subr.bf16.mxu0 0
      %2946 = vmatpush1.bf16.xpose.msra.mxu0 0
      %2947 = vmatprep.subr.bf16.mxu0 0
      %2948 = vmatpush1.bf16.xpose.msra.mxu0 0
      %2949 = vmatprep.subr.bf16.mxu0 0
      %2950 = vmatpush1.bf16.xpose.msra.mxu0 0
      %2951 = vmatprep.subr.bf16.mxu0 0
      %2952 = vmatpush1.bf16.xpose.msra.mxu0 0
      %2953 = vmatprep.subr.bf16.mxu0 0
      %2954 = vmatpush1.bf16.xpose.msra.mxu0 0
      %2955 = vmatprep.mubr.bf16.mxu0 0
      %2956 = vmatmul.mubr.bf16.gmra.mrb[0].mxu0 %v2918
      %v2957 = vpop.f32.mrb[0].mxu0
      %v2958 = vadd.f32 0.0, %v2957
      %v2959 = vpop.f32.mrb[0].mxu0
      %v2960 = vpop.f32.mrb[0].mxu0
      %v2961 = vpop.f32.mrb[0].mxu0
      %2962 = vdwg.mxu0
      %v2963 = vsel %vm2171, %v2958, -inf
      %2964 = vmax.xlane.f32.xlu0 %v2963
      %v2965 = vpop.xlane.xlu0 %2964
      %v2966 = vsub.f32 %v2958, %v2965
      %v2967 = vmul.f32 %v2966, 1.442695
      %v2968 = vpow.pop %v2967
      %v2969 = vsel %vm2171, %v2968, 0.0
      %2970 = vadd.xlane.f32.xlu0 %v2969
      %v2971 = vpop.xlane.xlu0 %2970
      %v2972 = vrcp.pop %v2971
      %v2973 = vmul.f32 %v2968, %v2972
      %v2974 = vpack.c.bf16 %v2973, %v2973
      %2975 = vrot.lane.b32.xlu0 %v2805, 88
      %v2976 = vpop.permute.xlu0 %2975
      %v2979 = vsel %vm2171, %v2974, 0
      %2981 = vmatprep.subr.bf16.mxu0 0
      %2982 = vmatpush1.bf16.msra.mxu0 %v2976
      %2983 = vmatprep.subr.bf16.mxu0 0
      %2984 = vmatpush1.bf16.msra.mxu0 0
      %2985 = vmatprep.subr.bf16.mxu0 0
      %2986 = vmatpush1.bf16.msra.mxu0 0
      %2987 = vmatprep.subr.bf16.mxu0 0
      %2988 = vmatpush1.bf16.msra.mxu0 0
      %2989 = vmatprep.subr.bf16.mxu0 0
      %2990 = vmatpush1.bf16.msra.mxu0 0
      %2991 = vmatprep.subr.bf16.mxu0 0
      %2992 = vmatpush1.bf16.msra.mxu0 0
      %2993 = vmatprep.subr.bf16.mxu0 0
      %2994 = vmatpush1.bf16.msra.mxu0 0
      %2995 = vmatprep.subr.bf16.mxu0 0
      %2996 = vmatpush1.bf16.msra.mxu0 0
      %2997 = vmatprep.subr.bf16.mxu0 0
      %2998 = vmatpush1.bf16.msra.mxu0 0
      %2999 = vmatprep.subr.bf16.mxu0 0
      %3000 = vmatpush1.bf16.msra.mxu0 0
      %3001 = vmatprep.subr.bf16.mxu0 0
      %3002 = vmatpush1.bf16.msra.mxu0 0
      %3003 = vmatprep.subr.bf16.mxu0 0
      %3004 = vmatpush1.bf16.msra.mxu0 0
      %3005 = vmatprep.subr.bf16.mxu0 0
      %3006 = vmatpush1.bf16.msra.mxu0 0
      %3007 = vmatprep.subr.bf16.mxu0 0
      %3008 = vmatpush1.bf16.msra.mxu0 0
      %3009 = vmatprep.subr.bf16.mxu0 0
      %3010 = vmatpush1.bf16.msra.mxu0 0
      %3011 = vmatprep.subr.bf16.mxu0 0
      %3012 = vmatpush1.bf16.msra.mxu0 0
      %3013 = vmatprep.mubr.bf16.mxu0 0
      %3014 = vmatmul.mubr.bf16.gmra.mrb[0].mxu0 %v2979
      %v3015 = vpop.f32.mrb[0].mxu0
      %v3016 = vadd.f32 0.0, %v3015
      %v3017 = vpop.f32.mrb[0].mxu0
      %v3018 = vpop.f32.mrb[0].mxu0
      %v3019 = vpop.f32.mrb[0].mxu0
      %3020 = vdwg.mxu0
      %3022 = vrot.lane.b32.xlu0 %v3016, 8
      %v3023 = vpop.permute.xlu0 %3022
      %3025 = vst.msk [vmem:[#allocation3] sm:$0xff] %vm1650, %v3023
      %3026 = vrot.lane.b32.xlu0 %v2804, 112
      %v3027 = vpop.permute.xlu0 %3026
      %3028 = vrot.lane.b32.xlu0 %v2805, 112
      %v3029 = vpop.permute.xlu0 %3028
      %v3031 = vsel %vm1426, %v3027, 0
      %v3034 = vsel %vm1426, %v3029, 0
      %3036 = vmatprep.subr.bf16.mxu0 0
      %3037 = vmatpush1.bf16.xpose.msra.mxu0 %v3034
      %3038 = vmatprep.subr.bf16.mxu0 0
      %3039 = vmatpush1.bf16.xpose.msra.mxu0 0
      %3040 = vmatprep.subr.bf16.mxu0 0
      %3041 = vmatpush1.bf16.xpose.msra.mxu0 0
      %3042 = vmatprep.subr.bf16.mxu0 0
      %3043 = vmatpush1.bf16.xpose.msra.mxu0 0
      %3044 = vmatprep.subr.bf16.mxu0 0
      %3045 = vmatpush1.bf16.xpose.msra.mxu0 0
      %3046 = vmatprep.subr.bf16.mxu0 0
      %3047 = vmatpush1.bf16.xpose.msra.mxu0 0
      %3048 = vmatprep.subr.bf16.mxu0 0
      %3049 = vmatpush1.bf16.xpose.msra.mxu0 0
      %3050 = vmatprep.subr.bf16.mxu0 0
      %3051 = vmatpush1.bf16.xpose.msra.mxu0 0
      %3052 = vmatprep.subr.bf16.mxu0 0
      %3053 = vmatpush1.bf16.xpose.msra.mxu0 0
      %3054 = vmatprep.subr.bf16.mxu0 0
      %3055 = vmatpush1.bf16.xpose.msra.mxu0 0
      %3056 = vmatprep.subr.bf16.mxu0 0
      %3057 = vmatpush1.bf16.xpose.msra.mxu0 0
      %3058 = vmatprep.subr.bf16.mxu0 0
      %3059 = vmatpush1.bf16.xpose.msra.mxu0 0
      %3060 = vmatprep.subr.bf16.mxu0 0
      %3061 = vmatpush1.bf16.xpose.msra.mxu0 0
      %3062 = vmatprep.subr.bf16.mxu0 0
      %3063 = vmatpush1.bf16.xpose.msra.mxu0 0
      %3064 = vmatprep.subr.bf16.mxu0 0
      %3065 = vmatpush1.bf16.xpose.msra.mxu0 0
      %3066 = vmatprep.subr.bf16.mxu0 0
      %3067 = vmatpush1.bf16.xpose.msra.mxu0 0
      %3068 = vmatprep.mubr.bf16.mxu0 0
      %3069 = vmatmul.mubr.bf16.gmra.mrb[0].mxu0 %v3031
      %v3070 = vpop.f32.mrb[0].mxu0
      %v3071 = vadd.f32 0.0, %v3070
      %v3072 = vpop.f32.mrb[0].mxu0
      %v3073 = vpop.f32.mrb[0].mxu0
      %v3074 = vpop.f32.mrb[0].mxu0
      %3075 = vdwg.mxu0
      %v3076 = vsel %vm2171, %v3071, -inf
      %3077 = vmax.xlane.f32.xlu0 %v3076
      %v3078 = vpop.xlane.xlu0 %3077
      %v3079 = vsub.f32 %v3071, %v3078
      %v3080 = vmul.f32 %v3079, 1.442695
      %v3081 = vpow.pop %v3080
      %v3082 = vsel %vm2171, %v3081, 0.0
      %3083 = vadd.xlane.f32.xlu0 %v3082
      %v3084 = vpop.xlane.xlu0 %3083
      %v3085 = vrcp.pop %v3084
      %v3086 = vmul.f32 %v3081, %v3085
      %v3087 = vpack.c.bf16 %v3086, %v3086
      %3088 = vrot.lane.b32.xlu0 %v2805, 80
      %v3089 = vpop.permute.xlu0 %3088
      %v3092 = vsel %vm2171, %v3087, 0
      %3094 = vmatprep.subr.bf16.mxu0 0
      %3095 = vmatpush1.bf16.msra.mxu0 %v3089
      %3096 = vmatprep.subr.bf16.mxu0 0
      %3097 = vmatpush1.bf16.msra.mxu0 0
      %3098 = vmatprep.subr.bf16.mxu0 0
      %3099 = vmatpush1.bf16.msra.mxu0 0
      %3100 = vmatprep.subr.bf16.mxu0 0
      %3101 = vmatpush1.bf16.msra.mxu0 0
      %3102 = vmatprep.subr.bf16.mxu0 0
      %3103 = vmatpush1.bf16.msra.mxu0 0
      %3104 = vmatprep.subr.bf16.mxu0 0
      %3105 = vmatpush1.bf16.msra.mxu0 0
      %3106 = vmatprep.subr.bf16.mxu0 0
      %3107 = vmatpush1.bf16.msra.mxu0 0
      %3108 = vmatprep.subr.bf16.mxu0 0
      %3109 = vmatpush1.bf16.msra.mxu0 0
      %3110 = vmatprep.subr.bf16.mxu0 0
      %3111 = vmatpush1.bf16.msra.mxu0 0
      %3112 = vmatprep.subr.bf16.mxu0 0
      %3113 = vmatpush1.bf16.msra.mxu0 0
      %3114 = vmatprep.subr.bf16.mxu0 0
      %3115 = vmatpush1.bf16.msra.mxu0 0
      %3116 = vmatprep.subr.bf16.mxu0 0
      %3117 = vmatpush1.bf16.msra.mxu0 0
      %3118 = vmatprep.subr.bf16.mxu0 0
      %3119 = vmatpush1.bf16.msra.mxu0 0
      %3120 = vmatprep.subr.bf16.mxu0 0
      %3121 = vmatpush1.bf16.msra.mxu0 0
      %3122 = vmatprep.subr.bf16.mxu0 0
      %3123 = vmatpush1.bf16.msra.mxu0 0
      %3124 = vmatprep.subr.bf16.mxu0 0
      %3125 = vmatpush1.bf16.msra.mxu0 0
      %3126 = vmatprep.mubr.bf16.mxu0 0
      %3127 = vmatmul.mubr.bf16.gmra.mrb[0].mxu0 %v3092
      %v3128 = vpop.f32.mrb[0].mxu0
      %v3129 = vadd.f32 0.0, %v3128
      %v3130 = vpop.f32.mrb[0].mxu0
      %v3131 = vpop.f32.mrb[0].mxu0
      %v3132 = vpop.f32.mrb[0].mxu0
      %3133 = vdwg.mxu0
      %3135 = vrot.lane.b32.xlu0 %v3129, 16
      %v3136 = vpop.permute.xlu0 %3135
      %3138 = vst.msk [vmem:[#allocation3] sm:$0xff] %vm1766, %v3136
      %3139 = vrot.lane.b32.xlu0 %v2804, 104
      %v3140 = vpop.permute.xlu0 %3139
      %3141 = vrot.lane.b32.xlu0 %v2805, 104
      %v3142 = vpop.permute.xlu0 %3141
      %v3144 = vsel %vm1426, %v3140, 0
      %v3147 = vsel %vm1426, %v3142, 0
      %3149 = vmatprep.subr.bf16.mxu0 0
      %3150 = vmatpush1.bf16.xpose.msra.mxu0 %v3147
      %3151 = vmatprep.subr.bf16.mxu0 0
      %3152 = vmatpush1.bf16.xpose.msra.mxu0 0
      %3153 = vmatprep.subr.bf16.mxu0 0
      %3154 = vmatpush1.bf16.xpose.msra.mxu0 0
      %3155 = vmatprep.subr.bf16.mxu0 0
      %3156 = vmatpush1.bf16.xpose.msra.mxu0 0
      %3157 = vmatprep.subr.bf16.mxu0 0
      %3158 = vmatpush1.bf16.xpose.msra.mxu0 0
      %3159 = vmatprep.subr.bf16.mxu0 0
      %3160 = vmatpush1.bf16.xpose.msra.mxu0 0
      %3161 = vmatprep.subr.bf16.mxu0 0
      %3162 = vmatpush1.bf16.xpose.msra.mxu0 0
      %3163 = vmatprep.subr.bf16.mxu0 0
      %3164 = vmatpush1.bf16.xpose.msra.mxu0 0
      %3165 = vmatprep.subr.bf16.mxu0 0
      %3166 = vmatpush1.bf16.xpose.msra.mxu0 0
      %3167 = vmatprep.subr.bf16.mxu0 0
      %3168 = vmatpush1.bf16.xpose.msra.mxu0 0
      %3169 = vmatprep.subr.bf16.mxu0 0
      %3170 = vmatpush1.bf16.xpose.msra.mxu0 0
      %3171 = vmatprep.subr.bf16.mxu0 0
      %3172 = vmatpush1.bf16.xpose.msra.mxu0 0
      %3173 = vmatprep.subr.bf16.mxu0 0
      %3174 = vmatpush1.bf16.xpose.msra.mxu0 0
      %3175 = vmatprep.subr.bf16.mxu0 0
      %3176 = vmatpush1.bf16.xpose.msra.mxu0 0
      %3177 = vmatprep.subr.bf16.mxu0 0
      %3178 = vmatpush1.bf16.xpose.msra.mxu0 0
      %3179 = vmatprep.subr.bf16.mxu0 0
      %3180 = vmatpush1.bf16.xpose.msra.mxu0 0
      %3181 = vmatprep.mubr.bf16.mxu0 0
      %3182 = vmatmul.mubr.bf16.gmra.mrb[0].mxu0 %v3144
      %v3183 = vpop.f32.mrb[0].mxu0
      %v3184 = vadd.f32 0.0, %v3183
      %v3185 = vpop.f32.mrb[0].mxu0
      %v3186 = vpop.f32.mrb[0].mxu0
      %v3187 = vpop.f32.mrb[0].mxu0
      %3188 = vdwg.mxu0
      %v3189 = vsel %vm2171, %v3184, -inf
      %3190 = vmax.xlane.f32.xlu0 %v3189
      %v3191 = vpop.xlane.xlu0 %3190
      %v3192 = vsub.f32 %v3184, %v3191
      %v3193 = vmul.f32 %v3192, 1.442695
      %v3194 = vpow.pop %v3193
      %v3195 = vsel %vm2171, %v3194, 0.0
      %3196 = vadd.xlane.f32.xlu0 %v3195
      %v3197 = vpop.xlane.xlu0 %3196
      %v3198 = vrcp.pop %v3197
      %v3199 = vmul.f32 %v3194, %v3198
      %v3200 = vpack.c.bf16 %v3199, %v3199
      %3201 = vrot.lane.b32.xlu0 %v2805, 72
      %v3202 = vpop.permute.xlu0 %3201
      %v3205 = vsel %vm2171, %v3200, 0
      %3207 = vmatprep.subr.bf16.mxu0 0
      %3208 = vmatpush1.bf16.msra.mxu0 %v3202
      %3209 = vmatprep.subr.bf16.mxu0 0
      %3210 = vmatpush1.bf16.msra.mxu0 0
      %3211 = vmatprep.subr.bf16.mxu0 0
      %3212 = vmatpush1.bf16.msra.mxu0 0
      %3213 = vmatprep.subr.bf16.mxu0 0
      %3214 = vmatpush1.bf16.msra.mxu0 0
      %3215 = vmatprep.subr.bf16.mxu0 0
      %3216 = vmatpush1.bf16.msra.mxu0 0
      %3217 = vmatprep.subr.bf16.mxu0 0
      %3218 = vmatpush1.bf16.msra.mxu0 0
      %3219 = vmatprep.subr.bf16.mxu0 0
      %3220 = vmatpush1.bf16.msra.mxu0 0
      %3221 = vmatprep.subr.bf16.mxu0 0
      %3222 = vmatpush1.bf16.msra.mxu0 0
      %3223 = vmatprep.subr.bf16.mxu0 0
      %3224 = vmatpush1.bf16.msra.mxu0 0
      %3225 = vmatprep.subr.bf16.mxu0 0
      %3226 = vmatpush1.bf16.msra.mxu0 0
      %3227 = vmatprep.subr.bf16.mxu0 0
      %3228 = vmatpush1.bf16.msra.mxu0 0
      %3229 = vmatprep.subr.bf16.mxu0 0
      %3230 = vmatpush1.bf16.msra.mxu0 0
      %3231 = vmatprep.subr.bf16.mxu0 0
      %3232 = vmatpush1.bf16.msra.mxu0 0
      %3233 = vmatprep.subr.bf16.mxu0 0
      %3234 = vmatpush1.bf16.msra.mxu0 0
      %3235 = vmatprep.subr.bf16.mxu0 0
      %3236 = vmatpush1.bf16.msra.mxu0 0
      %3237 = vmatprep.subr.bf16.mxu0 0
      %3238 = vmatpush1.bf16.msra.mxu0 0
      %3239 = vmatprep.mubr.bf16.mxu0 0
      %3240 = vmatmul.mubr.bf16.gmra.mrb[0].mxu0 %v3205
      %v3241 = vpop.f32.mrb[0].mxu0
      %v3242 = vadd.f32 0.0, %v3241
      %v3243 = vpop.f32.mrb[0].mxu0
      %v3244 = vpop.f32.mrb[0].mxu0
      %v3245 = vpop.f32.mrb[0].mxu0
      %3246 = vdwg.mxu0
      %3248 = vrot.lane.b32.xlu0 %v3242, 24
      %v3249 = vpop.permute.xlu0 %3248
      %3251 = vst.msk [vmem:[#allocation3] sm:$0xff] %vm1882, %v3249
      %v3252 = vld [vmem:[#allocation3] sm:$0xff]
      %v3253 = vpack.c.bf16 %v3252, %v3252
      %v3255 = vlaneseq
      %v3256 = vshrl.u32 %v3255, 7
      %v3257 = vsub.s32 0, %v3256
      %v3258 = vrot.slane %v2803, %v3257
      %v3264 = vunpack.c.l.b16 %v2799
      %v3265 = vunpack.c.l.b16 %v2800
      %v3266 = vunpack.c.l.b16 %v2801
      %v3267 = vunpack.c.l.b16 %v2802
      %v3268 = vpack.c.b16 %v3265, %v3264
      %v3269 = vpack.c.b16 %v3267, %v3266
      %v3273 = vsel %vm1371, %v3253, 0
      %3275 = vmatprep.subr.bf16.mxu0 0
      %3276 = vmatpush1.bf16.msra.mxu0 %v3268
      %3277 = vmatprep.subr.bf16.mxu0 0
      %3278 = vmatpush1.bf16.msra.mxu0 %v3269
      %3279 = vmatprep.subr.bf16.mxu0 0
      %3280 = vmatpush1.bf16.msra.mxu0 0
      %3281 = vmatprep.subr.bf16.mxu0 0
      %3282 = vmatpush1.bf16.msra.mxu0 0
      %3283 = vmatprep.subr.bf16.mxu0 0
      %3284 = vmatpush1.bf16.msra.mxu0 0
      %3285 = vmatprep.subr.bf16.mxu0 0
      %3286 = vmatpush1.bf16.msra.mxu0 0
      %3287 = vmatprep.subr.bf16.mxu0 0
      %3288 = vmatpush1.bf16.msra.mxu0 0
      %3289 = vmatprep.subr.bf16.mxu0 0
      %3290 = vmatpush1.bf16.msra.mxu0 0
      %3291 = vmatprep.subr.bf16.mxu0 0
      %3292 = vmatpush1.bf16.msra.mxu0 0
      %3293 = vmatprep.subr.bf16.mxu0 0
      %3294 = vmatpush1.bf16.msra.mxu0 0
      %3295 = vmatprep.subr.bf16.mxu0 0
      %3296 = vmatpush1.bf16.msra.mxu0 0
      %3297 = vmatprep.subr.bf16.mxu0 0
      %3298 = vmatpush1.bf16.msra.mxu0 0
      %3299 = vmatprep.subr.bf16.mxu0 0
      %3300 = vmatpush1.bf16.msra.mxu0 0
      %3301 = vmatprep.subr.bf16.mxu0 0
      %3302 = vmatpush1.bf16.msra.mxu0 0
      %3303 = vmatprep.subr.bf16.mxu0 0
      %3304 = vmatpush1.bf16.msra.mxu0 0
      %3305 = vmatprep.subr.bf16.mxu0 0
      %3306 = vmatpush1.bf16.msra.mxu0 0
      %3307 = vmatprep.mubr.bf16.mxu0 0
      %3308 = vmatmul.mubr.bf16.gmra.mrb[0].mxu0 %v3273
      %v3309 = vpop.f32.mrb[0].mxu0
      %v3310 = vadd.f32 %v3258, %v3309
      %v3311 = vpop.f32.mrb[0].mxu0
      %v3312 = vpop.f32.mrb[0].mxu0
      %v3313 = vpop.f32.mrb[0].mxu0
      %3314 = vdwg.mxu0
      %v3315 = vadd.f32 %v2662, %v3310
      %v3316 = vsel %vm1371, %v3315, 0.0
      %3317 = vadd.xlane.f32.xlu0 %v3316
      %v3318 = vpop.xlane.xlu0 %3317
      %v3319 = vmul.f32 %v3318, %v1951
      %v3320 = vsub.f32 %v3315, %v3319
      %v3321 = vmul.f32 %v3320, %v3320
      %v3322 = vsel %vm1371, %v3321, 0.0
      %3323 = vadd.xlane.f32.xlu0 %v3322
      %v3324 = vpop.xlane.xlu0 %3323
      %v3325 = vmul.f32 %v3324, %v1951
      %v3326 = vadd.f32 %v3325, 1e-05
      %v3327 = vrsqrt.pop %v3326
      %v3328 = vmul.f32 %v3320, %v3327
      %v3330 = vlaneseq
      %v3331 = vshrl.u32 %v3330, 7
      %v3332 = vsub.s32 0, %v3331
      %v3333 = vrot.slane %v1341, %v3332
      %v3335 = vmul.f32 %v3328, %v3333
      %v3337 = vlaneseq
      %v3338 = vshrl.u32 %v3337, 7
      %v3339 = vsub.s32 0, %v3338
      %v3340 = vrot.slane %v1345, %v3339
      %v3342 = vadd.f32 %v3335, %v3340
      %v3343 = vld [vmem:[%s1300] sm:$0xf]
      %v3344 = vld [vmem:[%s1300 + $0x4] sm:$0xf]
      %v3345 = vld [vmem:[%s1300 + $0x8] sm:$0xf]
      %v3346 = vld [vmem:[%s1300 + $0xc] sm:$0xf]
      %v3347 = vpack.c.bf16 %v3342, %v3342
      %v3348 = vld [vmem:[%s1303] sm:$0x1]
      %v3350 = vlaneseq
      %v3351 = vshrl.u32 %v3350, 7
      %v3352 = vsub.s32 0, %v3351
      %v3353 = vrot.slane %v3348, %v3352
      %v3359 = vunpack.c.l.b16 %v3343
      %v3360 = vunpack.c.l.b16 %v3344
      %v3361 = vunpack.c.l.b16 %v3345
      %v3362 = vunpack.c.l.b16 %v3346
      %v3363 = vpack.c.b16 %v3360, %v3359
      %v3364 = vpack.c.b16 %v3362, %v3361
      %v3368 = vsel %vm1371, %v3347, 0
      %3370 = vmatprep.subr.bf16.mxu0 0
      %3371 = vmatpush1.bf16.msra.mxu0 %v3363
      %3372 = vmatprep.subr.bf16.mxu0 0
      %3373 = vmatpush1.bf16.msra.mxu0 %v3364
      %3374 = vmatprep.subr.bf16.mxu0 0
      %3375 = vmatpush1.bf16.msra.mxu0 0
      %3376 = vmatprep.subr.bf16.mxu0 0
      %3377 = vmatpush1.bf16.msra.mxu0 0
      %3378 = vmatprep.subr.bf16.mxu0 0
      %3379 = vmatpush1.bf16.msra.mxu0 0
      %3380 = vmatprep.subr.bf16.mxu0 0
      %3381 = vmatpush1.bf16.msra.mxu0 0
      %3382 = vmatprep.subr.bf16.mxu0 0
      %3383 = vmatpush1.bf16.msra.mxu0 0
      %3384 = vmatprep.subr.bf16.mxu0 0
      %3385 = vmatpush1.bf16.msra.mxu0 0
      %3386 = vmatprep.subr.bf16.mxu0 0
      %3387 = vmatpush1.bf16.msra.mxu0 0
      %3388 = vmatprep.subr.bf16.mxu0 0
      %3389 = vmatpush1.bf16.msra.mxu0 0
      %3390 = vmatprep.subr.bf16.mxu0 0
      %3391 = vmatpush1.bf16.msra.mxu0 0
      %3392 = vmatprep.subr.bf16.mxu0 0
      %3393 = vmatpush1.bf16.msra.mxu0 0
      %3394 = vmatprep.subr.bf16.mxu0 0
      %3395 = vmatpush1.bf16.msra.mxu0 0
      %3396 = vmatprep.subr.bf16.mxu0 0
      %3397 = vmatpush1.bf16.msra.mxu0 0
      %3398 = vmatprep.subr.bf16.mxu0 0
      %3399 = vmatpush1.bf16.msra.mxu0 0
      %3400 = vmatprep.subr.bf16.mxu0 0
      %3401 = vmatpush1.bf16.msra.mxu0 0
      %3402 = vmatprep.mubr.bf16.mxu0 0
      %3403 = vmatmul.mubr.bf16.gmra.mrb[0].mxu0 %v3368
      %v3404 = vpop.f32.mrb[0].mxu0
      %v3405 = vadd.f32 %v3353, %v3404
      %v3406 = vpop.f32.mrb[0].mxu0
      %v3407 = vpop.f32.mrb[0].mxu0
      %v3408 = vpop.f32.mrb[0].mxu0
      %3409 = vdwg.mxu0
      %v3410 = vmax.f32 %v3405, 0.0
      %v3411 = vld [vmem:[%s1308] sm:$0xf]
      %v3412 = vld [vmem:[%s1308 + $0x4] sm:$0xf]
      %v3413 = vld [vmem:[%s1308 + $0x8] sm:$0xf]
      %v3414 = vld [vmem:[%s1308 + $0xc] sm:$0xf]
      %v3415 = vld [vmem:[%s1308 + $0x10] sm:$0xf]
      %v3416 = vld [vmem:[%s1308 + $0x14] sm:$0xf]
      %v3417 = vld [vmem:[%s1308 + $0x18] sm:$0xf]
      %v3418 = vld [vmem:[%s1308 + $0x1c] sm:$0xf]
      %v3419 = vpack.c.bf16 %v3410, %v3410
      %v3420 = vld [vmem:[%s1311] sm:$0x1]
      %v3422 = vlaneseq
      %v3423 = vshrl.u32 %v3422, 7
      %v3424 = vsub.s32 0, %v3423
      %v3425 = vrot.slane %v3420, %v3424
      %v3435 = vunpack.c.l.b16 %v3411
      %v3436 = vunpack.c.l.b16 %v3412
      %v3437 = vunpack.c.l.b16 %v3413
      %v3438 = vunpack.c.l.b16 %v3414
      %v3439 = vunpack.c.l.b16 %v3415
      %v3440 = vunpack.c.l.b16 %v3416
      %v3441 = vunpack.c.l.b16 %v3417
      %v3442 = vunpack.c.l.b16 %v3418
      %v3443 = vpack.c.b16 %v3436, %v3435
      %v3444 = vpack.c.b16 %v3438, %v3437
      %v3445 = vpack.c.b16 %v3440, %v3439
      %v3446 = vpack.c.b16 %v3442, %v3441
      %vm3451 = vcmask 523264
      %v3453 = vsel %vm3451, %v3419, 0
      %3455 = vmatprep.subr.bf16.mxu0 0
      %3456 = vmatpush1.bf16.msra.mxu0 %v3443
      %3457 = vmatprep.subr.bf16.mxu0 0
      %3458 = vmatpush1.bf16.msra.mxu0 %v3444
      %3459 = vmatprep.subr.bf16.mxu0 0
      %3460 = vmatpush1.bf16.msra.mxu0 %v3445
      %3461 = vmatprep.subr.bf16.mxu0 0
      %3462 = vmatpush1.bf16.msra.mxu0 %v3446
      %3463 = vmatprep.subr.bf16.mxu0 0
      %3464 = vmatpush1.bf16.msra.mxu0 0
      %3465 = vmatprep.subr.bf16.mxu0 0
      %3466 = vmatpush1.bf16.msra.mxu0 0
      %3467 = vmatprep.subr.bf16.mxu0 0
      %3468 = vmatpush1.bf16.msra.mxu0 0
      %3469 = vmatprep.subr.bf16.mxu0 0
      %3470 = vmatpush1.bf16.msra.mxu0 0
      %3471 = vmatprep.subr.bf16.mxu0 0
      %3472 = vmatpush1.bf16.msra.mxu0 0
      %3473 = vmatprep.subr.bf16.mxu0 0
      %3474 = vmatpush1.bf16.msra.mxu0 0
      %3475 = vmatprep.subr.bf16.mxu0 0
      %3476 = vmatpush1.bf16.msra.mxu0 0
      %3477 = vmatprep.subr.bf16.mxu0 0
      %3478 = vmatpush1.bf16.msra.mxu0 0
      %3479 = vmatprep.subr.bf16.mxu0 0
      %3480 = vmatpush1.bf16.msra.mxu0 0
      %3481 = vmatprep.subr.bf16.mxu0 0
      %3482 = vmatpush1.bf16.msra.mxu0 0
      %3483 = vmatprep.subr.bf16.mxu0 0
      %3484 = vmatpush1.bf16.msra.mxu0 0
      %3485 = vmatprep.subr.bf16.mxu0 0
      %3486 = vmatpush1.bf16.msra.mxu0 0
      %3487 = vmatprep.mubr.bf16.mxu0 0
      %3488 = vmatmul.mubr.bf16.gmra.mrb[0].mxu0 %v3453
      %v3489 = vpop.f32.mrb[0].mxu0
      %v3490 = vadd.f32 %v3425, %v3489
      %v3491 = vpop.f32.mrb[0].mxu0
      %v3492 = vpop.f32.mrb[0].mxu0
      %v3493 = vpop.f32.mrb[0].mxu0
      %3494 = vdwg.mxu0
      %v3495 = vadd.f32 %v3342, %v3490
      %v3496 = vsel %vm1371, %v3495, 0.0
      %3497 = vadd.xlane.f32.xlu0 %v3496
      %v3498 = vpop.xlane.xlu0 %3497
      %v3499 = vmul.f32 %v3498, %v1951
      %v3500 = vsub.f32 %v3495, %v3499
      %v3501 = vmul.f32 %v3500, %v3500
      %v3502 = vsel %vm1371, %v3501, 0.0
      %3503 = vadd.xlane.f32.xlu0 %v3502
      %v3504 = vpop.xlane.xlu0 %3503
      %v3505 = vmul.f32 %v3504, %v1951
      %v3506 = vadd.f32 %v3505, 1e-05
      %v3507 = vrsqrt.pop %v3506
      %v3508 = vmul.f32 %v3500, %v3507
      %v3510 = vlaneseq
      %v3511 = vshrl.u32 %v3510, 7
      %v3512 = vsub.s32 0, %v3511
      %v3513 = vrot.slane %v1342, %v3512
      %v3515 = vmul.f32 %v3508, %v3513
      %v3517 = vlaneseq
      %v3518 = vshrl.u32 %v3517, 7
      %v3519 = vsub.s32 0, %v3518
      %v3520 = vrot.slane %v1346, %v3519
      %v3522 = vadd.f32 %v3515, %v3520
      %3523 = vst.msk [vmem:[#allocation2] sm:$0xff] %vm1371, %v3522
      %p3524 = scmp.eq.s32.totalorder %s75, 1
      // Predicated region
      $region141: #{double_sen_attn_transformer_decoder.1} parent=135 // pred_check
        %p3525 = pneg %p3524
      $region142: #{double_sen_attn_transformer_decoder.1} parent=135 // pred_check_branch
        %3527 = sbr.rel (%p3525) target = $region144
      $region143: #{double_sen_attn_transformer_decoder.1} parent=135 // pred_region
        %v3528 = vld [vmem:[%s55] sm:$0x1]
        %v3529 = vld [vmem:[%s57] sm:$0x1]
        %v3530 = vsel %vm1371, %v3522, 0.0
        %3531 = vadd.xlane.f32.xlu0 %v3530
        %v3532 = vpop.xlane.xlu0 %3531
        %v3533 = vmul.f32 %v3532, %v1951
        %v3534 = vsub.f32 %v3522, %v3533
        %v3535 = vmul.f32 %v3534, %v3534
        %v3536 = vsel %vm1371, %v3535, 0.0
        %3537 = vadd.xlane.f32.xlu0 %v3536
        %v3538 = vpop.xlane.xlu0 %3537
        %v3539 = vmul.f32 %v3538, %v1951
        %v3540 = vadd.f32 %v3539, 1e-05
        %v3541 = vrsqrt.pop %v3540
        %v3542 = vmul.f32 %v3534, %v3541
        %v3544 = vlaneseq
        %v3545 = vshrl.u32 %v3544, 7
        %v3546 = vsub.s32 0, %v3545
        %v3547 = vrot.slane %v3528, %v3546
        %v3549 = vmul.f32 %v3542, %v3547
        %v3551 = vlaneseq
        %v3552 = vshrl.u32 %v3551, 7
        %v3553 = vsub.s32 0, %v3552
        %v3554 = vrot.slane %v3529, %v3553
        %v3556 = vadd.f32 %v3549, %v3554
        %3557 = vst.msk [vmem:[%s1323] sm:$0xff] %vm1371, %v3556
      $region144: #{double_sen_attn_transformer_decoder.1} parent=135 // pred_fallthru
        _
      %p3558 = scmp.lt.s32.totalorder %s74, 1
      %s3559 = scalar_select %p3558, %s74, 1
      %s3560 = smul.addr %s3559, 8
      %s3561 = scalar_lea.vmem %s59, %s3560
      // Predicated region
      $region145: #{double_sen_attn_transformer_decoder.1} parent=135 // pred_check
        %p3562 = pneg %p834
      $region146: #{double_sen_attn_transformer_decoder.1} parent=135 // pred_check_branch
        %3564 = sbr.rel (%p3562) target = $region148
      $region147: #{double_sen_attn_transformer_decoder.1} parent=135 // pred_region
        _
      $region148: #{double_sen_attn_transformer_decoder.1} parent=135 // pred_fallthru
        _
    $region136: #{double_sen_attn_transformer_decoder.1} parent=5 // pred_fallthru
      _
    %p3565 = scmp.le.s32.totalorder 2, %s65
    // Predicated region
    $region149: #{double_sen_attn_transformer_decoder.1} parent=5 // pred_check
      %p3566 = pneg %p3565
    $region150: #{double_sen_attn_transformer_decoder.1} parent=5 // pred_check_branch
      %3568 = sbr.rel (%p3566) target = $region152
    $region151: #{double_sen_attn_transformer_decoder.1} parent=5 // pred_region
      %s3569 = ssub.s32 %s65, 2
      // Predicated region
      $region153: #{double_sen_attn_transformer_decoder.1} parent=151 // pred_check
        %p3570 = pneg %p840
      $region154: #{double_sen_attn_transformer_decoder.1} parent=151 // pred_check_branch
        %3572 = sbr.rel (%p3570) target = $region156
      $region155: #{double_sen_attn_transformer_decoder.1} parent=151 // pred_region
        %p3573 = scmp.lt.s32.totalorder %s76, 1
        %s3574 = scalar_select %p3573, %s76, 1
        %s3575 = smul.addr %s3574, 8
        %s3576 = scalar_lea.vmem %s59, %s3575
      $region156: #{double_sen_attn_transformer_decoder.1} parent=151 // pred_fallthru
        _
    $region152: #{double_sen_attn_transformer_decoder.1} parent=5 // pred_fallthru
      _
  $region6: #{double_sen_attn_transformer_decoder.1} parent=0 // loop_footer
    %s69 = sadd.s32 1, %s65
  $region7: #{double_sen_attn_transformer_decoder.1} parent=0 // loop_footer_branch
    %64 = sbr.rel target = $region3
  $region8: #{double_sen_attn_transformer_decoder.1} parent=0 // loop_exit
    _

</llo_original>
